<compile_context>
chip_gen: v6e
topology: v6e:2x2x1
jax: 0.10.0
libtpu: 0.0.40
codegen_flags: <defaults>
</compile_context>

<pallas_src>
import functools
import math

import jax
import jax.numpy as jnp
import numpy as np
from jax import lax
from jax.experimental import pallas as pl
from jax.experimental.pallas import tpu as pltpu

_BN_EPS = 1e-5


def _device_kind():
    try:
        return jax.devices()[0].device_kind.lower()
    except Exception:
        return ""


def _cout_tile(cout):
    # v5e MXU is 128-wide -> prefer 128; v6e/v7x are 256-wide -> prefer 256.
    # Fall back to the full dim when cout has no 128-multiple (perf trap only).
    prefer = (128, 256) if "v5" in _device_kind() else (256, 128)
    for t in prefer:
        if cout % t == 0:
            return t
    return cout


def _vmem_limit():
    # v7x has 64 MiB physical VMEM -> tighter scoped budget there.
    return (40 if "v7" in _device_kind() else 64) * 1024 * 1024


def _compiler_params():
    # j (cout-tile) axis must be "arbitrary": per-image VMEM caches built at j==0
    # are reused by later j steps of the same image.
    return pltpu.CompilerParams(dimension_semantics=("parallel", "arbitrary"),
                                vmem_limit_bytes=_vmem_limit())


def _bn_affine(gamma, beta, mean, var):
    scale = gamma / jnp.sqrt(var + _BN_EPS)
    shift = beta - mean * scale
    return scale, shift


def dorefa_weight_quant_int(w, w_bit):
    """Conv2d_Q_ (DoReFa) weight quantization, returned on the integer grid.

    Real quantized weight = (2*round(wt*n) - n) / n, n = 2**w_bit - 1.  We return the
    integer numerator (exactly representable in bf16 for w_bit <= 8) and fold the 1/n
    scale into the GEMM epilogue.
    """
    # TODO(synk): w_bit in {1, 32} paths of Conv2d_Q_ not modeled here.
    assert w_bit not in (1, 32), "w_bit in {1, 32} not supported"
    n = float(2 ** w_bit - 1)
    wt = jnp.tanh(w)
    wt = wt / (2.0 * jnp.max(jnp.abs(wt))) + 0.5
    return 2.0 * jnp.round(wt * n) - n            # integer-valued f32 in [-n, n]


# ----------------------------- Pallas kernels -----------------------------

def conv1_bn_act_kernel(x_ref, s1_ref, b1_ref, w_ref, s2_ref, b2_ref, o_ref,
                        a_ref, col_ref, *, na, nw, stride, H, W, Ho, Wo, cin):
    # x_ref:   (1, H, W, Cin) f32 raw input (no HBM pad)
    # w_ref:   (9*Cin, TC) bf16 integer-valued DoReFa weights, im2col layout
    # o_ref:   (1, Ho, Wo, TC) bf16 integer-valued act2(bn2(conv1(act1(bn1(x)))))
    # a_ref:   VMEM scratch (H+2, W+2, Cin) bf16 -- zero-haloed quantized act1
    # col_ref: VMEM scratch (Ho*Wo, 9*Cin) bf16  -- per-image im2col buffer

    # per-image work cached at j == 0 and reused by every cout tile of this image
    @pl.when(pl.program_id(1) == 0)
    def _():
        s1 = s1_ref[...].reshape(1, 1, -1)
        b1 = b1_ref[...].reshape(1, 1, -1)
        # fused bn1 + a-bit activation quant; single bf16 cast (exact integer grid)
        q = jnp.round(jnp.clip(x_ref[0] * s1 + b1, 0.0, 1.0) * na).astype(jnp.bfloat16)
        # zero halo built directly in VMEM (reproduces conv zero-padding exactly)
        a_ref[...] = jnp.zeros_like(a_ref)
        a_ref[1:H + 1, 1:W + 1, :] = q
        a = a_ref[...]
        # im2col built ONCE per image; stride folded into the patch slices
        patches = []
        for di in range(3):
            for dj in range(3):
                rs = di + stride * (Ho - 1) + 1
                cs = dj + stride * (Wo - 1) + 1
                patches.append(a[di:rs:stride, dj:cs:stride, :].reshape(Ho * Wo, cin))
        col_ref[...] = jnp.concatenate(patches, axis=-1)

    # single MXU GEMM per cout tile (K = 9*Cin); MXU accumulates internally.
    acc = jnp.dot(col_ref[...], w_ref[...], preferred_element_type=jnp.float32)
    y = acc * (1.0 / (na * nw))                              # conv1 output, real scale
    # TODO(synk): nn.Dropout(0.3) modeled in eval/inference mode (identity).
    y = jnp.clip(y * s2_ref[...] + b2_ref[...], 0.0, 1.0)    # fused bn2 + act2
    o_ref[0] = jnp.round(y * na).reshape(Ho, Wo, -1).astype(o_ref.dtype)


def conv2_residual_kernel(y_ref, w_ref, xsc_ref, s1_ref, b1_ref, *rest,
                          na, nw, sc_conv, Ho, Wo, cp):
    # y_ref:   (1, Ho, Wo, Cp) bf16 integer act2 (no HBM pad)
    # w_ref:   (9*Cp, TC) bf16 integer-valued DoReFa weights, im2col layout
    # xsc_ref: (1, Ho, Wo, Csc) f32 raw x at shortcut sample positions
    #          (blocked along j when the shortcut is identity)
    # rest:    (wsc_ref, o_ref, yh, col, a1) if sc_conv else (o_ref, yh, col)
    if sc_conv:
        wsc_ref, o_ref, yh_ref, col_ref, a1_ref = rest
    else:
        o_ref, yh_ref, col_ref = rest

    @pl.when(pl.program_id(1) == 0)
    def _():
        # zero halo + im2col for conv2, built once per image in VMEM
        yh_ref[...] = jnp.zeros_like(yh_ref)
        yh_ref[1:Ho + 1, 1:Wo + 1, :] = y_ref[0]
        yh = yh_ref[...]
        patches = [yh[di:di + Ho, dj:dj + Wo, :].reshape(Ho * Wo, cp)
                   for di in range(3) for dj in range(3)]
        col_ref[...] = jnp.concatenate(patches, axis=-1)
        if sc_conv:
            # cache act1(bn1(x_sc)) on the integer grid once per image
            s1 = s1_ref[...].reshape(1, 1, -1)
            b1 = b1_ref[...].reshape(1, 1, -1)
            a1_ref[...] = jnp.round(
                jnp.clip(xsc_ref[0] * s1 + b1, 0.0, 1.0) * na).reshape(Ho * Wo, -1)

    out = jnp.dot(col_ref[...], w_ref[...],
                  preferred_element_type=jnp.float32) * (1.0 / (na * nw))
    if sc_conv:
        # 1x1 unquantized conv shortcut; the 1/na activation scale is folded into wsc
        out = out + jnp.dot(a1_ref[...], wsc_ref[...],
                            preferred_element_type=jnp.float32)
    else:
        # identity shortcut: xsc/s1/b1 are blocked along j, so each channel slice is
        # recomputed exactly once per image (no redundancy, no scratch needed)
        s1 = s1_ref[...].reshape(1, 1, -1)
        b1 = b1_ref[...].reshape(1, 1, -1)
        a1 = jnp.round(jnp.clip(xsc_ref[0] * s1 + b1, 0.0, 1.0) * na)
        out = out + a1.reshape(Ho * Wo, -1) * (1.0 / na)
    o_ref[0] = out.reshape(Ho, Wo, -1)


# ----------------------------- wrappers -----------------------------

def conv1_bn_act_pallas(x, s1, b1, w1_int, s2, b2, na, nw, stride):
    N, H, W, cin = x.shape
    cout = w1_int.shape[-1]
    tc = _cout_tile(cout)
    Ho = (H - 1) // stride + 1
    Wo = (W - 1) // stride + 1
    w_col = w1_int.reshape(9 * cin, cout).astype(jnp.bfloat16)   # im2col weight layout
    return pl.pallas_call(
        functools.partial(conv1_bn_act_kernel, na=na, nw=nw, stride=stride,
                          H=H, W=W, Ho=Ho, Wo=Wo, cin=cin),
        out_shape=jax.ShapeDtypeStruct((N, Ho, Wo, cout), jnp.bfloat16),
        grid=(N, cout // tc),
        in_specs=[
            pl.BlockSpec((1, H, W, cin), lambda n, j: (n, 0, 0, 0)),
            pl.BlockSpec((1, cin), lambda n, j: (0, 0)),
            pl.BlockSpec((1, cin), lambda n, j: (0, 0)),
            pl.BlockSpec((9 * cin, tc), lambda n, j: (0, j)),
            pl.BlockSpec((1, tc), lambda n, j: (0, j)),
            pl.BlockSpec((1, tc), lambda n, j: (0, j)),
        ],
        out_specs=pl.BlockSpec((1, Ho, Wo, tc), lambda n, j: (n, 0, 0, j)),
        scratch_shapes=[
            pltpu.VMEM((H + 2, W + 2, cin), jnp.bfloat16),   # haloed quantized act1
            pltpu.VMEM((Ho * Wo, 9 * cin), jnp.bfloat16),    # per-image im2col
        ],
        compiler_params=_compiler_params(),
    )(x,
      s1.reshape(1, cin).astype(jnp.float32), b1.reshape(1, cin).astype(jnp.float32),
      w_col,
      s2.reshape(1, cout).astype(jnp.float32), b2.reshape(1, cout).astype(jnp.float32))


def conv2_residual_pallas(act2, w2_int, x_sc, s1, b1, na, nw, w_sc_eff=None):
    N, Ho, Wo, cp = act2.shape
    cout = w2_int.shape[-1]
    tc = _cout_tile(cout)
    csc = x_sc.shape[-1]
    sc_conv = w_sc_eff is not None
    w_col = w2_int.reshape(9 * cp, cout).astype(jnp.bfloat16)

    in_specs = [
        pl.BlockSpec((1, Ho, Wo, cp), lambda n, j: (n, 0, 0, 0)),
        pl.BlockSpec((9 * cp, tc), lambda n, j: (0, j)),
    ]
    args = [act2, w_col]
    scratch = [
        pltpu.VMEM((Ho + 2, Wo + 2, cp), jnp.bfloat16),   # haloed act2
        pltpu.VMEM((Ho * Wo, 9 * cp), jnp.bfloat16),      # per-image im2col
    ]
    if sc_conv:
        in_specs += [
            pl.BlockSpec((1, Ho, Wo, csc), lambda n, j: (n, 0, 0, 0)),
            pl.BlockSpec((1, csc), lambda n, j: (0, 0)),
            pl.BlockSpec((1, csc), lambda n, j: (0, 0)),
            pl.BlockSpec((csc, tc), lambda n, j: (0, j)),
        ]
        args += [x_sc,
                 s1.reshape(1, csc).astype(jnp.float32),
                 b1.reshape(1, csc).astype(jnp.float32),
                 w_sc_eff.astype(jnp.float32)]
        scratch.append(pltpu.VMEM((Ho * Wo, csc), jnp.float32))  # cached act1(bn1(x_sc))
    else:
        in_specs += [
            pl.BlockSpec((1, Ho, Wo, tc), lambda n, j: (n, 0, 0, j)),
            pl.BlockSpec((1, tc), lambda n, j: (0, j)),
            pl.BlockSpec((1, tc), lambda n, j: (0, j)),
        ]
        args += [x_sc,
                 s1.reshape(1, csc).astype(jnp.float32),
                 b1.reshape(1, csc).astype(jnp.float32)]

    return pl.pallas_call(
        functools.partial(conv2_residual_kernel, na=na, nw=nw, sc_conv=sc_conv,
                          Ho=Ho, Wo=Wo, cp=cp),
        out_shape=jax.ShapeDtypeStruct((N, Ho, Wo, cout), jnp.float32),
        grid=(N, cout // tc),
        in_specs=in_specs,
        out_specs=pl.BlockSpec((1, Ho, Wo, tc), lambda n, j: (n, 0, 0, j)),
        scratch_shapes=scratch,
        compiler_params=_compiler_params(),
    )(*args)


# ----------------------------- block forward -----------------------------

def wide_basic_block_q_forward(params, x, a_bit, w_bit, stride):
    N, H, W, in_planes = x.shape
    planes = params["w1"].shape[-1]
    na = float(2 ** a_bit - 1)
    nw = float(2 ** w_bit - 1)

    s1, b1 = _bn_affine(params["bn1_gamma"], params["bn1_beta"],
                        params["bn1_mean"], params["bn1_var"])
    s2, b2 = _bn_affine(params["bn2_gamma"], params["bn2_beta"],
                        params["bn2_mean"], params["bn2_var"])
    w1_int = dorefa_weight_quant_int(params["w1"], w_bit)
    w2_int = dorefa_weight_quant_int(params["w2"], w_bit)

    # kernel A: bn1 + act1 + conv1 (stride folded in) + bn2 + act2
    act2 = conv1_bn_act_pallas(x, s1, b1, w1_int, s2, b2, na, nw, stride)

    # TODO(synk): the strided shortcut-source gather stays in JAX; fold into kernel B
    #             for production stride>1 blocks.
    x_sc = x if stride == 1 else x[:, ::stride, ::stride, :]

    # kernel B: conv2 + shortcut (1x1 conv / identity, recomputing act1(bn1(x))) + add
    if stride != 1 or in_planes != planes:
        w_sc_eff = params["w_sc"].reshape(in_planes, planes) / na   # fold act scale 1/na
        out = conv2_residual_pallas(act2, w2_int, x_sc, s1, b1, na, nw, w_sc_eff)
    else:
        out = conv2_residual_pallas(act2, w2_int, x_sc, s1, b1, na, nw, None)
    return out


def init_params(key, in_planes, planes, has_shortcut):
    ks = jax.random.split(key, 11)
    p = {}
    p["w1"] = (jax.random.normal(ks[0], (3, 3, in_planes, planes), jnp.float32)
               * math.sqrt(2.0 / (9 * in_planes)))
    p["w2"] = (jax.random.normal(ks[1], (3, 3, planes, planes), jnp.float32)
               * math.sqrt(2.0 / (9 * planes)))
    p["bn1_gamma"] = jax.random.uniform(ks[2], (in_planes,), jnp.float32, 0.5, 1.5)
    p["bn1_beta"] = 0.1 * jax.random.normal(ks[3], (in_planes,), jnp.float32)
    p["bn1_mean"] = 0.1 * jax.random.normal(ks[4], (in_planes,), jnp.float32)
    p["bn1_var"] = jax.random.uniform(ks[5], (in_planes,), jnp.float32, 0.5, 1.5)
    p["bn2_gamma"] = jax.random.uniform(ks[6], (planes,), jnp.float32, 0.5, 1.5)
    p["bn2_beta"] = 0.1 * jax.random.normal(ks[7], (planes,), jnp.float32)
    p["bn2_mean"] = 0.1 * jax.random.normal(ks[8], (planes,), jnp.float32)
    p["bn2_var"] = jax.random.uniform(ks[9], (planes,), jnp.float32, 0.5, 1.5)
    if has_shortcut:
        p["w_sc"] = (jax.random.normal(ks[10], (1, 1, in_planes, planes), jnp.float32)
                     * math.sqrt(2.0 / in_planes))
    return p


# ----------------------------- pure-JAX reference -----------------------------

def ref_forward(params, x, a_bit, w_bit, stride):
    """Reference forward.  Algebraically identical to the PyTorch float formulation:
    quantized activations/weights are kept on their integer grids and the exact scale
    1/((2^a-1)(2^w-1)) is applied after the conv (pure rearrangement of the same math)."""
    na = float(2 ** a_bit - 1)
    nw = float(2 ** w_bit - 1)
    dn = ("NHWC", "HWIO", "NHWC")

    def bn_act_int(v, g, b, m, var):
        s, sh = _bn_affine(g, b, m, var)
        return jnp.round(jnp.clip(v * s + sh, 0.0, 1.0) * na)

    a1 = bn_act_int(x, params["bn1_gamma"], params["bn1_beta"],
                    params["bn1_mean"], params["bn1_var"])
    out1 = lax.conv_general_dilated(
        a1, dorefa_weight_quant_int(params["w1"], w_bit), (stride, stride),
        ((1, 1), (1, 1)), dimension_numbers=dn,
        precision=lax.Precision.HIGHEST) * (1.0 / (na * nw))
    a2 = bn_act_int(out1, params["bn2_gamma"], params["bn2_beta"],
                    params["bn2_mean"], params["bn2_var"])
    out = lax.conv_general_dilated(
        a2, dorefa_weight_quant_int(params["w2"], w_bit), (1, 1),
        ((1, 1), (1, 1)), dimension_numbers=dn,
        precision=lax.Precision.HIGHEST) * (1.0 / (na * nw))
    if "w_sc" in params:
        sc = lax.conv_general_dilated(
            a1 * (1.0 / na), params["w_sc"], (stride, stride), ((0, 0), (0, 0)),
            dimension_numbers=dn, precision=lax.Precision.HIGHEST)
    else:
        sc = a1 * (1.0 / na)
    return out + sc


# ----------------------------- main -----------------------------

if __name__ == "__main__":
    a_bit, w_bit = 4, 4
    N, H, W = 2, 16, 16
    in_planes, planes, stride = 4, 8, 1          # in_planes != planes -> 1x1 conv shortcut

    key = jax.random.PRNGKey(0)
    kx, kp = jax.random.split(key)
    x = jax.random.normal(kx, (N, H, W, in_planes), jnp.float32)
    params = init_params(kp, in_planes, planes,
                         has_shortcut=(stride != 1 or in_planes != planes))

    fwd = jax.jit(functools.partial(wide_basic_block_q_forward,
                                    a_bit=a_bit, w_bit=w_bit, stride=stride))
    out = jax.block_until_ready(fwd(params, x))

    ref = ref_forward(params, x, a_bit, w_bit, stride)
    np.testing.assert_allclose(np.asarray(out), np.asarray(ref), rtol=1e-3, atol=1e-3)

    print("KERNEL_OK")
</pallas_src>

<mosaic_0001>
module attributes {stable_mosaic.version = 11 : i64} {
  func.func @conv1_bn_act_kernel(%arg0: i32, %arg1: i32, %arg2: memref<1x16x16x4xf32, #tpu.memory_space<vmem>>, %arg3: memref<1x4xf32, #tpu.memory_space<vmem>>, %arg4: memref<1x4xf32, #tpu.memory_space<vmem>>, %arg5: memref<36x8xbf16, #tpu.memory_space<vmem>>, %arg6: memref<1x8xf32, #tpu.memory_space<vmem>>, %arg7: memref<1x8xf32, #tpu.memory_space<vmem>>, %arg8: memref<1x16x16x8xbf16, #tpu.memory_space<vmem>>, %arg9: memref<18x18x4xbf16, #tpu.memory_space<vmem>>, %arg10: memref<256x36xbf16, #tpu.memory_space<vmem>>) attributes {dimension_semantics = [#tpu.dimension_semantics<parallel>, #tpu.dimension_semantics<arbitrary>], iteration_bounds = array<i64: 2, 1>, scalar_prefetch = 0 : i64, scratch_operands = 2 : i64, tpu.core_type = #tpu.core_type<tc>, window_params = [{transform_indices = @transform_0, window_bounds = array<i64: 1, 16, 16, 4>}, {pipeline_mode = #tpu.pipeline_mode<synchronous>, transform_indices = @transform_1, window_bounds = array<i64: 1, 4>}, {pipeline_mode = #tpu.pipeline_mode<synchronous>, transform_indices = @transform_2, window_bounds = array<i64: 1, 4>}, {transform_indices = @transform_3, window_bounds = array<i64: 36, 8>}, {transform_indices = @transform_4, window_bounds = array<i64: 1, 8>}, {transform_indices = @transform_5, window_bounds = array<i64: 1, 8>}, {transform_indices = @transform_6, window_bounds = array<i64: 1, 16, 16, 8>}]} {
    %c0_i32 = arith.constant 0 : i32
    %0 = arith.cmpi eq, %arg1, %c0_i32 : i32
    %1 = arith.extui %0 : i1 to i32
    %c0_i32_0 = arith.constant 0 : i32
    %2 = arith.cmpi ne, %1, %c0_i32_0 : i32
    scf.if %2 {
      %c0_16 = arith.constant 0 : index
      %c0_17 = arith.constant 0 : index
      %26 = vector.load %arg3[%c0_16, %c0_17] : memref<1x4xf32, #tpu.memory_space<vmem>>, vector<1x4xf32>
      %27 = vector.shape_cast %26 : vector<1x4xf32> to vector<1x1x4xf32>
      %c0_18 = arith.constant 0 : index
      %c0_19 = arith.constant 0 : index
      %28 = vector.load %arg4[%c0_18, %c0_19] : memref<1x4xf32, #tpu.memory_space<vmem>>, vector<1x4xf32>
      %29 = vector.shape_cast %28 : vector<1x4xf32> to vector<1x1x4xf32>
      %c0_20 = arith.constant 0 : index
      %c0_21 = arith.constant 0 : index
      %c0_22 = arith.constant 0 : index
      %c0_23 = arith.constant 0 : index
      %30 = vector.load %arg2[%c0_20, %c0_21, %c0_22, %c0_23] : memref<1x16x16x4xf32, #tpu.memory_space<vmem>>, vector<1x16x16x4xf32>
      %31 = vector.shape_cast %30 : vector<1x16x16x4xf32> to vector<16x16x4xf32>
      %32 = vector.broadcast %27 : vector<1x1x4xf32> to vector<16x16x4xf32>
      %33 = arith.mulf %31, %32 : vector<16x16x4xf32>
      %34 = vector.broadcast %29 : vector<1x1x4xf32> to vector<16x16x4xf32>
      %35 = arith.addf %33, %34 : vector<16x16x4xf32>
      %cst_24 = arith.constant 0.000000e+00 : f32
      %cst_25 = arith.constant 1.000000e+00 : f32
      %36 = vector.broadcast %cst_24 : f32 to vector<16x16x4xf32>
      %37 = arith.maximumf %36, %35 : vector<16x16x4xf32>
      %38 = vector.broadcast %cst_25 : f32 to vector<16x16x4xf32>
      %39 = arith.minimumf %38, %37 : vector<16x16x4xf32>
      %cst_26 = arith.constant 1.500000e+01 : f32
      %40 = vector.broadcast %cst_26 : f32 to vector<16x16x4xf32>
      %41 = arith.mulf %39, %40 : vector<16x16x4xf32>
      %42 = math.roundeven %41 : vector<16x16x4xf32>
      %43 = arith.truncf %42 : vector<16x16x4xf32> to vector<16x16x4xbf16>
      %cst_27 = arith.constant 0.000000e+00 : bf16
      %44 = vector.broadcast %cst_27 : bf16 to vector<18x18x4xbf16>
      %c0_28 = arith.constant 0 : index
      %c0_29 = arith.constant 0 : index
      %c0_30 = arith.constant 0 : index
      %45 = vector.load %arg9[%c0_28, %c0_29, %c0_30] : memref<18x18x4xbf16, #tpu.memory_space<vmem>>, vector<18x18x4xbf16>
      tpu.vector_store %arg9[%c0_28, %c0_29, %c0_30], %44 {strides = array<i32>} : memref<18x18x4xbf16, #tpu.memory_space<vmem>>, vector<18x18x4xbf16>,
      %c1 = arith.constant 1 : index
      %c1_31 = arith.constant 1 : index
      %c0_32 = arith.constant 0 : index
      %46 = vector.load %arg9[%c1, %c1_31, %c0_32] : memref<18x18x4xbf16, #tpu.memory_space<vmem>>, vector<16x16x4xbf16>
      tpu.vector_store %arg9[%c1, %c1_31, %c0_32], %43 {strides = array<i32>} : memref<18x18x4xbf16, #tpu.memory_space<vmem>>, vector<16x16x4xbf16>,
      %c0_33 = arith.constant 0 : index
      %c0_34 = arith.constant 0 : index
      %c0_35 = arith.constant 0 : index
      %47 = vector.load %arg9[%c0_33, %c0_34, %c0_35] : memref<18x18x4xbf16, #tpu.memory_space<vmem>>, vector<18x18x4xbf16>
      %48 = vector.extract_strided_slice %47 {offsets = [0, 0, 0], sizes = [16, 16, 4], strides = [1, 1, 1]} : vector<18x18x4xbf16> to vector<16x16x4xbf16>
      %49 = vector.shape_cast %48 : vector<16x16x4xbf16> to vector<256x4xbf16>
      %50 = vector.extract_strided_slice %47 {offsets = [0, 1, 0], sizes = [16, 16, 4], strides = [1, 1, 1]} : vector<18x18x4xbf16> to vector<16x16x4xbf16>
      %51 = vector.shape_cast %50 : vector<16x16x4xbf16> to vector<256x4xbf16>
      %52 = vector.extract_strided_slice %47 {offsets = [0, 2, 0], sizes = [16, 16, 4], strides = [1, 1, 1]} : vector<18x18x4xbf16> to vector<16x16x4xbf16>
      %53 = vector.shape_cast %52 : vector<16x16x4xbf16> to vector<256x4xbf16>
      %54 = vector.extract_strided_slice %47 {offsets = [1, 0, 0], sizes = [16, 16, 4], strides = [1, 1, 1]} : vector<18x18x4xbf16> to vector<16x16x4xbf16>
      %55 = vector.shape_cast %54 : vector<16x16x4xbf16> to vector<256x4xbf16>
      %56 = vector.extract_strided_slice %47 {offsets = [1, 1, 0], sizes = [16, 16, 4], strides = [1, 1, 1]} : vector<18x18x4xbf16> to vector<16x16x4xbf16>
      %57 = vector.shape_cast %56 : vector<16x16x4xbf16> to vector<256x4xbf16>
      %58 = vector.extract_strided_slice %47 {offsets = [1, 2, 0], sizes = [16, 16, 4], strides = [1, 1, 1]} : vector<18x18x4xbf16> to vector<16x16x4xbf16>
      %59 = vector.shape_cast %58 : vector<16x16x4xbf16> to vector<256x4xbf16>
      %60 = vector.extract_strided_slice %47 {offsets = [2, 0, 0], sizes = [16, 16, 4], strides = [1, 1, 1]} : vector<18x18x4xbf16> to vector<16x16x4xbf16>
      %61 = vector.shape_cast %60 : vector<16x16x4xbf16> to vector<256x4xbf16>
      %62 = vector.extract_strided_slice %47 {offsets = [2, 1, 0], sizes = [16, 16, 4], strides = [1, 1, 1]} : vector<18x18x4xbf16> to vector<16x16x4xbf16>
      %63 = vector.shape_cast %62 : vector<16x16x4xbf16> to vector<256x4xbf16>
      %64 = vector.extract_strided_slice %47 {offsets = [2, 2, 0], sizes = [16, 16, 4], strides = [1, 1, 1]} : vector<18x18x4xbf16> to vector<16x16x4xbf16>
      %65 = vector.shape_cast %64 : vector<16x16x4xbf16> to vector<256x4xbf16>
      %66 = tpu.concatenate %49, %51, %53, %55, %57, %59, %61, %63, %65 in 1 : vector<256x4xbf16>, vector<256x4xbf16>, vector<256x4xbf16>, vector<256x4xbf16>, vector<256x4xbf16>, vector<256x4xbf16>, vector<256x4xbf16>, vector<256x4xbf16>, vector<256x4xbf16> -> vector<256x36xbf16>
      %c0_36 = arith.constant 0 : index
      %c0_37 = arith.constant 0 : index
      %67 = vector.load %arg10[%c0_36, %c0_37] : memref<256x36xbf16, #tpu.memory_space<vmem>>, vector<256x36xbf16>
      tpu.vector_store %arg10[%c0_36, %c0_37], %66 {strides = array<i32>} : memref<256x36xbf16, #tpu.memory_space<vmem>>, vector<256x36xbf16>,
    } else {
    }
    %c0 = arith.constant 0 : index
    %c0_1 = arith.constant 0 : index
    %3 = vector.load %arg10[%c0, %c0_1] : memref<256x36xbf16, #tpu.memory_space<vmem>>, vector<256x36xbf16>
    %c0_2 = arith.constant 0 : index
    %c0_3 = arith.constant 0 : index
    %4 = vector.load %arg5[%c0_2, %c0_3] : memref<36x8xbf16, #tpu.memory_space<vmem>>, vector<36x8xbf16>
    %cst = arith.constant dense<0.000000e+00> : vector<256x8xf32>
    %5 = tpu.matmul %3, %4, %cst {dimension_numbers = #tpu.dot_dimension_numbers<[1], [0], [0], [1], [0, 0, 1, 1], [], []>} : vector<256x36xbf16>, vector<36x8xbf16>, vector<256x8xf32> -> vector<256x8xf32>
    %cst_4 = arith.constant 0.00444444455 : f32
    %6 = vector.broadcast %cst_4 : f32 to vector<256x8xf32>
    %7 = arith.mulf %5, %6 : vector<256x8xf32>
    %c0_5 = arith.constant 0 : index
    %c0_6 = arith.constant 0 : index
    %8 = vector.load %arg6[%c0_5, %c0_6] : memref<1x8xf32, #tpu.memory_space<vmem>>, vector<1x8xf32>
    %9 = vector.broadcast %8 : vector<1x8xf32> to vector<256x8xf32>
    %10 = arith.mulf %7, %9 : vector<256x8xf32>
    %c0_7 = arith.constant 0 : index
    %c0_8 = arith.constant 0 : index
    %11 = vector.load %arg7[%c0_7, %c0_8] : memref<1x8xf32, #tpu.memory_space<vmem>>, vector<1x8xf32>
    %12 = vector.broadcast %11 : vector<1x8xf32> to vector<256x8xf32>
    %13 = arith.addf %10, %12 : vector<256x8xf32>
    %cst_9 = arith.constant 0.000000e+00 : f32
    %cst_10 = arith.constant 1.000000e+00 : f32
    %14 = vector.broadcast %cst_9 : f32 to vector<256x8xf32>
    %15 = arith.maximumf %14, %13 : vector<256x8xf32>
    %16 = vector.broadcast %cst_10 : f32 to vector<256x8xf32>
    %17 = arith.minimumf %16, %15 : vector<256x8xf32>
    %cst_11 = arith.constant 1.500000e+01 : f32
    %18 = vector.broadcast %cst_11 : f32 to vector<256x8xf32>
    %19 = arith.mulf %17, %18 : vector<256x8xf32>
    %20 = math.roundeven %19 : vector<256x8xf32>
    %21 = vector.shape_cast %20 : vector<256x8xf32> to vector<16x16x8xf32>
    %22 = arith.truncf %21 : vector<16x16x8xf32> to vector<16x16x8xbf16>
    %c0_12 = arith.constant 0 : index
    %c0_13 = arith.constant 0 : index
    %c0_14 = arith.constant 0 : index
    %c0_15 = arith.constant 0 : index
    %23 = vector.load %arg8[%c0_12, %c0_13, %c0_14, %c0_15] : memref<1x16x16x8xbf16, #tpu.memory_space<vmem>>, vector<1x16x16x8xbf16>
    %24 = vector.shape_cast %23 : vector<1x16x16x8xbf16> to vector<16x16x8xbf16>
    %25 = vector.shape_cast %22 : vector<16x16x8xbf16> to vector<1x16x16x8xbf16>
    tpu.vector_store %arg8[%c0_12, %c0_13, %c0_14, %c0_15], %25 {strides = array<i32>} : memref<1x16x16x8xbf16, #tpu.memory_space<vmem>>, vector<1x16x16x8xbf16>,
    return
  }
  func.func @transform_0(%arg0: i32, %arg1: i32) -> (i32, i32, i32, i32) {
    %c0_i32 = arith.constant 0 : i32
    %c0_i32_0 = arith.constant 0 : i32
    %c0_i32_1 = arith.constant 0 : i32
    %c0_i32_2 = arith.constant 0 : i32
    return %arg0, %c0_i32, %c0_i32_0, %c0_i32_1 : i32, i32, i32, i32
  }
  func.func @transform_1(%arg0: i32, %arg1: i32) -> (i32, i32) {
    %c0_i32 = arith.constant 0 : i32
    %c0_i32_0 = arith.constant 0 : i32
    %c0_i32_1 = arith.constant 0 : i32
    return %c0_i32, %c0_i32_0 : i32, i32
  }
  func.func @transform_2(%arg0: i32, %arg1: i32) -> (i32, i32) {
    %c0_i32 = arith.constant 0 : i32
    %c0_i32_0 = arith.constant 0 : i32
    %c0_i32_1 = arith.constant 0 : i32
    return %c0_i32, %c0_i32_0 : i32, i32
  }
  func.func @transform_3(%arg0: i32, %arg1: i32) -> (i32, i32) {
    %c0_i32 = arith.constant 0 : i32
    %c0_i32_0 = arith.constant 0 : i32
    return %c0_i32, %arg1 : i32, i32
  }
  func.func @transform_4(%arg0: i32, %arg1: i32) -> (i32, i32) {
    %c0_i32 = arith.constant 0 : i32
    %c0_i32_0 = arith.constant 0 : i32
    return %c0_i32, %arg1 : i32, i32
  }
  func.func @transform_5(%arg0: i32, %arg1: i32) -> (i32, i32) {
    %c0_i32 = arith.constant 0 : i32
    %c0_i32_0 = arith.constant 0 : i32
    return %c0_i32, %arg1 : i32, i32
  }
  func.func @transform_6(%arg0: i32, %arg1: i32) -> (i32, i32, i32, i32) {
    %c0_i32 = arith.constant 0 : i32
    %c0_i32_0 = arith.constant 0 : i32
    %c0_i32_1 = arith.constant 0 : i32
    return %arg0, %c0_i32, %c0_i32_0, %arg1 : i32, i32, i32, i32
  }
}

module attributes {stable_mosaic.version = 11 : i64} {
  func.func @conv2_residual_kernel(%arg0: i32, %arg1: i32, %arg2: memref<1x16x16x8xbf16, #tpu.memory_space<vmem>>, %arg3: memref<72x8xbf16, #tpu.memory_space<vmem>>, %arg4: memref<1x16x16x4xf32, #tpu.memory_space<vmem>>, %arg5: memref<1x4xf32, #tpu.memory_space<vmem>>, %arg6: memref<1x4xf32, #tpu.memory_space<vmem>>, %arg7: memref<4x8xf32, #tpu.memory_space<vmem>>, %arg8: memref<1x16x16x8xf32, #tpu.memory_space<vmem>>, %arg9: memref<18x18x8xbf16, #tpu.memory_space<vmem>>, %arg10: memref<256x72xbf16, #tpu.memory_space<vmem>>, %arg11: memref<256x4xf32, #tpu.memory_space<vmem>>) attributes {dimension_semantics = [#tpu.dimension_semantics<parallel>, #tpu.dimension_semantics<arbitrary>], iteration_bounds = array<i64: 2, 1>, scalar_prefetch = 0 : i64, scratch_operands = 3 : i64, tpu.core_type = #tpu.core_type<tc>, window_params = [{transform_indices = @transform_0, window_bounds = array<i64: 1, 16, 16, 8>}, {transform_indices = @transform_1, window_bounds = array<i64: 72, 8>}, {transform_indices = @transform_2, window_bounds = array<i64: 1, 16, 16, 4>}, {pipeline_mode = #tpu.pipeline_mode<synchronous>, transform_indices = @transform_3, window_bounds = array<i64: 1, 4>}, {pipeline_mode = #tpu.pipeline_mode<synchronous>, transform_indices = @transform_4, window_bounds = array<i64: 1, 4>}, {transform_indices = @transform_5, window_bounds = array<i64: 4, 8>}, {transform_indices = @transform_6, window_bounds = array<i64: 1, 16, 16, 8>}]} {
    %c0_i32 = arith.constant 0 : i32
    %0 = arith.cmpi eq, %arg1, %c0_i32 : i32
    %1 = arith.extui %0 : i1 to i32
    %c0_i32_0 = arith.constant 0 : i32
    %2 = arith.cmpi ne, %1, %c0_i32_0 : i32
    scf.if %2 {
      %cst_14 = arith.constant 0.000000e+00 : bf16
      %16 = vector.broadcast %cst_14 : bf16 to vector<18x18x8xbf16>
      %c0_15 = arith.constant 0 : index
      %c0_16 = arith.constant 0 : index
      %c0_17 = arith.constant 0 : index
      %17 = vector.load %arg9[%c0_15, %c0_16, %c0_17] : memref<18x18x8xbf16, #tpu.memory_space<vmem>>, vector<18x18x8xbf16>
      tpu.vector_store %arg9[%c0_15, %c0_16, %c0_17], %16 {strides = array<i32>} : memref<18x18x8xbf16, #tpu.memory_space<vmem>>, vector<18x18x8xbf16>,
      %c0_18 = arith.constant 0 : index
      %c0_19 = arith.constant 0 : index
      %c0_20 = arith.constant 0 : index
      %c0_21 = arith.constant 0 : index
      %18 = vector.load %arg2[%c0_18, %c0_19, %c0_20, %c0_21] : memref<1x16x16x8xbf16, #tpu.memory_space<vmem>>, vector<1x16x16x8xbf16>
      %19 = vector.shape_cast %18 : vector<1x16x16x8xbf16> to vector<16x16x8xbf16>
      %c1 = arith.constant 1 : index
      %c1_22 = arith.constant 1 : index
      %c0_23 = arith.constant 0 : index
      %20 = vector.load %arg9[%c1, %c1_22, %c0_23] : memref<18x18x8xbf16, #tpu.memory_space<vmem>>, vector<16x16x8xbf16>
      tpu.vector_store %arg9[%c1, %c1_22, %c0_23], %19 {strides = array<i32>} : memref<18x18x8xbf16, #tpu.memory_space<vmem>>, vector<16x16x8xbf16>,
      %c0_24 = arith.constant 0 : index
      %c0_25 = arith.constant 0 : index
      %c0_26 = arith.constant 0 : index
      %21 = vector.load %arg9[%c0_24, %c0_25, %c0_26] : memref<18x18x8xbf16, #tpu.memory_space<vmem>>, vector<18x18x8xbf16>
      %22 = vector.extract_strided_slice %21 {offsets = [0, 0, 0], sizes = [16, 16, 8], strides = [1, 1, 1]} : vector<18x18x8xbf16> to vector<16x16x8xbf16>
      %23 = vector.shape_cast %22 : vector<16x16x8xbf16> to vector<256x8xbf16>
      %24 = vector.extract_strided_slice %21 {offsets = [0, 1, 0], sizes = [16, 16, 8], strides = [1, 1, 1]} : vector<18x18x8xbf16> to vector<16x16x8xbf16>
      %25 = vector.shape_cast %24 : vector<16x16x8xbf16> to vector<256x8xbf16>
      %26 = vector.extract_strided_slice %21 {offsets = [0, 2, 0], sizes = [16, 16, 8], strides = [1, 1, 1]} : vector<18x18x8xbf16> to vector<16x16x8xbf16>
      %27 = vector.shape_cast %26 : vector<16x16x8xbf16> to vector<256x8xbf16>
      %28 = vector.extract_strided_slice %21 {offsets = [1, 0, 0], sizes = [16, 16, 8], strides = [1, 1, 1]} : vector<18x18x8xbf16> to vector<16x16x8xbf16>
      %29 = vector.shape_cast %28 : vector<16x16x8xbf16> to vector<256x8xbf16>
      %30 = vector.extract_strided_slice %21 {offsets = [1, 1, 0], sizes = [16, 16, 8], strides = [1, 1, 1]} : vector<18x18x8xbf16> to vector<16x16x8xbf16>
      %31 = vector.shape_cast %30 : vector<16x16x8xbf16> to vector<256x8xbf16>
      %32 = vector.extract_strided_slice %21 {offsets = [1, 2, 0], sizes = [16, 16, 8], strides = [1, 1, 1]} : vector<18x18x8xbf16> to vector<16x16x8xbf16>
      %33 = vector.shape_cast %32 : vector<16x16x8xbf16> to vector<256x8xbf16>
      %34 = vector.extract_strided_slice %21 {offsets = [2, 0, 0], sizes = [16, 16, 8], strides = [1, 1, 1]} : vector<18x18x8xbf16> to vector<16x16x8xbf16>
      %35 = vector.shape_cast %34 : vector<16x16x8xbf16> to vector<256x8xbf16>
      %36 = vector.extract_strided_slice %21 {offsets = [2, 1, 0], sizes = [16, 16, 8], strides = [1, 1, 1]} : vector<18x18x8xbf16> to vector<16x16x8xbf16>
      %37 = vector.shape_cast %36 : vector<16x16x8xbf16> to vector<256x8xbf16>
      %38 = vector.extract_strided_slice %21 {offsets = [2, 2, 0], sizes = [16, 16, 8], strides = [1, 1, 1]} : vector<18x18x8xbf16> to vector<16x16x8xbf16>
      %39 = vector.shape_cast %38 : vector<16x16x8xbf16> to vector<256x8xbf16>
      %40 = tpu.concatenate %23, %25, %27, %29, %31, %33, %35, %37, %39 in 1 : vector<256x8xbf16>, vector<256x8xbf16>, vector<256x8xbf16>, vector<256x8xbf16>, vector<256x8xbf16>, vector<256x8xbf16>, vector<256x8xbf16>, vector<256x8xbf16>, vector<256x8xbf16> -> vector<256x72xbf16>
      %c0_27 = arith.constant 0 : index
      %c0_28 = arith.constant 0 : index
      %41 = vector.load %arg10[%c0_27, %c0_28] : memref<256x72xbf16, #tpu.memory_space<vmem>>, vector<256x72xbf16>
      tpu.vector_store %arg10[%c0_27, %c0_28], %40 {strides = array<i32>} : memref<256x72xbf16, #tpu.memory_space<vmem>>, vector<256x72xbf16>,
      %c0_29 = arith.constant 0 : index
      %c0_30 = arith.constant 0 : index
      %42 = vector.load %arg5[%c0_29, %c0_30] : memref<1x4xf32, #tpu.memory_space<vmem>>, vector<1x4xf32>
      %43 = vector.shape_cast %42 : vector<1x4xf32> to vector<1x1x4xf32>
      %c0_31 = arith.constant 0 : index
      %c0_32 = arith.constant 0 : index
      %44 = vector.load %arg6[%c0_31, %c0_32] : memref<1x4xf32, #tpu.memory_space<vmem>>, vector<1x4xf32>
      %45 = vector.shape_cast %44 : vector<1x4xf32> to vector<1x1x4xf32>
      %c0_33 = arith.constant 0 : index
      %c0_34 = arith.constant 0 : index
      %c0_35 = arith.constant 0 : index
      %c0_36 = arith.constant 0 : index
      %46 = vector.load %arg4[%c0_33, %c0_34, %c0_35, %c0_36] : memref<1x16x16x4xf32, #tpu.memory_space<vmem>>, vector<1x16x16x4xf32>
      %47 = vector.shape_cast %46 : vector<1x16x16x4xf32> to vector<16x16x4xf32>
      %48 = vector.broadcast %43 : vector<1x1x4xf32> to vector<16x16x4xf32>
      %49 = arith.mulf %47, %48 : vector<16x16x4xf32>
      %50 = vector.broadcast %45 : vector<1x1x4xf32> to vector<16x16x4xf32>
      %51 = arith.addf %49, %50 : vector<16x16x4xf32>
      %cst_37 = arith.constant 0.000000e+00 : f32
      %cst_38 = arith.constant 1.000000e+00 : f32
      %52 = vector.broadcast %cst_37 : f32 to vector<16x16x4xf32>
      %53 = arith.maximumf %52, %51 : vector<16x16x4xf32>
      %54 = vector.broadcast %cst_38 : f32 to vector<16x16x4xf32>
      %55 = arith.minimumf %54, %53 : vector<16x16x4xf32>
      %cst_39 = arith.constant 1.500000e+01 : f32
      %56 = vector.broadcast %cst_39 : f32 to vector<16x16x4xf32>
      %57 = arith.mulf %55, %56 : vector<16x16x4xf32>
      %58 = math.roundeven %57 : vector<16x16x4xf32>
      %59 = vector.shape_cast %58 : vector<16x16x4xf32> to vector<256x4xf32>
      %c0_40 = arith.constant 0 : index
      %c0_41 = arith.constant 0 : index
      %60 = vector.load %arg11[%c0_40, %c0_41] : memref<256x4xf32, #tpu.memory_space<vmem>>, vector<256x4xf32>
      tpu.vector_store %arg11[%c0_40, %c0_41], %59 {strides = array<i32>} : memref<256x4xf32, #tpu.memory_space<vmem>>, vector<256x4xf32>,
    } else {
    }
    %c0 = arith.constant 0 : index
    %c0_1 = arith.constant 0 : index
    %3 = vector.load %arg10[%c0, %c0_1] : memref<256x72xbf16, #tpu.memory_space<vmem>>, vector<256x72xbf16>
    %c0_2 = arith.constant 0 : index
    %c0_3 = arith.constant 0 : index
    %4 = vector.load %arg3[%c0_2, %c0_3] : memref<72x8xbf16, #tpu.memory_space<vmem>>, vector<72x8xbf16>
    %cst = arith.constant dense<0.000000e+00> : vector<256x8xf32>
    %5 = tpu.matmul %3, %4, %cst {dimension_numbers = #tpu.dot_dimension_numbers<[1], [0], [0], [1], [0, 0, 1, 1], [], []>} : vector<256x72xbf16>, vector<72x8xbf16>, vector<256x8xf32> -> vector<256x8xf32>
    %cst_4 = arith.constant 0.00444444455 : f32
    %6 = vector.broadcast %cst_4 : f32 to vector<256x8xf32>
    %7 = arith.mulf %5, %6 : vector<256x8xf32>
    %c0_5 = arith.constant 0 : index
    %c0_6 = arith.constant 0 : index
    %8 = vector.load %arg11[%c0_5, %c0_6] : memref<256x4xf32, #tpu.memory_space<vmem>>, vector<256x4xf32>
    %c0_7 = arith.constant 0 : index
    %c0_8 = arith.constant 0 : index
    %9 = vector.load %arg7[%c0_7, %c0_8] : memref<4x8xf32, #tpu.memory_space<vmem>>, vector<4x8xf32>
    %cst_9 = arith.constant dense<0.000000e+00> : vector<256x8xf32>
    %10 = tpu.matmul %8, %9, %cst_9 {dimension_numbers = #tpu.dot_dimension_numbers<[1], [0], [0], [1], [0, 0, 1, 1], [], []>} : vector<256x4xf32>, vector<4x8xf32>, vector<256x8xf32> -> vector<256x8xf32>
    %11 = arith.addf %7, %10 : vector<256x8xf32>
    %12 = vector.shape_cast %11 : vector<256x8xf32> to vector<16x16x8xf32>
    %c0_10 = arith.constant 0 : index
    %c0_11 = arith.constant 0 : index
    %c0_12 = arith.constant 0 : index
    %c0_13 = arith.constant 0 : index
    %13 = vector.load %arg8[%c0_10, %c0_11, %c0_12, %c0_13] : memref<1x16x16x8xf32, #tpu.memory_space<vmem>>, vector<1x16x16x8xf32>
    %14 = vector.shape_cast %13 : vector<1x16x16x8xf32> to vector<16x16x8xf32>
    %15 = vector.shape_cast %12 : vector<16x16x8xf32> to vector<1x16x16x8xf32>
    tpu.vector_store %arg8[%c0_10, %c0_11, %c0_12, %c0_13], %15 {strides = array<i32>} : memref<1x16x16x8xf32, #tpu.memory_space<vmem>>, vector<1x16x16x8xf32>,
    return
  }
  func.func @transform_0(%arg0: i32, %arg1: i32) -> (i32, i32, i32, i32) {
    %c0_i32 = arith.constant 0 : i32
    %c0_i32_0 = arith.constant 0 : i32
    %c0_i32_1 = arith.constant 0 : i32
    %c0_i32_2 = arith.constant 0 : i32
    return %arg0, %c0_i32, %c0_i32_0, %c0_i32_1 : i32, i32, i32, i32
  }
  func.func @transform_1(%arg0: i32, %arg1: i32) -> (i32, i32) {
    %c0_i32 = arith.constant 0 : i32
    %c0_i32_0 = arith.constant 0 : i32
    return %c0_i32, %arg1 : i32, i32
  }
  func.func @transform_2(%arg0: i32, %arg1: i32) -> (i32, i32, i32, i32) {
    %c0_i32 = arith.constant 0 : i32
    %c0_i32_0 = arith.constant 0 : i32
    %c0_i32_1 = arith.constant 0 : i32
    %c0_i32_2 = arith.constant 0 : i32
    return %arg0, %c0_i32, %c0_i32_0, %c0_i32_1 : i32, i32, i32, i32
  }
  func.func @transform_3(%arg0: i32, %arg1: i32) -> (i32, i32) {
    %c0_i32 = arith.constant 0 : i32
    %c0_i32_0 = arith.constant 0 : i32
    %c0_i32_1 = arith.constant 0 : i32
    return %c0_i32, %c0_i32_0 : i32, i32
  }
  func.func @transform_4(%arg0: i32, %arg1: i32) -> (i32, i32) {
    %c0_i32 = arith.constant 0 : i32
    %c0_i32_0 = arith.constant 0 : i32
    %c0_i32_1 = arith.constant 0 : i32
    return %c0_i32, %c0_i32_0 : i32, i32
  }
  func.func @transform_5(%arg0: i32, %arg1: i32) -> (i32, i32) {
    %c0_i32 = arith.constant 0 : i32
    %c0_i32_0 = arith.constant 0 : i32
    return %c0_i32, %arg1 : i32, i32
  }
  func.func @transform_6(%arg0: i32, %arg1: i32) -> (i32, i32, i32, i32) {
    %c0_i32 = arith.constant 0 : i32
    %c0_i32_0 = arith.constant 0 : i32
    %c0_i32_1 = arith.constant 0 : i32
    return %arg0, %c0_i32, %c0_i32_0, %arg1 : i32, i32, i32, i32
  }
}

</mosaic_0001>

<llo_original>
// kernel: wide_basic_block_q_forward.2
$region0: #{wide_basic_block_q_forward.2}
  #allocation0 [shape = 'u32[]', space=smem, size = 0x4, offset = 0x4, fixed_abs, tag = 'smem constant byte address 0x4 - core index']
  #allocation1 [shape = 'u32[144,128]{1,0:T(1,128)}', space=vmem, size = 0x12000, scoped, tag = 'internal scratch']
  #allocation2 [shape = 'bf16[18,18,4]{2,1,0:T(8,128)(2,1)}', space=vmem, size = 0x1b000, scoped, tag = 'scratch operand']
  #allocation3 [shape = 'bf16[256,36]{1,0:T(8,128)(2,1)}', space=vmem, size = 0x10000, scoped, tag = 'scratch operand']
  %s0 = inlined_call_operand.vmem [shape: f32[2,16,16,4], index: 0, kind: input, shape index: {}]
  %s1 = inlined_call_operand.vmem [shape: f32[1,4], index: 1, kind: input, shape index: {}]
  %s2 = inlined_call_operand.vmem [shape: f32[1,4], index: 2, kind: input, shape index: {}]
  %s3 = inlined_call_operand.vmem [shape: bf16[36,8], index: 3, kind: input, shape index: {}]
  %s4 = inlined_call_operand.vmem [shape: f32[1,8], index: 4, kind: input, shape index: {}]
  %s5 = inlined_call_operand.vmem [shape: f32[1,8], index: 5, kind: input, shape index: {}]
  %s6 = inlined_call_operand.vmem [shape: bf16[2,16,16,8], index: 6, kind: output, shape index: {}]
  %s7 = sld [smem:[#allocation0]]
  $region61: #{wide_basic_block_q_forward.2} parent=0
    _
  %s9 = ssub.s32 1, %s7
  %s10 = scalar_select 0, %s9, %s7
  loop: start=0, step=1, limit=4
  $region2: #{wide_basic_block_q_forward.2} parent=0 // loop_pre_header
    _
  $region3: #{wide_basic_block_q_forward.2} parent=0 // loop_header
    %s12 = sphi 0, %s16
    %p13 = scmp.ge.s32.totalorder %s12, 4
    %s19 = sphi 0, %s31
    %s20 = sphi 0, %s27
    %s21 = sphi 0, %s19
    %s22 = sphi 0, %s20
    %s23 = sphi 0, %s21
    %s24 = sphi 0, %s22
    %s34 = sphi 0, %s36
    %s37 = sphi 0, %s34
    %s38 = sphi 0, %s37
    %s54 = sphi 0, %s38
    %s58 = sphi 0, %s58
    %s60 = sphi 0, %s58
    %s61 = sphi 0, %s60
    %s75 = sphi 0, %s61
    %s79 = sphi 0, %s79
    %s81 = sphi 0, %s79
    %s82 = sphi 0, %s81
    %s96 = sphi 0, %s82
    %s102 = sphi 0, %s104
    %s105 = sphi 0, %s102
    %s106 = sphi 0, %s105
    %s122 = sphi 0, %s106
    %s128 = sphi 0, %s130
    %s131 = sphi 0, %s128
    %s132 = sphi 0, %s131
    %s148 = sphi 0, %s132
    %s154 = sphi 0, %s156
    %s157 = sphi 0, %s154
    %s158 = sphi 0, %s157
    %s174 = sphi 0, %s158
    %s182 = sphi 0, %s184
    %s185 = sphi 0, %s182
    %s186 = sphi 0, %s185
    %s202 = sphi 0, %s186
  $region4: #{wide_basic_block_q_forward.2} parent=0 // loop_header_branch
    %15 = sbr.rel (%p13) target = $region8
  $region5: #{wide_basic_block_q_forward.2} parent=0 // loop_body
    %s17 = ssub.s32 %s12, 1
    %s18 = ssub.s32 %s12, 2
    %s25 = sadd.s32 1, %s20
    %p26 = scmp.ge.s32.totalorder %s25, 1
    %s27 = scalar_select %p26, 0, %s25
    %s28 = sadd.s32 1, %s19
    %s29 = scalar_select %p26, %s28, %s19
    %p30 = scmp.ge.s32.totalorder %s29, 2
    %s31 = scalar_select %p30, 0, %s29
    %s32 = ssub.s32 %s19, %s31
    %p33 = scmp.eq.s32.totalorder %s32, 0
    %s35 = sadd.s32 %s34, 1
    %s36 = scalar_select %p33, %s34, %s35
    %p39 = pneg %p33
    %p40 = scmp.eq.s32.totalorder %s12, 1
    %p41 = por %p39, %p40
    %p42 = scmp.ne.s32.totalorder %s34, %s37
    %p43 = scmp.eq.s32.totalorder %s12, 0
    %p44 = por %p42, %p43
    %p45 = scmp.ne.s32.totalorder %s34, %s37
    %p46 = scmp.eq.s32.totalorder %s17, 1
    %p47 = por %p45, %p46
    %p48 = scmp.ne.s32.totalorder %s37, %s38
    %p49 = scmp.eq.s32.totalorder %s17, 0
    %p50 = por %p48, %p49
    %p51 = scmp.ne.s32.totalorder %s37, %s38
    %p52 = scmp.eq.s32.totalorder %s18, 1
    %p53 = por %p51, %p52
    %p55 = scmp.ne.s32.totalorder %s38, %s54
    %p56 = scmp.eq.s32.totalorder %s18, 0
    %p57 = por %p55, %p56
    %s59 = sadd.s32 %s58, 1
    %p62 = scmp.eq.s32.totalorder %s12, 1
    %p63 = scmp.ne.s32.totalorder %s58, %s60
    %p64 = scmp.eq.s32.totalorder %s12, 0
    %p65 = por %p63, %p64
    %p66 = scmp.ne.s32.totalorder %s58, %s60
    %p67 = scmp.eq.s32.totalorder %s17, 1
    %p68 = por %p66, %p67
    %p69 = scmp.ne.s32.totalorder %s60, %s61
    %p70 = scmp.eq.s32.totalorder %s17, 0
    %p71 = por %p69, %p70
    %p72 = scmp.ne.s32.totalorder %s60, %s61
    %p73 = scmp.eq.s32.totalorder %s18, 1
    %p74 = por %p72, %p73
    %p76 = scmp.ne.s32.totalorder %s61, %s75
    %p77 = scmp.eq.s32.totalorder %s18, 0
    %p78 = por %p76, %p77
    %s80 = sadd.s32 %s79, 1
    %p83 = scmp.eq.s32.totalorder %s12, 1
    %p84 = scmp.ne.s32.totalorder %s79, %s81
    %p85 = scmp.eq.s32.totalorder %s12, 0
    %p86 = por %p84, %p85
    %p87 = scmp.ne.s32.totalorder %s79, %s81
    %p88 = scmp.eq.s32.totalorder %s17, 1
    %p89 = por %p87, %p88
    %p90 = scmp.ne.s32.totalorder %s81, %s82
    %p91 = scmp.eq.s32.totalorder %s17, 0
    %p92 = por %p90, %p91
    %p93 = scmp.ne.s32.totalorder %s81, %s82
    %p94 = scmp.eq.s32.totalorder %s18, 1
    %p95 = por %p93, %p94
    %p97 = scmp.ne.s32.totalorder %s82, %s96
    %p98 = scmp.eq.s32.totalorder %s18, 0
    %p99 = por %p97, %p98
    %s100 = ssub.s32 %s20, %s27
    %p101 = scmp.eq.s32.totalorder %s100, 0
    %s103 = sadd.s32 %s102, 1
    %s104 = scalar_select %p101, %s102, %s103
    %p107 = pneg %p101
    %p108 = scmp.eq.s32.totalorder %s12, 1
    %p109 = por %p107, %p108
    %p110 = scmp.ne.s32.totalorder %s102, %s105
    %p111 = scmp.eq.s32.totalorder %s12, 0
    %p112 = por %p110, %p111
    %p113 = scmp.ne.s32.totalorder %s102, %s105
    %p114 = scmp.eq.s32.totalorder %s17, 1
    %p115 = por %p113, %p114
    %p116 = scmp.ne.s32.totalorder %s105, %s106
    %p117 = scmp.eq.s32.totalorder %s17, 0
    %p118 = por %p116, %p117
    %p119 = scmp.ne.s32.totalorder %s105, %s106
    %p120 = scmp.eq.s32.totalorder %s18, 1
    %p121 = por %p119, %p120
    %p123 = scmp.ne.s32.totalorder %s106, %s122
    %p124 = scmp.eq.s32.totalorder %s18, 0
    %p125 = por %p123, %p124
    %s126 = ssub.s32 %s20, %s27
    %p127 = scmp.eq.s32.totalorder %s126, 0
    %s129 = sadd.s32 %s128, 1
    %s130 = scalar_select %p127, %s128, %s129
    %p133 = pneg %p127
    %p134 = scmp.eq.s32.totalorder %s12, 1
    %p135 = por %p133, %p134
    %p136 = scmp.ne.s32.totalorder %s128, %s131
    %p137 = scmp.eq.s32.totalorder %s12, 0
    %p138 = por %p136, %p137
    %p139 = scmp.ne.s32.totalorder %s128, %s131
    %p140 = scmp.eq.s32.totalorder %s17, 1
    %p141 = por %p139, %p140
    %p142 = scmp.ne.s32.totalorder %s131, %s132
    %p143 = scmp.eq.s32.totalorder %s17, 0
    %p144 = por %p142, %p143
    %p145 = scmp.ne.s32.totalorder %s131, %s132
    %p146 = scmp.eq.s32.totalorder %s18, 1
    %p147 = por %p145, %p146
    %p149 = scmp.ne.s32.totalorder %s132, %s148
    %p150 = scmp.eq.s32.totalorder %s18, 0
    %p151 = por %p149, %p150
    %s152 = ssub.s32 %s20, %s27
    %p153 = scmp.eq.s32.totalorder %s152, 0
    %s155 = sadd.s32 %s154, 1
    %s156 = scalar_select %p153, %s154, %s155
    %p159 = pneg %p153
    %p160 = scmp.eq.s32.totalorder %s12, 1
    %p161 = por %p159, %p160
    %p162 = scmp.ne.s32.totalorder %s154, %s157
    %p163 = scmp.eq.s32.totalorder %s12, 0
    %p164 = por %p162, %p163
    %p165 = scmp.ne.s32.totalorder %s154, %s157
    %p166 = scmp.eq.s32.totalorder %s17, 1
    %p167 = por %p165, %p166
    %p168 = scmp.ne.s32.totalorder %s157, %s158
    %p169 = scmp.eq.s32.totalorder %s17, 0
    %p170 = por %p168, %p169
    %p171 = scmp.ne.s32.totalorder %s157, %s158
    %p172 = scmp.eq.s32.totalorder %s18, 1
    %p173 = por %p171, %p172
    %p175 = scmp.ne.s32.totalorder %s158, %s174
    %p176 = scmp.eq.s32.totalorder %s18, 0
    %p177 = por %p175, %p176
    %s178 = ssub.s32 %s19, %s31
    %s179 = ssub.s32 %s20, %s27
    %s180 = sor.u32 %s178, %s179
    %p181 = scmp.eq.s32.totalorder %s180, 0
    %s183 = sadd.s32 %s182, 1
    %s184 = scalar_select %p181, %s182, %s183
    %p187 = pneg %p181
    %p188 = scmp.eq.s32.totalorder %s12, 1
    %p189 = por %p187, %p188
    %p190 = scmp.ne.s32.totalorder %s182, %s185
    %p191 = scmp.eq.s32.totalorder %s12, 0
    %p192 = por %p190, %p191
    %p193 = scmp.ne.s32.totalorder %s182, %s185
    %p194 = scmp.eq.s32.totalorder %s17, 1
    %p195 = por %p193, %p194
    %p196 = scmp.ne.s32.totalorder %s185, %s186
    %p197 = scmp.eq.s32.totalorder %s17, 0
    %p198 = por %p196, %p197
    %p199 = scmp.ne.s32.totalorder %s185, %s186
    %p200 = scmp.eq.s32.totalorder %s18, 1
    %p201 = por %p199, %p200
    %p203 = scmp.ne.s32.totalorder %s186, %s202
    %p204 = scmp.eq.s32.totalorder %s18, 0
    %p205 = por %p203, %p204
    %p206 = scmp.le.s32.totalorder 1, %s12
    %p207 = scmp.lt.s32.totalorder %s12, 3
    %p208 = pnand %p206, %p207
    %p209 = pneg %p208
    // Predicated region
    $region9: #{wide_basic_block_q_forward.2} parent=5 // pred_check
      _
    $region10: #{wide_basic_block_q_forward.2} parent=5 // pred_check_branch
      %211 = sbr.rel (%p208) target = $region12
    $region11: #{wide_basic_block_q_forward.2} parent=5 // pred_region
      %s212 = ssub.s32 %s12, 1
      // Predicated region
      $region13: #{wide_basic_block_q_forward.2} parent=11 // pred_check
        %p213 = pneg %p71
      $region14: #{wide_basic_block_q_forward.2} parent=11 // pred_check_branch
        %215 = sbr.rel (%p213) target = $region16
      $region15: #{wide_basic_block_q_forward.2} parent=11 // pred_region
        _
      $region16: #{wide_basic_block_q_forward.2} parent=11 // pred_fallthru
        _
      // Predicated region
      $region17: #{wide_basic_block_q_forward.2} parent=11 // pred_check
        %p216 = pneg %p92
      $region18: #{wide_basic_block_q_forward.2} parent=11 // pred_check_branch
        %218 = sbr.rel (%p216) target = $region20
      $region19: #{wide_basic_block_q_forward.2} parent=11 // pred_region
        _
      $region20: #{wide_basic_block_q_forward.2} parent=11 // pred_fallthru
        _
      // Predicated region
      $region21: #{wide_basic_block_q_forward.2} parent=11 // pred_check
        %p219 = pneg %p118
      $region22: #{wide_basic_block_q_forward.2} parent=11 // pred_check_branch
        %221 = sbr.rel (%p219) target = $region24
      $region23: #{wide_basic_block_q_forward.2} parent=11 // pred_region
        %p222 = scmp.lt.s32.totalorder %s22, 0
        %s223 = scalar_select %p222, %s22, 0
        %s224 = smul.addr %s223, 4
        %s225 = scalar_lea.vmem %s3, %s224
      $region24: #{wide_basic_block_q_forward.2} parent=11 // pred_fallthru
        _
      // Predicated region
      $region25: #{wide_basic_block_q_forward.2} parent=11 // pred_check
        %p226 = pneg %p144
      $region26: #{wide_basic_block_q_forward.2} parent=11 // pred_check_branch
        %228 = sbr.rel (%p226) target = $region28
      $region27: #{wide_basic_block_q_forward.2} parent=11 // pred_region
        %p229 = scmp.lt.s32.totalorder %s22, 0
        %s230 = scalar_select %p229, %s22, 0
        %s231 = scalar_lea.vmem %s4, %s230
      $region28: #{wide_basic_block_q_forward.2} parent=11 // pred_fallthru
        _
      // Predicated region
      $region29: #{wide_basic_block_q_forward.2} parent=11 // pred_check
        %p232 = pneg %p170
      $region30: #{wide_basic_block_q_forward.2} parent=11 // pred_check_branch
        %234 = sbr.rel (%p232) target = $region32
      $region31: #{wide_basic_block_q_forward.2} parent=11 // pred_region
        %p235 = scmp.lt.s32.totalorder %s22, 0
        %s236 = scalar_select %p235, %s22, 0
        %s237 = scalar_lea.vmem %s5, %s236
      $region32: #{wide_basic_block_q_forward.2} parent=11 // pred_fallthru
        _
    $region12: #{wide_basic_block_q_forward.2} parent=5 // pred_fallthru
      _
    %p238 = scmp.lt.s32.totalorder %s12, 2
    // Predicated region
    $region33: #{wide_basic_block_q_forward.2} parent=5 // pred_check
      %p239 = pneg %p238
    $region34: #{wide_basic_block_q_forward.2} parent=5 // pred_check_branch
      %241 = sbr.rel (%p239) target = $region36
    $region35: #{wide_basic_block_q_forward.2} parent=5 // pred_region
      // Predicated region
      $region37: #{wide_basic_block_q_forward.2} parent=35 // pred_check
        %p242 = pneg %p44
      $region38: #{wide_basic_block_q_forward.2} parent=35 // pred_check_branch
        %244 = sbr.rel (%p242) target = $region40
      $region39: #{wide_basic_block_q_forward.2} parent=35 // pred_region
        %p245 = scmp.lt.s32.totalorder %s19, 1
        %s246 = scalar_select %p245, %s19, 1
        %s247 = smul.addr %s246, 32
        %s248 = smul.addr %s247, 8
        %s249 = scalar_lea.vmem %s0, %s248
      $region40: #{wide_basic_block_q_forward.2} parent=35 // pred_fallthru
        _
    $region36: #{wide_basic_block_q_forward.2} parent=5 // pred_fallthru
      _
    %p250 = scmp.le.s32.totalorder 1, %s12
    %p251 = scmp.lt.s32.totalorder %s12, 3
    %p252 = pnand %p250, %p251
    %p253 = pneg %p252
    // Predicated region
    $region41: #{wide_basic_block_q_forward.2} parent=5 // pred_check
      _
    $region42: #{wide_basic_block_q_forward.2} parent=5 // pred_check_branch
      %255 = sbr.rel (%p252) target = $region44
    $region43: #{wide_basic_block_q_forward.2} parent=5 // pred_region
      %s256 = ssub.s32 %s12, 1
      %p257 = scmp.lt.s32.totalorder %s21, 1
      %s258 = scalar_select %p257, %s21, 1
      %s259 = smul.addr %s258, 32
      %s260 = smul.addr %s259, 8
      %s261 = scalar_lea.vmem %s0, %s260
      %p262 = pneg %p50
      %p263 = pneg %p47
      %p264 = pneg %p71
      %p265 = pneg %p68
      %p266 = pneg %p92
      %p267 = pneg %p89
      %p268 = scmp.lt.s32.totalorder %s22, 0
      %s269 = scalar_select %p268, %s22, 0
      %s270 = smul.addr %s269, 4
      %s271 = scalar_lea.vmem %s3, %s270
      %p272 = pneg %p118
      %p273 = pneg %p115
      %p274 = scmp.lt.s32.totalorder %s22, 0
      %s275 = scalar_select %p274, %s22, 0
      %s276 = scalar_lea.vmem %s4, %s275
      %p277 = pneg %p144
      %p278 = pneg %p141
      %p279 = scmp.lt.s32.totalorder %s22, 0
      %s280 = scalar_select %p279, %s22, 0
      %s281 = scalar_lea.vmem %s5, %s280
      %p282 = pneg %p170
      %p283 = pneg %p167
      %p284 = pneg %p198
      %p285 = pneg %p195
      %p286 = scmp.lt.s32.totalorder %s21, 1
      %s287 = scalar_select %p286, %s21, 1
      %p288 = scmp.lt.s32.totalorder %s22, 0
      %s289 = scalar_select %p288, %s22, 0
      %s290 = smul.addr %s287, 32
      %s291 = sadd.s32 %s289, %s290
      %s292 = smul.addr %s291, 4
      %s293 = scalar_lea.vmem %s6, %s292
      %p294 = scmp.lt.s32.totalorder %s21, 1
      %s295 = scalar_select %p294, %s21, 1
      %s296 = smul.addr %s295, 32
      %s297 = smul.addr %s296, 8
      %s298 = scalar_lea.vmem %s0, %s297
      %p299 = scmp.lt.s32.totalorder %s22, 0
      %s300 = scalar_select %p299, %s22, 0
      %s301 = smul.addr %s300, 4
      %s302 = scalar_lea.vmem %s3, %s301
      %p303 = scmp.lt.s32.totalorder %s22, 0
      %s304 = scalar_select %p303, %s22, 0
      %s305 = scalar_lea.vmem %s4, %s304
      %p306 = scmp.lt.s32.totalorder %s22, 0
      %s307 = scalar_select %p306, %s22, 0
      %s308 = scalar_lea.vmem %s5, %s307
      %p309 = scmp.lt.s32.totalorder %s21, 1
      %s310 = scalar_select %p309, %s21, 1
      %p311 = scmp.lt.s32.totalorder %s22, 0
      %s312 = scalar_select %p311, %s22, 0
      %s313 = smul.addr %s310, 32
      %s314 = sadd.s32 %s312, %s313
      %s315 = smul.addr %s314, 4
      %s316 = scalar_lea.vmem %s6, %s315
      %p318 = scmp.eq.s32.totalorder %s22, 0
      // Predicated region
      $region45: #{wide_basic_block_q_forward.2} parent=43 // pred_check
        %p319 = pneg %p318
      $region46: #{wide_basic_block_q_forward.2} parent=43 // pred_check_branch
        %321 = sbr.rel (%p319) target = $region48
      $region47: #{wide_basic_block_q_forward.2} parent=43 // pred_region
        %v322 = vld [vmem:[%s1] sm:$0x1]
        %v323 = vld [vmem:[%s2] sm:$0x1]
        %v324 = vld [vmem:[%s298] sm:$0xff]
        %v325 = vld [vmem:[%s298 + $0x8] sm:$0xff]
        %v326 = vld [vmem:[%s298 + $0x10] sm:$0xff]
        %v327 = vld [vmem:[%s298 + $0x18] sm:$0xff]
        %v328 = vld [vmem:[%s298 + $0x20] sm:$0xff]
        %v329 = vld [vmem:[%s298 + $0x28] sm:$0xff]
        %v330 = vld [vmem:[%s298 + $0x30] sm:$0xff]
        %v331 = vld [vmem:[%s298 + $0x38] sm:$0xff]
        %v332 = vld [vmem:[%s298 + $0x40] sm:$0xff]
        %v333 = vld [vmem:[%s298 + $0x48] sm:$0xff]
        %v334 = vld [vmem:[%s298 + $0x50] sm:$0xff]
        %v335 = vld [vmem:[%s298 + $0x58] sm:$0xff]
        %v336 = vld [vmem:[%s298 + $0x60] sm:$0xff]
        %v337 = vld [vmem:[%s298 + $0x68] sm:$0xff]
        %v338 = vld [vmem:[%s298 + $0x70] sm:$0xff]
        %v339 = vld [vmem:[%s298 + $0x78] sm:$0xff]
        %v340 = vld [vmem:[%s298 + $0x80] sm:$0xff]
        %v341 = vld [vmem:[%s298 + $0x88] sm:$0xff]
        %v342 = vld [vmem:[%s298 + $0x90] sm:$0xff]
        %v343 = vld [vmem:[%s298 + $0x98] sm:$0xff]
        %v344 = vld [vmem:[%s298 + $0xa0] sm:$0xff]
        %v345 = vld [vmem:[%s298 + $0xa8] sm:$0xff]
        %v346 = vld [vmem:[%s298 + $0xb0] sm:$0xff]
        %v347 = vld [vmem:[%s298 + $0xb8] sm:$0xff]
        %v348 = vld [vmem:[%s298 + $0xc0] sm:$0xff]
        %v349 = vld [vmem:[%s298 + $0xc8] sm:$0xff]
        %v350 = vld [vmem:[%s298 + $0xd0] sm:$0xff]
        %v351 = vld [vmem:[%s298 + $0xd8] sm:$0xff]
        %v352 = vld [vmem:[%s298 + $0xe0] sm:$0xff]
        %v353 = vld [vmem:[%s298 + $0xe8] sm:$0xff]
        %v354 = vld [vmem:[%s298 + $0xf0] sm:$0xff]
        %v355 = vld [vmem:[%s298 + $0xf8] sm:$0xff]
        %v357 = vlaneseq
        %v358 = vshrl.u32 %v357, 7
        %v359 = vsub.s32 0, %v358
        %v360 = vrot.slane %v322, %v359
        %v362 = vmul.f32 %v324, %v360
        %v363 = vmul.f32 %v325, %v360
        %v364 = vmul.f32 %v326, %v360
        %v365 = vmul.f32 %v327, %v360
        %v366 = vmul.f32 %v328, %v360
        %v367 = vmul.f32 %v329, %v360
        %v368 = vmul.f32 %v330, %v360
        %v369 = vmul.f32 %v331, %v360
        %v370 = vmul.f32 %v332, %v360
        %v371 = vmul.f32 %v333, %v360
        %v372 = vmul.f32 %v334, %v360
        %v373 = vmul.f32 %v335, %v360
        %v374 = vmul.f32 %v336, %v360
        %v375 = vmul.f32 %v337, %v360
        %v376 = vmul.f32 %v338, %v360
        %v377 = vmul.f32 %v339, %v360
        %v378 = vmul.f32 %v340, %v360
        %v379 = vmul.f32 %v341, %v360
        %v380 = vmul.f32 %v342, %v360
        %v381 = vmul.f32 %v343, %v360
        %v382 = vmul.f32 %v344, %v360
        %v383 = vmul.f32 %v345, %v360
        %v384 = vmul.f32 %v346, %v360
        %v385 = vmul.f32 %v347, %v360
        %v386 = vmul.f32 %v348, %v360
        %v387 = vmul.f32 %v349, %v360
        %v388 = vmul.f32 %v350, %v360
        %v389 = vmul.f32 %v351, %v360
        %v390 = vmul.f32 %v352, %v360
        %v391 = vmul.f32 %v353, %v360
        %v392 = vmul.f32 %v354, %v360
        %v393 = vmul.f32 %v355, %v360
        %v395 = vlaneseq
        %v396 = vshrl.u32 %v395, 7
        %v397 = vsub.s32 0, %v396
        %v398 = vrot.slane %v323, %v397
        %v400 = vadd.f32 %v362, %v398
        %v401 = vadd.f32 %v363, %v398
        %v402 = vadd.f32 %v364, %v398
        %v403 = vadd.f32 %v365, %v398
        %v404 = vadd.f32 %v366, %v398
        %v405 = vadd.f32 %v367, %v398
        %v406 = vadd.f32 %v368, %v398
        %v407 = vadd.f32 %v369, %v398
        %v408 = vadd.f32 %v370, %v398
        %v409 = vadd.f32 %v371, %v398
        %v410 = vadd.f32 %v372, %v398
        %v411 = vadd.f32 %v373, %v398
        %v412 = vadd.f32 %v374, %v398
        %v413 = vadd.f32 %v375, %v398
        %v414 = vadd.f32 %v376, %v398
        %v415 = vadd.f32 %v377, %v398
        %v416 = vadd.f32 %v378, %v398
        %v417 = vadd.f32 %v379, %v398
        %v418 = vadd.f32 %v380, %v398
        %v419 = vadd.f32 %v381, %v398
        %v420 = vadd.f32 %v382, %v398
        %v421 = vadd.f32 %v383, %v398
        %v422 = vadd.f32 %v384, %v398
        %v423 = vadd.f32 %v385, %v398
        %v424 = vadd.f32 %v386, %v398
        %v425 = vadd.f32 %v387, %v398
        %v426 = vadd.f32 %v388, %v398
        %v427 = vadd.f32 %v389, %v398
        %v428 = vadd.f32 %v390, %v398
        %v429 = vadd.f32 %v391, %v398
        %v430 = vadd.f32 %v392, %v398
        %v431 = vadd.f32 %v393, %v398
        %v432 = vmax.f32 %v400, 0.0
        %v433 = vmax.f32 %v401, 0.0
        %v434 = vmax.f32 %v402, 0.0
        %v435 = vmax.f32 %v403, 0.0
        %v436 = vmax.f32 %v404, 0.0
        %v437 = vmax.f32 %v405, 0.0
        %v438 = vmax.f32 %v406, 0.0
        %v439 = vmax.f32 %v407, 0.0
        %v440 = vmax.f32 %v408, 0.0
        %v441 = vmax.f32 %v409, 0.0
        %v442 = vmax.f32 %v410, 0.0
        %v443 = vmax.f32 %v411, 0.0
        %v444 = vmax.f32 %v412, 0.0
        %v445 = vmax.f32 %v413, 0.0
        %v446 = vmax.f32 %v414, 0.0
        %v447 = vmax.f32 %v415, 0.0
        %v448 = vmax.f32 %v416, 0.0
        %v449 = vmax.f32 %v417, 0.0
        %v450 = vmax.f32 %v418, 0.0
        %v451 = vmax.f32 %v419, 0.0
        %v452 = vmax.f32 %v420, 0.0
        %v453 = vmax.f32 %v421, 0.0
        %v454 = vmax.f32 %v422, 0.0
        %v455 = vmax.f32 %v423, 0.0
        %v456 = vmax.f32 %v424, 0.0
        %v457 = vmax.f32 %v425, 0.0
        %v458 = vmax.f32 %v426, 0.0
        %v459 = vmax.f32 %v427, 0.0
        %v460 = vmax.f32 %v428, 0.0
        %v461 = vmax.f32 %v429, 0.0
        %v462 = vmax.f32 %v430, 0.0
        %v463 = vmax.f32 %v431, 0.0
        %v464 = vmin.f32 %v432, 1.0
        %v465 = vmin.f32 %v433, 1.0
        %v466 = vmin.f32 %v434, 1.0
        %v467 = vmin.f32 %v435, 1.0
        %v468 = vmin.f32 %v436, 1.0
        %v469 = vmin.f32 %v437, 1.0
        %v470 = vmin.f32 %v438, 1.0
        %v471 = vmin.f32 %v439, 1.0
        %v472 = vmin.f32 %v440, 1.0
        %v473 = vmin.f32 %v441, 1.0
        %v474 = vmin.f32 %v442, 1.0
        %v475 = vmin.f32 %v443, 1.0
        %v476 = vmin.f32 %v444, 1.0
        %v477 = vmin.f32 %v445, 1.0
        %v478 = vmin.f32 %v446, 1.0
        %v479 = vmin.f32 %v447, 1.0
        %v480 = vmin.f32 %v448, 1.0
        %v481 = vmin.f32 %v449, 1.0
        %v482 = vmin.f32 %v450, 1.0
        %v483 = vmin.f32 %v451, 1.0
        %v484 = vmin.f32 %v452, 1.0
        %v485 = vmin.f32 %v453, 1.0
        %v486 = vmin.f32 %v454, 1.0
        %v487 = vmin.f32 %v455, 1.0
        %v488 = vmin.f32 %v456, 1.0
        %v489 = vmin.f32 %v457, 1.0
        %v490 = vmin.f32 %v458, 1.0
        %v491 = vmin.f32 %v459, 1.0
        %v492 = vmin.f32 %v460, 1.0
        %v493 = vmin.f32 %v461, 1.0
        %v494 = vmin.f32 %v462, 1.0
        %v495 = vmin.f32 %v463, 1.0
        %v496 = vmul.f32 %v464, 15.0
        %v497 = vmul.f32 %v465, 15.0
        %v498 = vmul.f32 %v466, 15.0
        %v499 = vmul.f32 %v467, 15.0
        %v500 = vmul.f32 %v468, 15.0
        %v501 = vmul.f32 %v469, 15.0
        %v502 = vmul.f32 %v470, 15.0
        %v503 = vmul.f32 %v471, 15.0
        %v504 = vmul.f32 %v472, 15.0
        %v505 = vmul.f32 %v473, 15.0
        %v506 = vmul.f32 %v474, 15.0
        %v507 = vmul.f32 %v475, 15.0
        %v508 = vmul.f32 %v476, 15.0
        %v509 = vmul.f32 %v477, 15.0
        %v510 = vmul.f32 %v478, 15.0
        %v511 = vmul.f32 %v479, 15.0
        %v512 = vmul.f32 %v480, 15.0
        %v513 = vmul.f32 %v481, 15.0
        %v514 = vmul.f32 %v482, 15.0
        %v515 = vmul.f32 %v483, 15.0
        %v516 = vmul.f32 %v484, 15.0
        %v517 = vmul.f32 %v485, 15.0
        %v518 = vmul.f32 %v486, 15.0
        %v519 = vmul.f32 %v487, 15.0
        %v520 = vmul.f32 %v488, 15.0
        %v521 = vmul.f32 %v489, 15.0
        %v522 = vmul.f32 %v490, 15.0
        %v523 = vmul.f32 %v491, 15.0
        %v524 = vmul.f32 %v492, 15.0
        %v525 = vmul.f32 %v493, 15.0
        %v526 = vmul.f32 %v494, 15.0
        %v527 = vmul.f32 %v495, 15.0
        %v528 = vround.ne.pseudo %v496
        %v529 = vround.ne.pseudo %v497
        %v530 = vround.ne.pseudo %v498
        %v531 = vround.ne.pseudo %v499
        %v532 = vround.ne.pseudo %v500
        %v533 = vround.ne.pseudo %v501
        %v534 = vround.ne.pseudo %v502
        %v535 = vround.ne.pseudo %v503
        %v536 = vround.ne.pseudo %v504
        %v537 = vround.ne.pseudo %v505
        %v538 = vround.ne.pseudo %v506
        %v539 = vround.ne.pseudo %v507
        %v540 = vround.ne.pseudo %v508
        %v541 = vround.ne.pseudo %v509
        %v542 = vround.ne.pseudo %v510
        %v543 = vround.ne.pseudo %v511
        %v544 = vround.ne.pseudo %v512
        %v545 = vround.ne.pseudo %v513
        %v546 = vround.ne.pseudo %v514
        %v547 = vround.ne.pseudo %v515
        %v548 = vround.ne.pseudo %v516
        %v549 = vround.ne.pseudo %v517
        %v550 = vround.ne.pseudo %v518
        %v551 = vround.ne.pseudo %v519
        %v552 = vround.ne.pseudo %v520
        %v553 = vround.ne.pseudo %v521
        %v554 = vround.ne.pseudo %v522
        %v555 = vround.ne.pseudo %v523
        %v556 = vround.ne.pseudo %v524
        %v557 = vround.ne.pseudo %v525
        %v558 = vround.ne.pseudo %v526
        %v559 = vround.ne.pseudo %v527
        %v560 = vpack.c.bf16 %v529, %v528
        %v561 = vpack.c.bf16 %v531, %v530
        %v562 = vpack.c.bf16 %v533, %v532
        %v563 = vpack.c.bf16 %v535, %v534
        %v564 = vpack.c.bf16 %v537, %v536
        %v565 = vpack.c.bf16 %v539, %v538
        %v566 = vpack.c.bf16 %v541, %v540
        %v567 = vpack.c.bf16 %v543, %v542
        %v568 = vpack.c.bf16 %v545, %v544
        %v569 = vpack.c.bf16 %v547, %v546
        %v570 = vpack.c.bf16 %v549, %v548
        %v571 = vpack.c.bf16 %v551, %v550
        %v572 = vpack.c.bf16 %v553, %v552
        %v573 = vpack.c.bf16 %v555, %v554
        %v574 = vpack.c.bf16 %v557, %v556
        %v575 = vpack.c.bf16 %v559, %v558
        %vm576 = vcmask 27648
        %577 = vst.msk [vmem:[#allocation2] sm:$0xf] %vm576, 0
        %578 = vst.msk [vmem:[#allocation2 + $0x4] sm:$0xf] %vm576, 0
        %vm579 = vcmask 24576
        %580 = vst.msk [vmem:[#allocation2 + $0x8] sm:$0x1] %vm579, 0
        %581 = vst.msk [vmem:[#allocation2 + $0xc] sm:$0xf] %vm576, 0
        %582 = vst.msk [vmem:[#allocation2 + $0x10] sm:$0xf] %vm576, 0
        %583 = vst.msk [vmem:[#allocation2 + $0x14] sm:$0x1] %vm579, 0
        %584 = vst.msk [vmem:[#allocation2 + $0x18] sm:$0xf] %vm576, 0
        %585 = vst.msk [vmem:[#allocation2 + $0x1c] sm:$0xf] %vm576, 0
        %586 = vst.msk [vmem:[#allocation2 + $0x20] sm:$0x1] %vm579, 0
        %587 = vst.msk [vmem:[#allocation2 + $0x24] sm:$0xf] %vm576, 0
        %588 = vst.msk [vmem:[#allocation2 + $0x28] sm:$0xf] %vm576, 0
        %589 = vst.msk [vmem:[#allocation2 + $0x2c] sm:$0x1] %vm579, 0
        %590 = vst.msk [vmem:[#allocation2 + $0x30] sm:$0xf] %vm576, 0
        %591 = vst.msk [vmem:[#allocation2 + $0x34] sm:$0xf] %vm576, 0
        %592 = vst.msk [vmem:[#allocation2 + $0x38] sm:$0x1] %vm579, 0
        %593 = vst.msk [vmem:[#allocation2 + $0x3c] sm:$0xf] %vm576, 0
        %594 = vst.msk [vmem:[#allocation2 + $0x40] sm:$0xf] %vm576, 0
        %595 = vst.msk [vmem:[#allocation2 + $0x44] sm:$0x1] %vm579, 0
        %596 = vst.msk [vmem:[#allocation2 + $0x48] sm:$0xf] %vm576, 0
        %597 = vst.msk [vmem:[#allocation2 + $0x4c] sm:$0xf] %vm576, 0
        %598 = vst.msk [vmem:[#allocation2 + $0x50] sm:$0x1] %vm579, 0
        %599 = vst.msk [vmem:[#allocation2 + $0x54] sm:$0xf] %vm576, 0
        %600 = vst.msk [vmem:[#allocation2 + $0x58] sm:$0xf] %vm576, 0
        %601 = vst.msk [vmem:[#allocation2 + $0x5c] sm:$0x1] %vm579, 0
        %602 = vst.msk [vmem:[#allocation2 + $0x60] sm:$0xf] %vm576, 0
        %603 = vst.msk [vmem:[#allocation2 + $0x64] sm:$0xf] %vm576, 0
        %604 = vst.msk [vmem:[#allocation2 + $0x68] sm:$0x1] %vm579, 0
        %605 = vst.msk [vmem:[#allocation2 + $0x6c] sm:$0xf] %vm576, 0
        %606 = vst.msk [vmem:[#allocation2 + $0x70] sm:$0xf] %vm576, 0
        %607 = vst.msk [vmem:[#allocation2 + $0x74] sm:$0x1] %vm579, 0
        %608 = vst.msk [vmem:[#allocation2 + $0x78] sm:$0xf] %vm576, 0
        %609 = vst.msk [vmem:[#allocation2 + $0x7c] sm:$0xf] %vm576, 0
        %610 = vst.msk [vmem:[#allocation2 + $0x80] sm:$0x1] %vm579, 0
        %611 = vst.msk [vmem:[#allocation2 + $0x84] sm:$0xf] %vm576, 0
        %612 = vst.msk [vmem:[#allocation2 + $0x88] sm:$0xf] %vm576, 0
        %613 = vst.msk [vmem:[#allocation2 + $0x8c] sm:$0x1] %vm579, 0
        %614 = vst.msk [vmem:[#allocation2 + $0x90] sm:$0xf] %vm576, 0
        %615 = vst.msk [vmem:[#allocation2 + $0x94] sm:$0xf] %vm576, 0
        %616 = vst.msk [vmem:[#allocation2 + $0x98] sm:$0x1] %vm579, 0
        %617 = vst.msk [vmem:[#allocation2 + $0x9c] sm:$0xf] %vm576, 0
        %618 = vst.msk [vmem:[#allocation2 + $0xa0] sm:$0xf] %vm576, 0
        %619 = vst.msk [vmem:[#allocation2 + $0xa4] sm:$0x1] %vm579, 0
        %620 = vst.msk [vmem:[#allocation2 + $0xa8] sm:$0xf] %vm576, 0
        %621 = vst.msk [vmem:[#allocation2 + $0xac] sm:$0xf] %vm576, 0
        %622 = vst.msk [vmem:[#allocation2 + $0xb0] sm:$0x1] %vm579, 0
        %623 = vst.msk [vmem:[#allocation2 + $0xb4] sm:$0xf] %vm576, 0
        %624 = vst.msk [vmem:[#allocation2 + $0xb8] sm:$0xf] %vm576, 0
        %625 = vst.msk [vmem:[#allocation2 + $0xbc] sm:$0x1] %vm579, 0
        %626 = vst.msk [vmem:[#allocation2 + $0xc0] sm:$0xf] %vm576, 0
        %627 = vst.msk [vmem:[#allocation2 + $0xc4] sm:$0xf] %vm576, 0
        %628 = vst.msk [vmem:[#allocation2 + $0xc8] sm:$0x1] %vm579, 0
        %629 = vst.msk [vmem:[#allocation2 + $0xcc] sm:$0xf] %vm576, 0
        %630 = vst.msk [vmem:[#allocation2 + $0xd0] sm:$0xf] %vm576, 0
        %631 = vst.msk [vmem:[#allocation2 + $0xd4] sm:$0x1] %vm579, 0
        %v648 = vunpack.c.l.b16 %v560
        %v649 = vunpack.c.h.b16 %v560
        %v650 = vunpack.c.l.b16 %v561
        %v651 = vunpack.c.h.b16 %v561
        %v652 = vunpack.c.l.b16 %v562
        %v653 = vunpack.c.h.b16 %v562
        %v654 = vunpack.c.l.b16 %v563
        %v655 = vunpack.c.h.b16 %v563
        %v656 = vunpack.c.l.b16 %v564
        %v657 = vunpack.c.h.b16 %v564
        %v658 = vunpack.c.l.b16 %v565
        %v659 = vunpack.c.h.b16 %v565
        %v660 = vunpack.c.l.b16 %v566
        %v661 = vunpack.c.h.b16 %v566
        %v662 = vunpack.c.l.b16 %v567
        %v663 = vunpack.c.h.b16 %v567
        %v664 = vunpack.c.l.b16 %v568
        %v665 = vunpack.c.h.b16 %v568
        %v666 = vunpack.c.l.b16 %v569
        %v667 = vunpack.c.h.b16 %v569
        %v668 = vunpack.c.l.b16 %v570
        %v669 = vunpack.c.h.b16 %v570
        %v670 = vunpack.c.l.b16 %v571
        %v671 = vunpack.c.h.b16 %v571
        %v672 = vunpack.c.l.b16 %v572
        %v673 = vunpack.c.h.b16 %v572
        %v674 = vunpack.c.l.b16 %v573
        %v675 = vunpack.c.h.b16 %v573
        %v676 = vunpack.c.l.b16 %v574
        %v677 = vunpack.c.h.b16 %v574
        %v678 = vunpack.c.l.b16 %v575
        %v679 = vunpack.c.h.b16 %v575
        %v680 = vpack.c.b16 %v648, %v648
        %v681 = vpack.c.b16 %v649, %v649
        %v682 = vpack.c.b16 %v650, %v650
        %v683 = vpack.c.b16 %v651, %v651
        %v684 = vpack.c.b16 %v652, %v652
        %v685 = vpack.c.b16 %v653, %v653
        %v686 = vpack.c.b16 %v654, %v654
        %v687 = vpack.c.b16 %v655, %v655
        %v688 = vpack.c.b16 %v656, %v656
        %v689 = vpack.c.b16 %v657, %v657
        %v690 = vpack.c.b16 %v658, %v658
        %v691 = vpack.c.b16 %v659, %v659
        %v692 = vpack.c.b16 %v660, %v660
        %v693 = vpack.c.b16 %v661, %v661
        %v694 = vpack.c.b16 %v662, %v662
        %v695 = vpack.c.b16 %v663, %v663
        %v696 = vpack.c.b16 %v664, %v664
        %v697 = vpack.c.b16 %v665, %v665
        %v698 = vpack.c.b16 %v666, %v666
        %v699 = vpack.c.b16 %v667, %v667
        %v700 = vpack.c.b16 %v668, %v668
        %v701 = vpack.c.b16 %v669, %v669
        %v702 = vpack.c.b16 %v670, %v670
        %v703 = vpack.c.b16 %v671, %v671
        %v704 = vpack.c.b16 %v672, %v672
        %v705 = vpack.c.b16 %v673, %v673
        %v706 = vpack.c.b16 %v674, %v674
        %v707 = vpack.c.b16 %v675, %v675
        %v708 = vpack.c.b16 %v676, %v676
        %v709 = vpack.c.b16 %v677, %v677
        %v710 = vpack.c.b16 %v678, %v678
        %v711 = vpack.c.b16 %v679, %v679
        %vm712 = vsmask.f32 256
        %vm713 = vsmask.f32 4368
        %vm714 = vmor %vm712, %vm713
        %v716 = vshrl.u32 %v680, 16
        %v718 = vrot.slane %v716, 7
        %v719 = vshll.u32 %v680, 16
        %v721 = vor.u32 %v718, %v719
        %v722 = vrot.slane %v718, 4
        %v724 = vshrl.u32 %v681, 16
        %v726 = vrot.slane %v724, 7
        %v727 = vshll.u32 %v681, 16
        %v729 = vor.u32 %v726, %v727
        %v730 = vsel %vm714, %v722, %v729
        %v731 = vrot.slane %v726, 4
        %v733 = vshrl.u32 %v682, 16
        %v735 = vrot.slane %v733, 7
        %v736 = vshll.u32 %v682, 16
        %v738 = vor.u32 %v735, %v736
        %v739 = vrot.slane %v735, 4
        %v741 = vshrl.u32 %v683, 16
        %v743 = vrot.slane %v741, 7
        %v744 = vshll.u32 %v683, 16
        %v746 = vor.u32 %v743, %v744
        %v747 = vsel %vm714, %v739, %v746
        %v748 = vrot.slane %v743, 4
        %v750 = vshrl.u32 %v684, 16
        %v752 = vrot.slane %v750, 7
        %v753 = vshll.u32 %v684, 16
        %v755 = vor.u32 %v752, %v753
        %v756 = vrot.slane %v752, 4
        %v758 = vshrl.u32 %v685, 16
        %v760 = vrot.slane %v758, 7
        %v761 = vshll.u32 %v685, 16
        %v763 = vor.u32 %v760, %v761
        %v764 = vsel %vm714, %v756, %v763
        %v765 = vrot.slane %v760, 4
        %v767 = vshrl.u32 %v686, 16
        %v769 = vrot.slane %v767, 7
        %v770 = vshll.u32 %v686, 16
        %v772 = vor.u32 %v769, %v770
        %v773 = vrot.slane %v769, 4
        %v775 = vshrl.u32 %v687, 16
        %v777 = vrot.slane %v775, 7
        %v778 = vshll.u32 %v687, 16
        %v780 = vor.u32 %v777, %v778
        %v781 = vsel %vm714, %v773, %v780
        %v782 = vrot.slane %v777, 4
        %v784 = vshrl.u32 %v688, 16
        %v786 = vrot.slane %v784, 7
        %v787 = vshll.u32 %v688, 16
        %v789 = vor.u32 %v786, %v787
        %v790 = vrot.slane %v786, 4
        %v792 = vshrl.u32 %v689, 16
        %v794 = vrot.slane %v792, 7
        %v795 = vshll.u32 %v689, 16
        %v797 = vor.u32 %v794, %v795
        %v798 = vsel %vm714, %v790, %v797
        %v799 = vrot.slane %v794, 4
        %v801 = vshrl.u32 %v690, 16
        %v803 = vrot.slane %v801, 7
        %v804 = vshll.u32 %v690, 16
        %v806 = vor.u32 %v803, %v804
        %v807 = vrot.slane %v803, 4
        %v809 = vshrl.u32 %v691, 16
        %v811 = vrot.slane %v809, 7
        %v812 = vshll.u32 %v691, 16
        %v814 = vor.u32 %v811, %v812
        %v815 = vsel %vm714, %v807, %v814
        %v816 = vrot.slane %v811, 4
        %v818 = vshrl.u32 %v692, 16
        %v820 = vrot.slane %v818, 7
        %v821 = vshll.u32 %v692, 16
        %v823 = vor.u32 %v820, %v821
        %v824 = vrot.slane %v820, 4
        %v826 = vshrl.u32 %v693, 16
        %v828 = vrot.slane %v826, 7
        %v829 = vshll.u32 %v693, 16
        %v831 = vor.u32 %v828, %v829
        %v832 = vsel %vm714, %v824, %v831
        %v833 = vrot.slane %v828, 4
        %v835 = vshrl.u32 %v694, 16
        %v837 = vrot.slane %v835, 7
        %v838 = vshll.u32 %v694, 16
        %v840 = vor.u32 %v837, %v838
        %v841 = vrot.slane %v837, 4
        %v843 = vshrl.u32 %v695, 16
        %v845 = vrot.slane %v843, 7
        %v846 = vshll.u32 %v695, 16
        %v848 = vor.u32 %v845, %v846
        %v849 = vsel %vm714, %v841, %v848
        %v850 = vrot.slane %v845, 4
        %v852 = vshrl.u32 %v696, 16
        %v854 = vrot.slane %v852, 7
        %v855 = vshll.u32 %v696, 16
        %v857 = vor.u32 %v854, %v855
        %v858 = vrot.slane %v854, 4
        %v860 = vshrl.u32 %v697, 16
        %v862 = vrot.slane %v860, 7
        %v863 = vshll.u32 %v697, 16
        %v865 = vor.u32 %v862, %v863
        %v866 = vsel %vm714, %v858, %v865
        %v867 = vrot.slane %v862, 4
        %v869 = vshrl.u32 %v698, 16
        %v871 = vrot.slane %v869, 7
        %v872 = vshll.u32 %v698, 16
        %v874 = vor.u32 %v871, %v872
        %v875 = vrot.slane %v871, 4
        %v877 = vshrl.u32 %v699, 16
        %v879 = vrot.slane %v877, 7
        %v880 = vshll.u32 %v699, 16
        %v882 = vor.u32 %v879, %v880
        %v883 = vsel %vm714, %v875, %v882
        %v884 = vrot.slane %v879, 4
        %v886 = vshrl.u32 %v700, 16
        %v888 = vrot.slane %v886, 7
        %v889 = vshll.u32 %v700, 16
        %v891 = vor.u32 %v888, %v889
        %v892 = vrot.slane %v888, 4
        %v894 = vshrl.u32 %v701, 16
        %v896 = vrot.slane %v894, 7
        %v897 = vshll.u32 %v701, 16
        %v899 = vor.u32 %v896, %v897
        %v900 = vsel %vm714, %v892, %v899
        %v901 = vrot.slane %v896, 4
        %v903 = vshrl.u32 %v702, 16
        %v905 = vrot.slane %v903, 7
        %v906 = vshll.u32 %v702, 16
        %v908 = vor.u32 %v905, %v906
        %v909 = vrot.slane %v905, 4
        %v911 = vshrl.u32 %v703, 16
        %v913 = vrot.slane %v911, 7
        %v914 = vshll.u32 %v703, 16
        %v916 = vor.u32 %v913, %v914
        %v917 = vsel %vm714, %v909, %v916
        %v918 = vrot.slane %v913, 4
        %v920 = vshrl.u32 %v704, 16
        %v922 = vrot.slane %v920, 7
        %v923 = vshll.u32 %v704, 16
        %v925 = vor.u32 %v922, %v923
        %v926 = vrot.slane %v922, 4
        %v928 = vshrl.u32 %v705, 16
        %v930 = vrot.slane %v928, 7
        %v931 = vshll.u32 %v705, 16
        %v933 = vor.u32 %v930, %v931
        %v934 = vsel %vm714, %v926, %v933
        %v935 = vrot.slane %v930, 4
        %v937 = vshrl.u32 %v706, 16
        %v939 = vrot.slane %v937, 7
        %v940 = vshll.u32 %v706, 16
        %v942 = vor.u32 %v939, %v940
        %v943 = vrot.slane %v939, 4
        %v945 = vshrl.u32 %v707, 16
        %v947 = vrot.slane %v945, 7
        %v948 = vshll.u32 %v707, 16
        %v950 = vor.u32 %v947, %v948
        %v951 = vsel %vm714, %v943, %v950
        %v952 = vrot.slane %v947, 4
        %v954 = vshrl.u32 %v708, 16
        %v956 = vrot.slane %v954, 7
        %v957 = vshll.u32 %v708, 16
        %v959 = vor.u32 %v956, %v957
        %v960 = vrot.slane %v956, 4
        %v962 = vshrl.u32 %v709, 16
        %v964 = vrot.slane %v962, 7
        %v965 = vshll.u32 %v709, 16
        %v967 = vor.u32 %v964, %v965
        %v968 = vsel %vm714, %v960, %v967
        %v969 = vrot.slane %v964, 4
        %v971 = vshrl.u32 %v710, 16
        %v973 = vrot.slane %v971, 7
        %v974 = vshll.u32 %v710, 16
        %v976 = vor.u32 %v973, %v974
        %v977 = vrot.slane %v973, 4
        %v979 = vshrl.u32 %v711, 16
        %v981 = vrot.slane %v979, 7
        %v982 = vshll.u32 %v711, 16
        %v984 = vor.u32 %v981, %v982
        %v985 = vsel %vm714, %v977, %v984
        %v986 = vrot.slane %v981, 4
        %s1035 = scalar_lea.vmem [#allocation2], 12
        %vm1036 = vcmask 27648
        %vm1037 = vsmask.f32 7938
        %vm1038 = vmand %vm1036, %vm1037
        %v1039 = vld [vmem:[%s1035] sm:$0xf]
        %v1040 = vsel %vm1038, %v721, %v1039
        %1041 = vst [vmem:[%s1035] sm:$0xf] %v1040
        %1042 = vst.msk [vmem:[%s1035 + $0x4] sm:$0xf] %vm576, %v730
        %vm1043 = vcmask 24576
        %vm1044 = vmand %vm1043, %vm712
        %v1045 = vld [vmem:[%s1035 + $0x8] sm:$0x1]
        %v1046 = vsel %vm1044, %v731, %v1045
        %1047 = vst [vmem:[%s1035 + $0x8] sm:$0x1] %v1046
        %v1048 = vld [vmem:[%s1035 + $0xc] sm:$0xf]
        %v1049 = vsel %vm1038, %v738, %v1048
        %1050 = vst [vmem:[%s1035 + $0xc] sm:$0xf] %v1049
        %1051 = vst.msk [vmem:[%s1035 + $0x10] sm:$0xf] %vm576, %v747
        %v1052 = vld [vmem:[%s1035 + $0x14] sm:$0x1]
        %v1053 = vsel %vm1044, %v748, %v1052
        %1054 = vst [vmem:[%s1035 + $0x14] sm:$0x1] %v1053
        %v1055 = vld [vmem:[%s1035 + $0x18] sm:$0xf]
        %v1056 = vsel %vm1038, %v755, %v1055
        %1057 = vst [vmem:[%s1035 + $0x18] sm:$0xf] %v1056
        %1058 = vst.msk [vmem:[%s1035 + $0x1c] sm:$0xf] %vm576, %v764
        %v1059 = vld [vmem:[%s1035 + $0x20] sm:$0x1]
        %v1060 = vsel %vm1044, %v765, %v1059
        %1061 = vst [vmem:[%s1035 + $0x20] sm:$0x1] %v1060
        %v1062 = vld [vmem:[%s1035 + $0x24] sm:$0xf]
        %v1063 = vsel %vm1038, %v772, %v1062
        %1064 = vst [vmem:[%s1035 + $0x24] sm:$0xf] %v1063
        %1065 = vst.msk [vmem:[%s1035 + $0x28] sm:$0xf] %vm576, %v781
        %v1066 = vld [vmem:[%s1035 + $0x2c] sm:$0x1]
        %v1067 = vsel %vm1044, %v782, %v1066
        %1068 = vst [vmem:[%s1035 + $0x2c] sm:$0x1] %v1067
        %v1069 = vld [vmem:[%s1035 + $0x30] sm:$0xf]
        %v1070 = vsel %vm1038, %v789, %v1069
        %1071 = vst [vmem:[%s1035 + $0x30] sm:$0xf] %v1070
        %1072 = vst.msk [vmem:[%s1035 + $0x34] sm:$0xf] %vm576, %v798
        %v1073 = vld [vmem:[%s1035 + $0x38] sm:$0x1]
        %v1074 = vsel %vm1044, %v799, %v1073
        %1075 = vst [vmem:[%s1035 + $0x38] sm:$0x1] %v1074
        %v1076 = vld [vmem:[%s1035 + $0x3c] sm:$0xf]
        %v1077 = vsel %vm1038, %v806, %v1076
        %1078 = vst [vmem:[%s1035 + $0x3c] sm:$0xf] %v1077
        %1079 = vst.msk [vmem:[%s1035 + $0x40] sm:$0xf] %vm576, %v815
        %v1080 = vld [vmem:[%s1035 + $0x44] sm:$0x1]
        %v1081 = vsel %vm1044, %v816, %v1080
        %1082 = vst [vmem:[%s1035 + $0x44] sm:$0x1] %v1081
        %v1083 = vld [vmem:[%s1035 + $0x48] sm:$0xf]
        %v1084 = vsel %vm1038, %v823, %v1083
        %1085 = vst [vmem:[%s1035 + $0x48] sm:$0xf] %v1084
        %1086 = vst.msk [vmem:[%s1035 + $0x4c] sm:$0xf] %vm576, %v832
        %v1087 = vld [vmem:[%s1035 + $0x50] sm:$0x1]
        %v1088 = vsel %vm1044, %v833, %v1087
        %1089 = vst [vmem:[%s1035 + $0x50] sm:$0x1] %v1088
        %v1090 = vld [vmem:[%s1035 + $0x54] sm:$0xf]
        %v1091 = vsel %vm1038, %v840, %v1090
        %1092 = vst [vmem:[%s1035 + $0x54] sm:$0xf] %v1091
        %1093 = vst.msk [vmem:[%s1035 + $0x58] sm:$0xf] %vm576, %v849
        %v1094 = vld [vmem:[%s1035 + $0x5c] sm:$0x1]
        %v1095 = vsel %vm1044, %v850, %v1094
        %1096 = vst [vmem:[%s1035 + $0x5c] sm:$0x1] %v1095
        %v1097 = vld [vmem:[%s1035 + $0x60] sm:$0xf]
        %v1098 = vsel %vm1038, %v857, %v1097
        %1099 = vst [vmem:[%s1035 + $0x60] sm:$0xf] %v1098
        %1100 = vst.msk [vmem:[%s1035 + $0x64] sm:$0xf] %vm576, %v866
        %v1101 = vld [vmem:[%s1035 + $0x68] sm:$0x1]
        %v1102 = vsel %vm1044, %v867, %v1101
        %1103 = vst [vmem:[%s1035 + $0x68] sm:$0x1] %v1102
        %v1104 = vld [vmem:[%s1035 + $0x6c] sm:$0xf]
        %v1105 = vsel %vm1038, %v874, %v1104
        %1106 = vst [vmem:[%s1035 + $0x6c] sm:$0xf] %v1105
        %1107 = vst.msk [vmem:[%s1035 + $0x70] sm:$0xf] %vm576, %v883
        %v1108 = vld [vmem:[%s1035 + $0x74] sm:$0x1]
        %v1109 = vsel %vm1044, %v884, %v1108
        %1110 = vst [vmem:[%s1035 + $0x74] sm:$0x1] %v1109
        %v1111 = vld [vmem:[%s1035 + $0x78] sm:$0xf]
        %v1112 = vsel %vm1038, %v891, %v1111
        %1113 = vst [vmem:[%s1035 + $0x78] sm:$0xf] %v1112
        %1114 = vst.msk [vmem:[%s1035 + $0x7c] sm:$0xf] %vm576, %v900
        %v1115 = vld [vmem:[%s1035 + $0x80] sm:$0x1]
        %v1116 = vsel %vm1044, %v901, %v1115
        %1117 = vst [vmem:[%s1035 + $0x80] sm:$0x1] %v1116
        %v1118 = vld [vmem:[%s1035 + $0x84] sm:$0xf]
        %v1119 = vsel %vm1038, %v908, %v1118
        %1120 = vst [vmem:[%s1035 + $0x84] sm:$0xf] %v1119
        %1121 = vst.msk [vmem:[%s1035 + $0x88] sm:$0xf] %vm576, %v917
        %v1122 = vld [vmem:[%s1035 + $0x8c] sm:$0x1]
        %v1123 = vsel %vm1044, %v918, %v1122
        %1124 = vst [vmem:[%s1035 + $0x8c] sm:$0x1] %v1123
        %v1125 = vld [vmem:[%s1035 + $0x90] sm:$0xf]
        %v1126 = vsel %vm1038, %v925, %v1125
        %1127 = vst [vmem:[%s1035 + $0x90] sm:$0xf] %v1126
        %1128 = vst.msk [vmem:[%s1035 + $0x94] sm:$0xf] %vm576, %v934
        %v1129 = vld [vmem:[%s1035 + $0x98] sm:$0x1]
        %v1130 = vsel %vm1044, %v935, %v1129
        %1131 = vst [vmem:[%s1035 + $0x98] sm:$0x1] %v1130
        %v1132 = vld [vmem:[%s1035 + $0x9c] sm:$0xf]
        %v1133 = vsel %vm1038, %v942, %v1132
        %1134 = vst [vmem:[%s1035 + $0x9c] sm:$0xf] %v1133
        %1135 = vst.msk [vmem:[%s1035 + $0xa0] sm:$0xf] %vm576, %v951
        %v1136 = vld [vmem:[%s1035 + $0xa4] sm:$0x1]
        %v1137 = vsel %vm1044, %v952, %v1136
        %1138 = vst [vmem:[%s1035 + $0xa4] sm:$0x1] %v1137
        %v1139 = vld [vmem:[%s1035 + $0xa8] sm:$0xf]
        %v1140 = vsel %vm1038, %v959, %v1139
        %1141 = vst [vmem:[%s1035 + $0xa8] sm:$0xf] %v1140
        %1142 = vst.msk [vmem:[%s1035 + $0xac] sm:$0xf] %vm576, %v968
        %v1143 = vld [vmem:[%s1035 + $0xb0] sm:$0x1]
        %v1144 = vsel %vm1044, %v969, %v1143
        %1145 = vst [vmem:[%s1035 + $0xb0] sm:$0x1] %v1144
        %v1146 = vld [vmem:[%s1035 + $0xb4] sm:$0xf]
        %v1147 = vsel %vm1038, %v976, %v1146
        %1148 = vst [vmem:[%s1035 + $0xb4] sm:$0xf] %v1147
        %1149 = vst.msk [vmem:[%s1035 + $0xb8] sm:$0xf] %vm576, %v985
        %v1150 = vld [vmem:[%s1035 + $0xbc] sm:$0x1]
        %v1151 = vsel %vm1044, %v986, %v1150
        %1152 = vst [vmem:[%s1035 + $0xbc] sm:$0x1] %v1151
        %v1153 = vld [vmem:[#allocation2] sm:$0xf]
        %v1154 = vld [vmem:[#allocation2 + $0x4] sm:$0xf]
        %v1155 = vld [vmem:[#allocation2 + $0x8] sm:$0x1]
        %v1156 = vld [vmem:[#allocation2 + $0xc] sm:$0xf]
        %v1157 = vld [vmem:[#allocation2 + $0x10] sm:$0xf]
        %v1158 = vld [vmem:[#allocation2 + $0x14] sm:$0x1]
        %v1159 = vld [vmem:[#allocation2 + $0x18] sm:$0xf]
        %v1160 = vld [vmem:[#allocation2 + $0x1c] sm:$0xf]
        %v1161 = vld [vmem:[#allocation2 + $0x20] sm:$0x1]
        %v1162 = vld [vmem:[#allocation2 + $0x24] sm:$0xf]
        %v1163 = vld [vmem:[#allocation2 + $0x28] sm:$0xf]
        %v1164 = vld [vmem:[#allocation2 + $0x2c] sm:$0x1]
        %v1165 = vld [vmem:[#allocation2 + $0x30] sm:$0xf]
        %v1166 = vld [vmem:[#allocation2 + $0x34] sm:$0xf]
        %v1167 = vld [vmem:[#allocation2 + $0x38] sm:$0x1]
        %v1168 = vld [vmem:[#allocation2 + $0x3c] sm:$0xf]
        %v1169 = vld [vmem:[#allocation2 + $0x40] sm:$0xf]
        %v1170 = vld [vmem:[#allocation2 + $0x44] sm:$0x1]
        %v1171 = vld [vmem:[#allocation2 + $0x48] sm:$0xf]
        %v1172 = vld [vmem:[#allocation2 + $0x4c] sm:$0xf]
        %v1173 = vld [vmem:[#allocation2 + $0x50] sm:$0x1]
        %v1174 = vld [vmem:[#allocation2 + $0x54] sm:$0xf]
        %v1175 = vld [vmem:[#allocation2 + $0x58] sm:$0xf]
        %v1176 = vld [vmem:[#allocation2 + $0x5c] sm:$0x1]
        %v1177 = vld [vmem:[#allocation2 + $0x60] sm:$0xf]
        %v1178 = vld [vmem:[#allocation2 + $0x64] sm:$0xf]
        %v1179 = vld [vmem:[#allocation2 + $0x68] sm:$0x1]
        %v1180 = vld [vmem:[#allocation2 + $0x6c] sm:$0xf]
        %v1181 = vld [vmem:[#allocation2 + $0x70] sm:$0xf]
        %v1182 = vld [vmem:[#allocation2 + $0x74] sm:$0x1]
        %v1183 = vld [vmem:[#allocation2 + $0x78] sm:$0xf]
        %v1184 = vld [vmem:[#allocation2 + $0x7c] sm:$0xf]
        %v1185 = vld [vmem:[#allocation2 + $0x80] sm:$0x1]
        %v1186 = vld [vmem:[#allocation2 + $0x84] sm:$0xf]
        %v1187 = vld [vmem:[#allocation2 + $0x88] sm:$0xf]
        %v1188 = vld [vmem:[#allocation2 + $0x8c] sm:$0x1]
        %v1189 = vld [vmem:[#allocation2 + $0x90] sm:$0xf]
        %v1190 = vld [vmem:[#allocation2 + $0x94] sm:$0xf]
        %v1191 = vld [vmem:[#allocation2 + $0x98] sm:$0x1]
        %v1192 = vld [vmem:[#allocation2 + $0x9c] sm:$0xf]
        %v1193 = vld [vmem:[#allocation2 + $0xa0] sm:$0xf]
        %v1194 = vld [vmem:[#allocation2 + $0xa4] sm:$0x1]
        %v1195 = vld [vmem:[#allocation2 + $0xa8] sm:$0xf]
        %v1196 = vld [vmem:[#allocation2 + $0xac] sm:$0xf]
        %v1197 = vld [vmem:[#allocation2 + $0xb0] sm:$0x1]
        %v1198 = vld [vmem:[#allocation2 + $0xb4] sm:$0xf]
        %v1199 = vld [vmem:[#allocation2 + $0xb8] sm:$0xf]
        %v1200 = vld [vmem:[#allocation2 + $0xbc] sm:$0x1]
        %v1201 = vld [vmem:[#allocation2 + $0xc0] sm:$0xf]
        %v1202 = vld [vmem:[#allocation2 + $0xc4] sm:$0xf]
        %v1203 = vld [vmem:[#allocation2 + $0xc8] sm:$0x1]
        %v1204 = vld [vmem:[#allocation2 + $0xcc] sm:$0xf]
        %v1205 = vld [vmem:[#allocation2 + $0xd0] sm:$0xf]
        %v1206 = vld [vmem:[#allocation2 + $0xd4] sm:$0x1]
        %vm1207 = vsmask.f32 3328
        %vm1208 = vsmask.f32 7440
        %vm1209 = vmor %vm1207, %vm1208
        %v1211 = vshrl.u32 %v1153, 16
        %v1213 = vrot.slane %v1211, 4
        %v1214 = vshll.u32 %v1153, 16
        %v1216 = vrot.slane %v1214, 5
        %v1217 = vor.u32 %v1213, %v1216
        %v1218 = vrot.slane %v1217, 4
        %v1220 = vshll.u32 %v1154, 16
        %v1222 = vrot.slane %v1220, 5
        %v1223 = vsel %vm1209, %v1218, %v1222
        %v1224 = vshrl.u32 %v1154, 16
        %v1226 = vrot.slane %v1224, 4
        %v1227 = vor.u32 %v1226, %v1222
        %v1228 = vrot.slane %v1227, 4
        %v1230 = vshll.u32 %v1155, 16
        %v1232 = vrot.slane %v1230, 5
        %v1233 = vsel %vm1209, %v1228, %v1232
        %v1235 = vshrl.u32 %v1156, 16
        %v1237 = vrot.slane %v1235, 4
        %v1238 = vshll.u32 %v1156, 16
        %v1240 = vrot.slane %v1238, 5
        %v1241 = vor.u32 %v1237, %v1240
        %v1242 = vrot.slane %v1241, 4
        %v1244 = vshll.u32 %v1157, 16
        %v1246 = vrot.slane %v1244, 5
        %v1247 = vsel %vm1209, %v1242, %v1246
        %v1248 = vshrl.u32 %v1157, 16
        %v1250 = vrot.slane %v1248, 4
        %v1251 = vor.u32 %v1250, %v1246
        %v1252 = vrot.slane %v1251, 4
        %v1254 = vshll.u32 %v1158, 16
        %v1256 = vrot.slane %v1254, 5
        %v1257 = vsel %vm1209, %v1252, %v1256
        %v1259 = vshrl.u32 %v1159, 16
        %v1261 = vrot.slane %v1259, 4
        %v1262 = vshll.u32 %v1159, 16
        %v1264 = vrot.slane %v1262, 5
        %v1265 = vor.u32 %v1261, %v1264
        %v1266 = vrot.slane %v1265, 4
        %v1268 = vshll.u32 %v1160, 16
        %v1270 = vrot.slane %v1268, 5
        %v1271 = vsel %vm1209, %v1266, %v1270
        %v1272 = vshrl.u32 %v1160, 16
        %v1274 = vrot.slane %v1272, 4
        %v1275 = vor.u32 %v1274, %v1270
        %v1276 = vrot.slane %v1275, 4
        %v1278 = vshll.u32 %v1161, 16
        %v1280 = vrot.slane %v1278, 5
        %v1281 = vsel %vm1209, %v1276, %v1280
        %v1283 = vshrl.u32 %v1162, 16
        %v1285 = vrot.slane %v1283, 4
        %v1286 = vshll.u32 %v1162, 16
        %v1288 = vrot.slane %v1286, 5
        %v1289 = vor.u32 %v1285, %v1288
        %v1290 = vrot.slane %v1289, 4
        %v1292 = vshll.u32 %v1163, 16
        %v1294 = vrot.slane %v1292, 5
        %v1295 = vsel %vm1209, %v1290, %v1294
        %v1296 = vshrl.u32 %v1163, 16
        %v1298 = vrot.slane %v1296, 4
        %v1299 = vor.u32 %v1298, %v1294
        %v1300 = vrot.slane %v1299, 4
        %v1302 = vshll.u32 %v1164, 16
        %v1304 = vrot.slane %v1302, 5
        %v1305 = vsel %vm1209, %v1300, %v1304
        %v1307 = vshrl.u32 %v1165, 16
        %v1309 = vrot.slane %v1307, 4
        %v1310 = vshll.u32 %v1165, 16
        %v1312 = vrot.slane %v1310, 5
        %v1313 = vor.u32 %v1309, %v1312
        %v1314 = vrot.slane %v1313, 4
        %v1316 = vshll.u32 %v1166, 16
        %v1318 = vrot.slane %v1316, 5
        %v1319 = vsel %vm1209, %v1314, %v1318
        %v1320 = vshrl.u32 %v1166, 16
        %v1322 = vrot.slane %v1320, 4
        %v1323 = vor.u32 %v1322, %v1318
        %v1324 = vrot.slane %v1323, 4
        %v1326 = vshll.u32 %v1167, 16
        %v1328 = vrot.slane %v1326, 5
        %v1329 = vsel %vm1209, %v1324, %v1328
        %v1331 = vshrl.u32 %v1168, 16
        %v1333 = vrot.slane %v1331, 4
        %v1334 = vshll.u32 %v1168, 16
        %v1336 = vrot.slane %v1334, 5
        %v1337 = vor.u32 %v1333, %v1336
        %v1338 = vrot.slane %v1337, 4
        %v1340 = vshll.u32 %v1169, 16
        %v1342 = vrot.slane %v1340, 5
        %v1343 = vsel %vm1209, %v1338, %v1342
        %v1344 = vshrl.u32 %v1169, 16
        %v1346 = vrot.slane %v1344, 4
        %v1347 = vor.u32 %v1346, %v1342
        %v1348 = vrot.slane %v1347, 4
        %v1350 = vshll.u32 %v1170, 16
        %v1352 = vrot.slane %v1350, 5
        %v1353 = vsel %vm1209, %v1348, %v1352
        %v1355 = vshrl.u32 %v1171, 16
        %v1357 = vrot.slane %v1355, 4
        %v1358 = vshll.u32 %v1171, 16
        %v1360 = vrot.slane %v1358, 5
        %v1361 = vor.u32 %v1357, %v1360
        %v1362 = vrot.slane %v1361, 4
        %v1364 = vshll.u32 %v1172, 16
        %v1366 = vrot.slane %v1364, 5
        %v1367 = vsel %vm1209, %v1362, %v1366
        %v1368 = vshrl.u32 %v1172, 16
        %v1370 = vrot.slane %v1368, 4
        %v1371 = vor.u32 %v1370, %v1366
        %v1372 = vrot.slane %v1371, 4
        %v1374 = vshll.u32 %v1173, 16
        %v1376 = vrot.slane %v1374, 5
        %v1377 = vsel %vm1209, %v1372, %v1376
        %v1379 = vshrl.u32 %v1174, 16
        %v1381 = vrot.slane %v1379, 4
        %v1382 = vshll.u32 %v1174, 16
        %v1384 = vrot.slane %v1382, 5
        %v1385 = vor.u32 %v1381, %v1384
        %v1386 = vrot.slane %v1385, 4
        %v1388 = vshll.u32 %v1175, 16
        %v1390 = vrot.slane %v1388, 5
        %v1391 = vsel %vm1209, %v1386, %v1390
        %v1392 = vshrl.u32 %v1175, 16
        %v1394 = vrot.slane %v1392, 4
        %v1395 = vor.u32 %v1394, %v1390
        %v1396 = vrot.slane %v1395, 4
        %v1398 = vshll.u32 %v1176, 16
        %v1400 = vrot.slane %v1398, 5
        %v1401 = vsel %vm1209, %v1396, %v1400
        %v1403 = vshrl.u32 %v1177, 16
        %v1405 = vrot.slane %v1403, 4
        %v1406 = vshll.u32 %v1177, 16
        %v1408 = vrot.slane %v1406, 5
        %v1409 = vor.u32 %v1405, %v1408
        %v1410 = vrot.slane %v1409, 4
        %v1412 = vshll.u32 %v1178, 16
        %v1414 = vrot.slane %v1412, 5
        %v1415 = vsel %vm1209, %v1410, %v1414
        %v1416 = vshrl.u32 %v1178, 16
        %v1418 = vrot.slane %v1416, 4
        %v1419 = vor.u32 %v1418, %v1414
        %v1420 = vrot.slane %v1419, 4
        %v1422 = vshll.u32 %v1179, 16
        %v1424 = vrot.slane %v1422, 5
        %v1425 = vsel %vm1209, %v1420, %v1424
        %v1427 = vshrl.u32 %v1180, 16
        %v1429 = vrot.slane %v1427, 4
        %v1430 = vshll.u32 %v1180, 16
        %v1432 = vrot.slane %v1430, 5
        %v1433 = vor.u32 %v1429, %v1432
        %v1434 = vrot.slane %v1433, 4
        %v1436 = vshll.u32 %v1181, 16
        %v1438 = vrot.slane %v1436, 5
        %v1439 = vsel %vm1209, %v1434, %v1438
        %v1440 = vshrl.u32 %v1181, 16
        %v1442 = vrot.slane %v1440, 4
        %v1443 = vor.u32 %v1442, %v1438
        %v1444 = vrot.slane %v1443, 4
        %v1446 = vshll.u32 %v1182, 16
        %v1448 = vrot.slane %v1446, 5
        %v1449 = vsel %vm1209, %v1444, %v1448
        %v1451 = vshrl.u32 %v1183, 16
        %v1453 = vrot.slane %v1451, 4
        %v1454 = vshll.u32 %v1183, 16
        %v1456 = vrot.slane %v1454, 5
        %v1457 = vor.u32 %v1453, %v1456
        %v1458 = vrot.slane %v1457, 4
        %v1460 = vshll.u32 %v1184, 16
        %v1462 = vrot.slane %v1460, 5
        %v1463 = vsel %vm1209, %v1458, %v1462
        %v1464 = vshrl.u32 %v1184, 16
        %v1466 = vrot.slane %v1464, 4
        %v1467 = vor.u32 %v1466, %v1462
        %v1468 = vrot.slane %v1467, 4
        %v1470 = vshll.u32 %v1185, 16
        %v1472 = vrot.slane %v1470, 5
        %v1473 = vsel %vm1209, %v1468, %v1472
        %v1475 = vshrl.u32 %v1186, 16
        %v1477 = vrot.slane %v1475, 4
        %v1478 = vshll.u32 %v1186, 16
        %v1480 = vrot.slane %v1478, 5
        %v1481 = vor.u32 %v1477, %v1480
        %v1482 = vrot.slane %v1481, 4
        %v1484 = vshll.u32 %v1187, 16
        %v1486 = vrot.slane %v1484, 5
        %v1487 = vsel %vm1209, %v1482, %v1486
        %v1488 = vshrl.u32 %v1187, 16
        %v1490 = vrot.slane %v1488, 4
        %v1491 = vor.u32 %v1490, %v1486
        %v1492 = vrot.slane %v1491, 4
        %v1494 = vshll.u32 %v1188, 16
        %v1496 = vrot.slane %v1494, 5
        %v1497 = vsel %vm1209, %v1492, %v1496
        %v1499 = vshrl.u32 %v1189, 16
        %v1501 = vrot.slane %v1499, 4
        %v1502 = vshll.u32 %v1189, 16
        %v1504 = vrot.slane %v1502, 5
        %v1505 = vor.u32 %v1501, %v1504
        %v1506 = vrot.slane %v1505, 4
        %v1508 = vshll.u32 %v1190, 16
        %v1510 = vrot.slane %v1508, 5
        %v1511 = vsel %vm1209, %v1506, %v1510
        %v1512 = vshrl.u32 %v1190, 16
        %v1514 = vrot.slane %v1512, 4
        %v1515 = vor.u32 %v1514, %v1510
        %v1516 = vrot.slane %v1515, 4
        %v1518 = vshll.u32 %v1191, 16
        %v1520 = vrot.slane %v1518, 5
        %v1521 = vsel %vm1209, %v1516, %v1520
        %v1523 = vshrl.u32 %v1192, 16
        %v1525 = vrot.slane %v1523, 4
        %v1526 = vshll.u32 %v1192, 16
        %v1528 = vrot.slane %v1526, 5
        %v1529 = vor.u32 %v1525, %v1528
        %v1530 = vrot.slane %v1529, 4
        %v1532 = vshll.u32 %v1193, 16
        %v1534 = vrot.slane %v1532, 5
        %v1535 = vsel %vm1209, %v1530, %v1534
        %v1536 = vshrl.u32 %v1193, 16
        %v1538 = vrot.slane %v1536, 4
        %v1539 = vor.u32 %v1538, %v1534
        %v1540 = vrot.slane %v1539, 4
        %v1542 = vshll.u32 %v1194, 16
        %v1544 = vrot.slane %v1542, 5
        %v1545 = vsel %vm1209, %v1540, %v1544
        %v1547 = vshrl.u32 %v1195, 16
        %v1549 = vrot.slane %v1547, 4
        %v1550 = vshll.u32 %v1195, 16
        %v1552 = vrot.slane %v1550, 5
        %v1553 = vor.u32 %v1549, %v1552
        %v1554 = vrot.slane %v1553, 4
        %v1556 = vshll.u32 %v1196, 16
        %v1558 = vrot.slane %v1556, 5
        %v1559 = vsel %vm1209, %v1554, %v1558
        %v1560 = vshrl.u32 %v1196, 16
        %v1562 = vrot.slane %v1560, 4
        %v1563 = vor.u32 %v1562, %v1558
        %v1564 = vrot.slane %v1563, 4
        %v1566 = vshll.u32 %v1197, 16
        %v1568 = vrot.slane %v1566, 5
        %v1569 = vsel %vm1209, %v1564, %v1568
        %v1571 = vshrl.u32 %v1198, 16
        %v1573 = vrot.slane %v1571, 4
        %v1574 = vshll.u32 %v1198, 16
        %v1576 = vrot.slane %v1574, 5
        %v1577 = vor.u32 %v1573, %v1576
        %v1578 = vrot.slane %v1577, 4
        %v1580 = vshll.u32 %v1199, 16
        %v1582 = vrot.slane %v1580, 5
        %v1583 = vsel %vm1209, %v1578, %v1582
        %v1584 = vshrl.u32 %v1199, 16
        %v1586 = vrot.slane %v1584, 4
        %v1587 = vor.u32 %v1586, %v1582
        %v1588 = vrot.slane %v1587, 4
        %v1590 = vshll.u32 %v1200, 16
        %v1592 = vrot.slane %v1590, 5
        %v1593 = vsel %vm1209, %v1588, %v1592
        %vm1642 = vcmask 1042432
        %vm1643 = vcmask 1046532
        %vm1644 = vmor %vm1642, %vm1643
        %v1645 = vrot.slane %v1153, 5
        %v1646 = vrot.slane %v1645, 4
        %v1647 = vrot.slane %v1154, 5
        %v1648 = vsel %vm1644, %v1646, %v1647
        %v1649 = vrot.slane %v1647, 4
        %v1650 = vrot.slane %v1155, 5
        %v1651 = vsel %vm1644, %v1649, %v1650
        %v1652 = vrot.slane %v1156, 5
        %v1653 = vrot.slane %v1652, 4
        %v1654 = vrot.slane %v1157, 5
        %v1655 = vsel %vm1644, %v1653, %v1654
        %v1656 = vrot.slane %v1654, 4
        %v1657 = vrot.slane %v1158, 5
        %v1658 = vsel %vm1644, %v1656, %v1657
        %v1659 = vrot.slane %v1159, 5
        %v1660 = vrot.slane %v1659, 4
        %v1661 = vrot.slane %v1160, 5
        %v1662 = vsel %vm1644, %v1660, %v1661
        %v1663 = vrot.slane %v1661, 4
        %v1664 = vrot.slane %v1161, 5
        %v1665 = vsel %vm1644, %v1663, %v1664
        %v1666 = vrot.slane %v1162, 5
        %v1667 = vrot.slane %v1666, 4
        %v1668 = vrot.slane %v1163, 5
        %v1669 = vsel %vm1644, %v1667, %v1668
        %v1670 = vrot.slane %v1668, 4
        %v1671 = vrot.slane %v1164, 5
        %v1672 = vsel %vm1644, %v1670, %v1671
        %v1673 = vrot.slane %v1165, 5
        %v1674 = vrot.slane %v1673, 4
        %v1675 = vrot.slane %v1166, 5
        %v1676 = vsel %vm1644, %v1674, %v1675
        %v1677 = vrot.slane %v1675, 4
        %v1678 = vrot.slane %v1167, 5
        %v1679 = vsel %vm1644, %v1677, %v1678
        %v1680 = vrot.slane %v1168, 5
        %v1681 = vrot.slane %v1680, 4
        %v1682 = vrot.slane %v1169, 5
        %v1683 = vsel %vm1644, %v1681, %v1682
        %v1684 = vrot.slane %v1682, 4
        %v1685 = vrot.slane %v1170, 5
        %v1686 = vsel %vm1644, %v1684, %v1685
        %v1687 = vrot.slane %v1171, 5
        %v1688 = vrot.slane %v1687, 4
        %v1689 = vrot.slane %v1172, 5
        %v1690 = vsel %vm1644, %v1688, %v1689
        %v1691 = vrot.slane %v1689, 4
        %v1692 = vrot.slane %v1173, 5
        %v1693 = vsel %vm1644, %v1691, %v1692
        %v1694 = vrot.slane %v1174, 5
        %v1695 = vrot.slane %v1694, 4
        %v1696 = vrot.slane %v1175, 5
        %v1697 = vsel %vm1644, %v1695, %v1696
        %v1698 = vrot.slane %v1696, 4
        %v1699 = vrot.slane %v1176, 5
        %v1700 = vsel %vm1644, %v1698, %v1699
        %v1701 = vrot.slane %v1177, 5
        %v1702 = vrot.slane %v1701, 4
        %v1703 = vrot.slane %v1178, 5
        %v1704 = vsel %vm1644, %v1702, %v1703
        %v1705 = vrot.slane %v1703, 4
        %v1706 = vrot.slane %v1179, 5
        %v1707 = vsel %vm1644, %v1705, %v1706
        %v1708 = vrot.slane %v1180, 5
        %v1709 = vrot.slane %v1708, 4
        %v1710 = vrot.slane %v1181, 5
        %v1711 = vsel %vm1644, %v1709, %v1710
        %v1712 = vrot.slane %v1710, 4
        %v1713 = vrot.slane %v1182, 5
        %v1714 = vsel %vm1644, %v1712, %v1713
        %v1715 = vrot.slane %v1183, 5
        %v1716 = vrot.slane %v1715, 4
        %v1717 = vrot.slane %v1184, 5
        %v1718 = vsel %vm1644, %v1716, %v1717
        %v1719 = vrot.slane %v1717, 4
        %v1720 = vrot.slane %v1185, 5
        %v1721 = vsel %vm1644, %v1719, %v1720
        %v1722 = vrot.slane %v1186, 5
        %v1723 = vrot.slane %v1722, 4
        %v1724 = vrot.slane %v1187, 5
        %v1725 = vsel %vm1644, %v1723, %v1724
        %v1726 = vrot.slane %v1724, 4
        %v1727 = vrot.slane %v1188, 5
        %v1728 = vsel %vm1644, %v1726, %v1727
        %v1729 = vrot.slane %v1189, 5
        %v1730 = vrot.slane %v1729, 4
        %v1731 = vrot.slane %v1190, 5
        %v1732 = vsel %vm1644, %v1730, %v1731
        %v1733 = vrot.slane %v1731, 4
        %v1734 = vrot.slane %v1191, 5
        %v1735 = vsel %vm1644, %v1733, %v1734
        %v1736 = vrot.slane %v1192, 5
        %v1737 = vrot.slane %v1736, 4
        %v1738 = vrot.slane %v1193, 5
        %v1739 = vsel %vm1644, %v1737, %v1738
        %v1740 = vrot.slane %v1738, 4
        %v1741 = vrot.slane %v1194, 5
        %v1742 = vsel %vm1644, %v1740, %v1741
        %v1743 = vrot.slane %v1195, 5
        %v1744 = vrot.slane %v1743, 4
        %v1745 = vrot.slane %v1196, 5
        %v1746 = vsel %vm1644, %v1744, %v1745
        %v1747 = vrot.slane %v1745, 4
        %v1748 = vrot.slane %v1197, 5
        %v1749 = vsel %vm1644, %v1747, %v1748
        %v1750 = vrot.slane %v1198, 5
        %v1751 = vrot.slane %v1750, 4
        %v1752 = vrot.slane %v1199, 5
        %v1753 = vsel %vm1644, %v1751, %v1752
        %v1754 = vrot.slane %v1752, 4
        %v1755 = vrot.slane %v1200, 5
        %v1756 = vsel %vm1644, %v1754, %v1755
        %v1758 = vshrl.u32 %v1201, 16
        %v1760 = vrot.slane %v1758, 4
        %v1761 = vshll.u32 %v1201, 16
        %v1763 = vrot.slane %v1761, 5
        %v1764 = vor.u32 %v1760, %v1763
        %v1765 = vrot.slane %v1764, 4
        %v1767 = vshll.u32 %v1202, 16
        %v1769 = vrot.slane %v1767, 5
        %v1770 = vsel %vm1209, %v1765, %v1769
        %v1771 = vshrl.u32 %v1202, 16
        %v1773 = vrot.slane %v1771, 4
        %v1774 = vor.u32 %v1773, %v1769
        %v1775 = vrot.slane %v1774, 4
        %v1777 = vshll.u32 %v1203, 16
        %v1779 = vrot.slane %v1777, 5
        %v1780 = vsel %vm1209, %v1775, %v1779
        %v1784 = vrot.slane %v1201, 5
        %v1785 = vrot.slane %v1784, 4
        %v1786 = vrot.slane %v1202, 5
        %v1787 = vsel %vm1644, %v1785, %v1786
        %v1788 = vrot.slane %v1786, 4
        %v1789 = vrot.slane %v1203, 5
        %v1790 = vsel %vm1644, %v1788, %v1789
        %v1792 = vshrl.u32 %v1204, 16
        %v1794 = vrot.slane %v1792, 4
        %v1795 = vshll.u32 %v1204, 16
        %v1797 = vrot.slane %v1795, 5
        %v1798 = vor.u32 %v1794, %v1797
        %v1799 = vrot.slane %v1798, 4
        %v1801 = vshll.u32 %v1205, 16
        %v1803 = vrot.slane %v1801, 5
        %v1804 = vsel %vm1209, %v1799, %v1803
        %v1805 = vshrl.u32 %v1205, 16
        %v1807 = vrot.slane %v1805, 4
        %v1808 = vor.u32 %v1807, %v1803
        %v1809 = vrot.slane %v1808, 4
        %v1811 = vshll.u32 %v1206, 16
        %v1813 = vrot.slane %v1811, 5
        %v1814 = vsel %vm1209, %v1809, %v1813
        %v1818 = vrot.slane %v1204, 5
        %v1819 = vrot.slane %v1818, 4
        %v1820 = vrot.slane %v1205, 5
        %v1821 = vsel %vm1644, %v1819, %v1820
        %v1822 = vrot.slane %v1820, 4
        %v1823 = vrot.slane %v1206, 5
        %v1824 = vsel %vm1644, %v1822, %v1823
        %v1825 = vunpack.c.l.b16 %v1153
        %v1826 = vunpack.c.l.b16 %v1154
        %v1827 = vunpack.c.l.b16 %v1156
        %v1828 = vunpack.c.l.b16 %v1157
        %v1829 = vunpack.c.l.b16 %v1159
        %v1830 = vunpack.c.l.b16 %v1160
        %v1831 = vunpack.c.l.b16 %v1162
        %v1832 = vunpack.c.l.b16 %v1163
        %v1833 = vunpack.c.l.b16 %v1165
        %v1834 = vunpack.c.l.b16 %v1166
        %v1835 = vunpack.c.l.b16 %v1168
        %v1836 = vunpack.c.l.b16 %v1169
        %v1837 = vunpack.c.l.b16 %v1171
        %v1838 = vunpack.c.l.b16 %v1172
        %v1839 = vunpack.c.l.b16 %v1174
        %v1840 = vunpack.c.l.b16 %v1175
        %v1841 = vunpack.c.l.b16 %v1177
        %v1842 = vunpack.c.l.b16 %v1178
        %v1843 = vunpack.c.l.b16 %v1180
        %v1844 = vunpack.c.l.b16 %v1181
        %v1845 = vunpack.c.l.b16 %v1183
        %v1846 = vunpack.c.l.b16 %v1184
        %v1847 = vunpack.c.l.b16 %v1186
        %v1848 = vunpack.c.l.b16 %v1187
        %v1849 = vunpack.c.l.b16 %v1189
        %v1850 = vunpack.c.l.b16 %v1190
        %v1851 = vunpack.c.l.b16 %v1192
        %v1852 = vunpack.c.l.b16 %v1193
        %v1853 = vunpack.c.l.b16 %v1195
        %v1854 = vunpack.c.l.b16 %v1196
        %v1855 = vunpack.c.l.b16 %v1198
        %v1856 = vunpack.c.l.b16 %v1199
        %v1857 = vpack.c.b16 %v1826, %v1825
        %v1858 = vpack.c.b16 %v1828, %v1827
        %v1859 = vpack.c.b16 %v1830, %v1829
        %v1860 = vpack.c.b16 %v1832, %v1831
        %v1861 = vpack.c.b16 %v1834, %v1833
        %v1862 = vpack.c.b16 %v1836, %v1835
        %v1863 = vpack.c.b16 %v1838, %v1837
        %v1864 = vpack.c.b16 %v1840, %v1839
        %v1865 = vpack.c.b16 %v1842, %v1841
        %v1866 = vpack.c.b16 %v1844, %v1843
        %v1867 = vpack.c.b16 %v1846, %v1845
        %v1868 = vpack.c.b16 %v1848, %v1847
        %v1869 = vpack.c.b16 %v1850, %v1849
        %v1870 = vpack.c.b16 %v1852, %v1851
        %v1871 = vpack.c.b16 %v1854, %v1853
        %v1872 = vpack.c.b16 %v1856, %v1855
        %v1873 = vunpack.c.l.b16 %v1223
        %v1874 = vunpack.c.l.b16 %v1233
        %v1875 = vunpack.c.l.b16 %v1247
        %v1876 = vunpack.c.l.b16 %v1257
        %v1877 = vunpack.c.l.b16 %v1271
        %v1878 = vunpack.c.l.b16 %v1281
        %v1879 = vunpack.c.l.b16 %v1295
        %v1880 = vunpack.c.l.b16 %v1305
        %v1881 = vunpack.c.l.b16 %v1319
        %v1882 = vunpack.c.l.b16 %v1329
        %v1883 = vunpack.c.l.b16 %v1343
        %v1884 = vunpack.c.l.b16 %v1353
        %v1885 = vunpack.c.l.b16 %v1367
        %v1886 = vunpack.c.l.b16 %v1377
        %v1887 = vunpack.c.l.b16 %v1391
        %v1888 = vunpack.c.l.b16 %v1401
        %v1889 = vunpack.c.l.b16 %v1415
        %v1890 = vunpack.c.l.b16 %v1425
        %v1891 = vunpack.c.l.b16 %v1439
        %v1892 = vunpack.c.l.b16 %v1449
        %v1893 = vunpack.c.l.b16 %v1463
        %v1894 = vunpack.c.l.b16 %v1473
        %v1895 = vunpack.c.l.b16 %v1487
        %v1896 = vunpack.c.l.b16 %v1497
        %v1897 = vunpack.c.l.b16 %v1511
        %v1898 = vunpack.c.l.b16 %v1521
        %v1899 = vunpack.c.l.b16 %v1535
        %v1900 = vunpack.c.l.b16 %v1545
        %v1901 = vunpack.c.l.b16 %v1559
        %v1902 = vunpack.c.l.b16 %v1569
        %v1903 = vunpack.c.l.b16 %v1583
        %v1904 = vunpack.c.l.b16 %v1593
        %v1905 = vpack.c.b16 %v1874, %v1873
        %v1906 = vpack.c.b16 %v1876, %v1875
        %v1907 = vpack.c.b16 %v1878, %v1877
        %v1908 = vpack.c.b16 %v1880, %v1879
        %v1909 = vpack.c.b16 %v1882, %v1881
        %v1910 = vpack.c.b16 %v1884, %v1883
        %v1911 = vpack.c.b16 %v1886, %v1885
        %v1912 = vpack.c.b16 %v1888, %v1887
        %v1913 = vpack.c.b16 %v1890, %v1889
        %v1914 = vpack.c.b16 %v1892, %v1891
        %v1915 = vpack.c.b16 %v1894, %v1893
        %v1916 = vpack.c.b16 %v1896, %v1895
        %v1917 = vpack.c.b16 %v1898, %v1897
        %v1918 = vpack.c.b16 %v1900, %v1899
        %v1919 = vpack.c.b16 %v1902, %v1901
        %v1920 = vpack.c.b16 %v1904, %v1903
        %1921 = vrot.lane.b32.xlu0 %v1905, 4
        %v1922 = vpop.permute.xlu0 %1921
        %1923 = vrot.lane.b32.xlu0 %v1906, 4
        %v1924 = vpop.permute.xlu0 %1923
        %1925 = vrot.lane.b32.xlu0 %v1907, 4
        %v1926 = vpop.permute.xlu0 %1925
        %1927 = vrot.lane.b32.xlu0 %v1908, 4
        %v1928 = vpop.permute.xlu0 %1927
        %1929 = vrot.lane.b32.xlu0 %v1909, 4
        %v1930 = vpop.permute.xlu0 %1929
        %1931 = vrot.lane.b32.xlu0 %v1910, 4
        %v1932 = vpop.permute.xlu0 %1931
        %1933 = vrot.lane.b32.xlu0 %v1911, 4
        %v1934 = vpop.permute.xlu0 %1933
        %1935 = vrot.lane.b32.xlu0 %v1912, 4
        %v1936 = vpop.permute.xlu0 %1935
        %1937 = vrot.lane.b32.xlu0 %v1913, 4
        %v1938 = vpop.permute.xlu0 %1937
        %1939 = vrot.lane.b32.xlu0 %v1914, 4
        %v1940 = vpop.permute.xlu0 %1939
        %1941 = vrot.lane.b32.xlu0 %v1915, 4
        %v1942 = vpop.permute.xlu0 %1941
        %1943 = vrot.lane.b32.xlu0 %v1916, 4
        %v1944 = vpop.permute.xlu0 %1943
        %1945 = vrot.lane.b32.xlu0 %v1917, 4
        %v1946 = vpop.permute.xlu0 %1945
        %1947 = vrot.lane.b32.xlu0 %v1918, 4
        %v1948 = vpop.permute.xlu0 %1947
        %1949 = vrot.lane.b32.xlu0 %v1919, 4
        %v1950 = vpop.permute.xlu0 %1949
        %1951 = vrot.lane.b32.xlu0 %v1920, 4
        %v1952 = vpop.permute.xlu0 %1951
        %v1953 = vunpack.c.l.b16 %v1648
        %v1954 = vunpack.c.l.b16 %v1651
        %v1955 = vunpack.c.l.b16 %v1655
        %v1956 = vunpack.c.l.b16 %v1658
        %v1957 = vunpack.c.l.b16 %v1662
        %v1958 = vunpack.c.l.b16 %v1665
        %v1959 = vunpack.c.l.b16 %v1669
        %v1960 = vunpack.c.l.b16 %v1672
        %v1961 = vunpack.c.l.b16 %v1676
        %v1962 = vunpack.c.l.b16 %v1679
        %v1963 = vunpack.c.l.b16 %v1683
        %v1964 = vunpack.c.l.b16 %v1686
        %v1965 = vunpack.c.l.b16 %v1690
        %v1966 = vunpack.c.l.b16 %v1693
        %v1967 = vunpack.c.l.b16 %v1697
        %v1968 = vunpack.c.l.b16 %v1700
        %v1969 = vunpack.c.l.b16 %v1704
        %v1970 = vunpack.c.l.b16 %v1707
        %v1971 = vunpack.c.l.b16 %v1711
        %v1972 = vunpack.c.l.b16 %v1714
        %v1973 = vunpack.c.l.b16 %v1718
        %v1974 = vunpack.c.l.b16 %v1721
        %v1975 = vunpack.c.l.b16 %v1725
        %v1976 = vunpack.c.l.b16 %v1728
        %v1977 = vunpack.c.l.b16 %v1732
        %v1978 = vunpack.c.l.b16 %v1735
        %v1979 = vunpack.c.l.b16 %v1739
        %v1980 = vunpack.c.l.b16 %v1742
        %v1981 = vunpack.c.l.b16 %v1746
        %v1982 = vunpack.c.l.b16 %v1749
        %v1983 = vunpack.c.l.b16 %v1753
        %v1984 = vunpack.c.l.b16 %v1756
        %v1985 = vpack.c.b16 %v1954, %v1953
        %v1986 = vpack.c.b16 %v1956, %v1955
        %v1987 = vpack.c.b16 %v1958, %v1957
        %v1988 = vpack.c.b16 %v1960, %v1959
        %v1989 = vpack.c.b16 %v1962, %v1961
        %v1990 = vpack.c.b16 %v1964, %v1963
        %v1991 = vpack.c.b16 %v1966, %v1965
        %v1992 = vpack.c.b16 %v1968, %v1967
        %v1993 = vpack.c.b16 %v1970, %v1969
        %v1994 = vpack.c.b16 %v1972, %v1971
        %v1995 = vpack.c.b16 %v1974, %v1973
        %v1996 = vpack.c.b16 %v1976, %v1975
        %v1997 = vpack.c.b16 %v1978, %v1977
        %v1998 = vpack.c.b16 %v1980, %v1979
        %v1999 = vpack.c.b16 %v1982, %v1981
        %v2000 = vpack.c.b16 %v1984, %v1983
        %2001 = vrot.lane.b32.xlu0 %v1985, 8
        %v2002 = vpop.permute.xlu0 %2001
        %2003 = vrot.lane.b32.xlu0 %v1986, 8
        %v2004 = vpop.permute.xlu0 %2003
        %2005 = vrot.lane.b32.xlu0 %v1987, 8
        %v2006 = vpop.permute.xlu0 %2005
        %2007 = vrot.lane.b32.xlu0 %v1988, 8
        %v2008 = vpop.permute.xlu0 %2007
        %2009 = vrot.lane.b32.xlu0 %v1989, 8
        %v2010 = vpop.permute.xlu0 %2009
        %2011 = vrot.lane.b32.xlu0 %v1990, 8
        %v2012 = vpop.permute.xlu0 %2011
        %2013 = vrot.lane.b32.xlu0 %v1991, 8
        %v2014 = vpop.permute.xlu0 %2013
        %2015 = vrot.lane.b32.xlu0 %v1992, 8
        %v2016 = vpop.permute.xlu0 %2015
        %2017 = vrot.lane.b32.xlu0 %v1993, 8
        %v2018 = vpop.permute.xlu0 %2017
        %2019 = vrot.lane.b32.xlu0 %v1994, 8
        %v2020 = vpop.permute.xlu0 %2019
        %2021 = vrot.lane.b32.xlu0 %v1995, 8
        %v2022 = vpop.permute.xlu0 %2021
        %2023 = vrot.lane.b32.xlu0 %v1996, 8
        %v2024 = vpop.permute.xlu0 %2023
        %2025 = vrot.lane.b32.xlu0 %v1997, 8
        %v2026 = vpop.permute.xlu0 %2025
        %2027 = vrot.lane.b32.xlu0 %v1998, 8
        %v2028 = vpop.permute.xlu0 %2027
        %2029 = vrot.lane.b32.xlu0 %v1999, 8
        %v2030 = vpop.permute.xlu0 %2029
        %2031 = vrot.lane.b32.xlu0 %v2000, 8
        %v2032 = vpop.permute.xlu0 %2031
        %v2033 = vunpack.c.l.b16 %v1201
        %v2034 = vunpack.c.l.b16 %v1202
        %v2035 = vpack.c.b16 %v2034, %v2033
        %2036 = vrot.lane.b32.xlu0 %v1858, 12
        %v2037 = vpop.permute.xlu0 %2036
        %2038 = vrot.lane.b32.xlu0 %v1859, 12
        %v2039 = vpop.permute.xlu0 %2038
        %2040 = vrot.lane.b32.xlu0 %v1860, 12
        %v2041 = vpop.permute.xlu0 %2040
        %2042 = vrot.lane.b32.xlu0 %v1861, 12
        %v2043 = vpop.permute.xlu0 %2042
        %2044 = vrot.lane.b32.xlu0 %v1862, 12
        %v2045 = vpop.permute.xlu0 %2044
        %2046 = vrot.lane.b32.xlu0 %v1863, 12
        %v2047 = vpop.permute.xlu0 %2046
        %2048 = vrot.lane.b32.xlu0 %v1864, 12
        %v2049 = vpop.permute.xlu0 %2048
        %2050 = vrot.lane.b32.xlu0 %v1865, 12
        %v2051 = vpop.permute.xlu0 %2050
        %2052 = vrot.lane.b32.xlu0 %v1866, 12
        %v2053 = vpop.permute.xlu0 %2052
        %2054 = vrot.lane.b32.xlu0 %v1867, 12
        %v2055 = vpop.permute.xlu0 %2054
        %2056 = vrot.lane.b32.xlu0 %v1868, 12
        %v2057 = vpop.permute.xlu0 %2056
        %2058 = vrot.lane.b32.xlu0 %v1869, 12
        %v2059 = vpop.permute.xlu0 %2058
        %2060 = vrot.lane.b32.xlu0 %v1870, 12
        %v2061 = vpop.permute.xlu0 %2060
        %2062 = vrot.lane.b32.xlu0 %v1871, 12
        %v2063 = vpop.permute.xlu0 %2062
        %2064 = vrot.lane.b32.xlu0 %v1872, 12
        %v2065 = vpop.permute.xlu0 %2064
        %2066 = vrot.lane.b32.xlu0 %v2035, 12
        %v2067 = vpop.permute.xlu0 %2066
        %v2068 = vunpack.c.l.b16 %v1770
        %v2069 = vunpack.c.l.b16 %v1780
        %v2070 = vpack.c.b16 %v2069, %v2068
        %2071 = vrot.lane.b32.xlu0 %v1906, 16
        %v2072 = vpop.permute.xlu0 %2071
        %2073 = vrot.lane.b32.xlu0 %v1907, 16
        %v2074 = vpop.permute.xlu0 %2073
        %2075 = vrot.lane.b32.xlu0 %v1908, 16
        %v2076 = vpop.permute.xlu0 %2075
        %2077 = vrot.lane.b32.xlu0 %v1909, 16
        %v2078 = vpop.permute.xlu0 %2077
        %2079 = vrot.lane.b32.xlu0 %v1910, 16
        %v2080 = vpop.permute.xlu0 %2079
        %2081 = vrot.lane.b32.xlu0 %v1911, 16
        %v2082 = vpop.permute.xlu0 %2081
        %2083 = vrot.lane.b32.xlu0 %v1912, 16
        %v2084 = vpop.permute.xlu0 %2083
        %2085 = vrot.lane.b32.xlu0 %v1913, 16
        %v2086 = vpop.permute.xlu0 %2085
        %2087 = vrot.lane.b32.xlu0 %v1914, 16
        %v2088 = vpop.permute.xlu0 %2087
        %2089 = vrot.lane.b32.xlu0 %v1915, 16
        %v2090 = vpop.permute.xlu0 %2089
        %2091 = vrot.lane.b32.xlu0 %v1916, 16
        %v2092 = vpop.permute.xlu0 %2091
        %2093 = vrot.lane.b32.xlu0 %v1917, 16
        %v2094 = vpop.permute.xlu0 %2093
        %2095 = vrot.lane.b32.xlu0 %v1918, 16
        %v2096 = vpop.permute.xlu0 %2095
        %2097 = vrot.lane.b32.xlu0 %v1919, 16
        %v2098 = vpop.permute.xlu0 %2097
        %2099 = vrot.lane.b32.xlu0 %v1920, 16
        %v2100 = vpop.permute.xlu0 %2099
        %2101 = vrot.lane.b32.xlu0 %v2070, 16
        %v2102 = vpop.permute.xlu0 %2101
        %v2103 = vunpack.c.l.b16 %v1787
        %v2104 = vunpack.c.l.b16 %v1790
        %v2105 = vpack.c.b16 %v2104, %v2103
        %2106 = vrot.lane.b32.xlu0 %v1986, 20
        %v2107 = vpop.permute.xlu0 %2106
        %2108 = vrot.lane.b32.xlu0 %v1987, 20
        %v2109 = vpop.permute.xlu0 %2108
        %2110 = vrot.lane.b32.xlu0 %v1988, 20
        %v2111 = vpop.permute.xlu0 %2110
        %2112 = vrot.lane.b32.xlu0 %v1989, 20
        %v2113 = vpop.permute.xlu0 %2112
        %2114 = vrot.lane.b32.xlu0 %v1990, 20
        %v2115 = vpop.permute.xlu0 %2114
        %2116 = vrot.lane.b32.xlu0 %v1991, 20
        %v2117 = vpop.permute.xlu0 %2116
        %2118 = vrot.lane.b32.xlu0 %v1992, 20
        %v2119 = vpop.permute.xlu0 %2118
        %2120 = vrot.lane.b32.xlu0 %v1993, 20
        %v2121 = vpop.permute.xlu0 %2120
        %2122 = vrot.lane.b32.xlu0 %v1994, 20
        %v2123 = vpop.permute.xlu0 %2122
        %2124 = vrot.lane.b32.xlu0 %v1995, 20
        %v2125 = vpop.permute.xlu0 %2124
        %2126 = vrot.lane.b32.xlu0 %v1996, 20
        %v2127 = vpop.permute.xlu0 %2126
        %2128 = vrot.lane.b32.xlu0 %v1997, 20
        %v2129 = vpop.permute.xlu0 %2128
        %2130 = vrot.lane.b32.xlu0 %v1998, 20
        %v2131 = vpop.permute.xlu0 %2130
        %2132 = vrot.lane.b32.xlu0 %v1999, 20
        %v2133 = vpop.permute.xlu0 %2132
        %2134 = vrot.lane.b32.xlu0 %v2000, 20
        %v2135 = vpop.permute.xlu0 %2134
        %2136 = vrot.lane.b32.xlu0 %v2105, 20
        %v2137 = vpop.permute.xlu0 %2136
        %v2138 = vunpack.c.l.b16 %v1204
        %v2139 = vunpack.c.l.b16 %v1205
        %v2140 = vpack.c.b16 %v2139, %v2138
        %2141 = vrot.lane.b32.xlu0 %v1859, 24
        %v2142 = vpop.permute.xlu0 %2141
        %2143 = vrot.lane.b32.xlu0 %v1860, 24
        %v2144 = vpop.permute.xlu0 %2143
        %2145 = vrot.lane.b32.xlu0 %v1861, 24
        %v2146 = vpop.permute.xlu0 %2145
        %2147 = vrot.lane.b32.xlu0 %v1862, 24
        %v2148 = vpop.permute.xlu0 %2147
        %2149 = vrot.lane.b32.xlu0 %v1863, 24
        %v2150 = vpop.permute.xlu0 %2149
        %2151 = vrot.lane.b32.xlu0 %v1864, 24
        %v2152 = vpop.permute.xlu0 %2151
        %2153 = vrot.lane.b32.xlu0 %v1865, 24
        %v2154 = vpop.permute.xlu0 %2153
        %2155 = vrot.lane.b32.xlu0 %v1866, 24
        %v2156 = vpop.permute.xlu0 %2155
        %2157 = vrot.lane.b32.xlu0 %v1867, 24
        %v2158 = vpop.permute.xlu0 %2157
        %2159 = vrot.lane.b32.xlu0 %v1868, 24
        %v2160 = vpop.permute.xlu0 %2159
        %2161 = vrot.lane.b32.xlu0 %v1869, 24
        %v2162 = vpop.permute.xlu0 %2161
        %2163 = vrot.lane.b32.xlu0 %v1870, 24
        %v2164 = vpop.permute.xlu0 %2163
        %2165 = vrot.lane.b32.xlu0 %v1871, 24
        %v2166 = vpop.permute.xlu0 %2165
        %2167 = vrot.lane.b32.xlu0 %v1872, 24
        %v2168 = vpop.permute.xlu0 %2167
        %2169 = vrot.lane.b32.xlu0 %v2035, 24
        %v2170 = vpop.permute.xlu0 %2169
        %2171 = vrot.lane.b32.xlu0 %v2140, 24
        %v2172 = vpop.permute.xlu0 %2171
        %v2173 = vunpack.c.l.b16 %v1804
        %v2174 = vunpack.c.l.b16 %v1814
        %v2175 = vpack.c.b16 %v2174, %v2173
        %2176 = vrot.lane.b32.xlu0 %v1907, 28
        %v2177 = vpop.permute.xlu0 %2176
        %2178 = vrot.lane.b32.xlu0 %v1908, 28
        %v2179 = vpop.permute.xlu0 %2178
        %2180 = vrot.lane.b32.xlu0 %v1909, 28
        %v2181 = vpop.permute.xlu0 %2180
        %2182 = vrot.lane.b32.xlu0 %v1910, 28
        %v2183 = vpop.permute.xlu0 %2182
        %2184 = vrot.lane.b32.xlu0 %v1911, 28
        %v2185 = vpop.permute.xlu0 %2184
        %2186 = vrot.lane.b32.xlu0 %v1912, 28
        %v2187 = vpop.permute.xlu0 %2186
        %2188 = vrot.lane.b32.xlu0 %v1913, 28
        %v2189 = vpop.permute.xlu0 %2188
        %2190 = vrot.lane.b32.xlu0 %v1914, 28
        %v2191 = vpop.permute.xlu0 %2190
        %2192 = vrot.lane.b32.xlu0 %v1915, 28
        %v2193 = vpop.permute.xlu0 %2192
        %2194 = vrot.lane.b32.xlu0 %v1916, 28
        %v2195 = vpop.permute.xlu0 %2194
        %2196 = vrot.lane.b32.xlu0 %v1917, 28
        %v2197 = vpop.permute.xlu0 %2196
        %2198 = vrot.lane.b32.xlu0 %v1918, 28
        %v2199 = vpop.permute.xlu0 %2198
        %2200 = vrot.lane.b32.xlu0 %v1919, 28
        %v2201 = vpop.permute.xlu0 %2200
        %2202 = vrot.lane.b32.xlu0 %v1920, 28
        %v2203 = vpop.permute.xlu0 %2202
        %2204 = vrot.lane.b32.xlu0 %v2070, 28
        %v2205 = vpop.permute.xlu0 %2204
        %2206 = vrot.lane.b32.xlu0 %v2175, 28
        %v2207 = vpop.permute.xlu0 %2206
        %v2208 = vunpack.c.l.b16 %v1821
        %v2209 = vunpack.c.l.b16 %v1824
        %v2210 = vpack.c.b16 %v2209, %v2208
        %2211 = vrot.lane.b32.xlu0 %v1987, 32
        %v2212 = vpop.permute.xlu0 %2211
        %2213 = vrot.lane.b32.xlu0 %v1988, 32
        %v2214 = vpop.permute.xlu0 %2213
        %2215 = vrot.lane.b32.xlu0 %v1989, 32
        %v2216 = vpop.permute.xlu0 %2215
        %2217 = vrot.lane.b32.xlu0 %v1990, 32
        %v2218 = vpop.permute.xlu0 %2217
        %2219 = vrot.lane.b32.xlu0 %v1991, 32
        %v2220 = vpop.permute.xlu0 %2219
        %2221 = vrot.lane.b32.xlu0 %v1992, 32
        %v2222 = vpop.permute.xlu0 %2221
        %2223 = vrot.lane.b32.xlu0 %v1993, 32
        %v2224 = vpop.permute.xlu0 %2223
        %2225 = vrot.lane.b32.xlu0 %v1994, 32
        %v2226 = vpop.permute.xlu0 %2225
        %2227 = vrot.lane.b32.xlu0 %v1995, 32
        %v2228 = vpop.permute.xlu0 %2227
        %2229 = vrot.lane.b32.xlu0 %v1996, 32
        %v2230 = vpop.permute.xlu0 %2229
        %2231 = vrot.lane.b32.xlu0 %v1997, 32
        %v2232 = vpop.permute.xlu0 %2231
        %2233 = vrot.lane.b32.xlu0 %v1998, 32
        %v2234 = vpop.permute.xlu0 %2233
        %2235 = vrot.lane.b32.xlu0 %v1999, 32
        %v2236 = vpop.permute.xlu0 %2235
        %2237 = vrot.lane.b32.xlu0 %v2000, 32
        %v2238 = vpop.permute.xlu0 %2237
        %2239 = vrot.lane.b32.xlu0 %v2105, 32
        %v2240 = vpop.permute.xlu0 %2239
        %2241 = vrot.lane.b32.xlu0 %v2210, 32
        %v2242 = vpop.permute.xlu0 %2241
        %vm2243 = vcmask 31744
        %v2246 = vsel %vm2243, %v1857, %v1922
        %v2249 = vsel %vm2243, %v1858, %v1924
        %v2252 = vsel %vm2243, %v1859, %v1926
        %v2255 = vsel %vm2243, %v1860, %v1928
        %v2258 = vsel %vm2243, %v1861, %v1930
        %v2261 = vsel %vm2243, %v1862, %v1932
        %v2264 = vsel %vm2243, %v1863, %v1934
        %v2267 = vsel %vm2243, %v1864, %v1936
        %v2270 = vsel %vm2243, %v1865, %v1938
        %v2273 = vsel %vm2243, %v1866, %v1940
        %v2276 = vsel %vm2243, %v1867, %v1942
        %v2279 = vsel %vm2243, %v1868, %v1944
        %v2282 = vsel %vm2243, %v1869, %v1946
        %v2285 = vsel %vm2243, %v1870, %v1948
        %v2288 = vsel %vm2243, %v1871, %v1950
        %v2291 = vsel %vm2243, %v1872, %v1952
        %vm2292 = vcmask 64512
        %v2294 = vsel %vm2292, %v2246, %v2002
        %v2296 = vsel %vm2292, %v2249, %v2004
        %v2298 = vsel %vm2292, %v2252, %v2006
        %v2300 = vsel %vm2292, %v2255, %v2008
        %v2302 = vsel %vm2292, %v2258, %v2010
        %v2304 = vsel %vm2292, %v2261, %v2012
        %v2306 = vsel %vm2292, %v2264, %v2014
        %v2308 = vsel %vm2292, %v2267, %v2016
        %v2310 = vsel %vm2292, %v2270, %v2018
        %v2312 = vsel %vm2292, %v2273, %v2020
        %v2314 = vsel %vm2292, %v2276, %v2022
        %v2316 = vsel %vm2292, %v2279, %v2024
        %v2318 = vsel %vm2292, %v2282, %v2026
        %v2320 = vsel %vm2292, %v2285, %v2028
        %v2322 = vsel %vm2292, %v2288, %v2030
        %v2324 = vsel %vm2292, %v2291, %v2032
        %vm2325 = vcmask 97280
        %v2327 = vsel %vm2325, %v2294, %v2037
        %v2329 = vsel %vm2325, %v2296, %v2039
        %v2331 = vsel %vm2325, %v2298, %v2041
        %v2333 = vsel %vm2325, %v2300, %v2043
        %v2335 = vsel %vm2325, %v2302, %v2045
        %v2337 = vsel %vm2325, %v2304, %v2047
        %v2339 = vsel %vm2325, %v2306, %v2049
        %v2341 = vsel %vm2325, %v2308, %v2051
        %v2343 = vsel %vm2325, %v2310, %v2053
        %v2345 = vsel %vm2325, %v2312, %v2055
        %v2347 = vsel %vm2325, %v2314, %v2057
        %v2349 = vsel %vm2325, %v2316, %v2059
        %v2351 = vsel %vm2325, %v2318, %v2061
        %v2353 = vsel %vm2325, %v2320, %v2063
        %v2355 = vsel %vm2325, %v2322, %v2065
        %v2357 = vsel %vm2325, %v2324, %v2067
        %vm2358 = vcmask 130048
        %v2360 = vsel %vm2358, %v2327, %v2072
        %v2362 = vsel %vm2358, %v2329, %v2074
        %v2364 = vsel %vm2358, %v2331, %v2076
        %v2366 = vsel %vm2358, %v2333, %v2078
        %v2368 = vsel %vm2358, %v2335, %v2080
        %v2370 = vsel %vm2358, %v2337, %v2082
        %v2372 = vsel %vm2358, %v2339, %v2084
        %v2374 = vsel %vm2358, %v2341, %v2086
        %v2376 = vsel %vm2358, %v2343, %v2088
        %v2378 = vsel %vm2358, %v2345, %v2090
        %v2380 = vsel %vm2358, %v2347, %v2092
        %v2382 = vsel %vm2358, %v2349, %v2094
        %v2384 = vsel %vm2358, %v2351, %v2096
        %v2386 = vsel %vm2358, %v2353, %v2098
        %v2388 = vsel %vm2358, %v2355, %v2100
        %v2390 = vsel %vm2358, %v2357, %v2102
        %vm2391 = vcmask 162816
        %v2393 = vsel %vm2391, %v2360, %v2107
        %v2395 = vsel %vm2391, %v2362, %v2109
        %v2397 = vsel %vm2391, %v2364, %v2111
        %v2399 = vsel %vm2391, %v2366, %v2113
        %v2401 = vsel %vm2391, %v2368, %v2115
        %v2403 = vsel %vm2391, %v2370, %v2117
        %v2405 = vsel %vm2391, %v2372, %v2119
        %v2407 = vsel %vm2391, %v2374, %v2121
        %v2409 = vsel %vm2391, %v2376, %v2123
        %v2411 = vsel %vm2391, %v2378, %v2125
        %v2413 = vsel %vm2391, %v2380, %v2127
        %v2415 = vsel %vm2391, %v2382, %v2129
        %v2417 = vsel %vm2391, %v2384, %v2131
        %v2419 = vsel %vm2391, %v2386, %v2133
        %v2421 = vsel %vm2391, %v2388, %v2135
        %v2423 = vsel %vm2391, %v2390, %v2137
        %vm2424 = vcmask 195584
        %v2426 = vsel %vm2424, %v2393, %v2142
        %v2428 = vsel %vm2424, %v2395, %v2144
        %v2430 = vsel %vm2424, %v2397, %v2146
        %v2432 = vsel %vm2424, %v2399, %v2148
        %v2434 = vsel %vm2424, %v2401, %v2150
        %v2436 = vsel %vm2424, %v2403, %v2152
        %v2438 = vsel %vm2424, %v2405, %v2154
        %v2440 = vsel %vm2424, %v2407, %v2156
        %v2442 = vsel %vm2424, %v2409, %v2158
        %v2444 = vsel %vm2424, %v2411, %v2160
        %v2446 = vsel %vm2424, %v2413, %v2162
        %v2448 = vsel %vm2424, %v2415, %v2164
        %v2450 = vsel %vm2424, %v2417, %v2166
        %v2452 = vsel %vm2424, %v2419, %v2168
        %v2454 = vsel %vm2424, %v2421, %v2170
        %v2456 = vsel %vm2424, %v2423, %v2172
        %vm2457 = vcmask 228352
        %v2459 = vsel %vm2457, %v2426, %v2177
        %v2461 = vsel %vm2457, %v2428, %v2179
        %v2463 = vsel %vm2457, %v2430, %v2181
        %v2465 = vsel %vm2457, %v2432, %v2183
        %v2467 = vsel %vm2457, %v2434, %v2185
        %v2469 = vsel %vm2457, %v2436, %v2187
        %v2471 = vsel %vm2457, %v2438, %v2189
        %v2473 = vsel %vm2457, %v2440, %v2191
        %v2475 = vsel %vm2457, %v2442, %v2193
        %v2477 = vsel %vm2457, %v2444, %v2195
        %v2479 = vsel %vm2457, %v2446, %v2197
        %v2481 = vsel %vm2457, %v2448, %v2199
        %v2483 = vsel %vm2457, %v2450, %v2201
        %v2485 = vsel %vm2457, %v2452, %v2203
        %v2487 = vsel %vm2457, %v2454, %v2205
        %v2489 = vsel %vm2457, %v2456, %v2207
        %vm2490 = vcmask 261120
        %v2492 = vsel %vm2490, %v2459, %v2212
        %v2494 = vsel %vm2490, %v2461, %v2214
        %v2496 = vsel %vm2490, %v2463, %v2216
        %v2498 = vsel %vm2490, %v2465, %v2218
        %v2500 = vsel %vm2490, %v2467, %v2220
        %v2502 = vsel %vm2490, %v2469, %v2222
        %v2504 = vsel %vm2490, %v2471, %v2224
        %v2506 = vsel %vm2490, %v2473, %v2226
        %v2508 = vsel %vm2490, %v2475, %v2228
        %v2510 = vsel %vm2490, %v2477, %v2230
        %v2512 = vsel %vm2490, %v2479, %v2232
        %v2514 = vsel %vm2490, %v2481, %v2234
        %v2516 = vsel %vm2490, %v2483, %v2236
        %v2518 = vsel %vm2490, %v2485, %v2238
        %v2520 = vsel %vm2490, %v2487, %v2240
        %v2522 = vsel %vm2490, %v2489, %v2242
        %v2539 = vunpack.c.l.b16 %v2492
        %v2540 = vunpack.c.h.b16 %v2492
        %v2541 = vunpack.c.l.b16 %v2494
        %v2542 = vunpack.c.h.b16 %v2494
        %v2543 = vunpack.c.l.b16 %v2496
        %v2544 = vunpack.c.h.b16 %v2496
        %v2545 = vunpack.c.l.b16 %v2498
        %v2546 = vunpack.c.h.b16 %v2498
        %v2547 = vunpack.c.l.b16 %v2500
        %v2548 = vunpack.c.h.b16 %v2500
        %v2549 = vunpack.c.l.b16 %v2502
        %v2550 = vunpack.c.h.b16 %v2502
        %v2551 = vunpack.c.l.b16 %v2504
        %v2552 = vunpack.c.h.b16 %v2504
        %v2553 = vunpack.c.l.b16 %v2506
        %v2554 = vunpack.c.h.b16 %v2506
        %v2555 = vunpack.c.l.b16 %v2508
        %v2556 = vunpack.c.h.b16 %v2508
        %v2557 = vunpack.c.l.b16 %v2510
        %v2558 = vunpack.c.h.b16 %v2510
        %v2559 = vunpack.c.l.b16 %v2512
        %v2560 = vunpack.c.h.b16 %v2512
        %v2561 = vunpack.c.l.b16 %v2514
        %v2562 = vunpack.c.h.b16 %v2514
        %v2563 = vunpack.c.l.b16 %v2516
        %v2564 = vunpack.c.h.b16 %v2516
        %v2565 = vunpack.c.l.b16 %v2518
        %v2566 = vunpack.c.h.b16 %v2518
        %v2567 = vunpack.c.l.b16 %v2520
        %v2568 = vunpack.c.h.b16 %v2520
        %v2569 = vunpack.c.l.b16 %v2522
        %v2570 = vunpack.c.h.b16 %v2522
        %v2571 = vpack.c.b16 %v2539, %v2539
        %v2572 = vpack.c.b16 %v2540, %v2540
        %v2573 = vpack.c.b16 %v2541, %v2541
        %v2574 = vpack.c.b16 %v2542, %v2542
        %v2575 = vpack.c.b16 %v2543, %v2543
        %v2576 = vpack.c.b16 %v2544, %v2544
        %v2577 = vpack.c.b16 %v2545, %v2545
        %v2578 = vpack.c.b16 %v2546, %v2546
        %v2579 = vpack.c.b16 %v2547, %v2547
        %v2580 = vpack.c.b16 %v2548, %v2548
        %v2581 = vpack.c.b16 %v2549, %v2549
        %v2582 = vpack.c.b16 %v2550, %v2550
        %v2583 = vpack.c.b16 %v2551, %v2551
        %v2584 = vpack.c.b16 %v2552, %v2552
        %v2585 = vpack.c.b16 %v2553, %v2553
        %v2586 = vpack.c.b16 %v2554, %v2554
        %v2587 = vpack.c.b16 %v2555, %v2555
        %v2588 = vpack.c.b16 %v2556, %v2556
        %v2589 = vpack.c.b16 %v2557, %v2557
        %v2590 = vpack.c.b16 %v2558, %v2558
        %v2591 = vpack.c.b16 %v2559, %v2559
        %v2592 = vpack.c.b16 %v2560, %v2560
        %v2593 = vpack.c.b16 %v2561, %v2561
        %v2594 = vpack.c.b16 %v2562, %v2562
        %v2595 = vpack.c.b16 %v2563, %v2563
        %v2596 = vpack.c.b16 %v2564, %v2564
        %v2597 = vpack.c.b16 %v2565, %v2565
        %v2598 = vpack.c.b16 %v2566, %v2566
        %v2599 = vpack.c.b16 %v2567, %v2567
        %v2600 = vpack.c.b16 %v2568, %v2568
        %v2601 = vpack.c.b16 %v2569, %v2569
        %v2602 = vpack.c.b16 %v2570, %v2570
        %vm2635 = vcmask 289792
        %2636 = vst.msk [vmem:[#allocation3] sm:$0xf] %vm2635, %v2571
        %2637 = vst.msk [vmem:[#allocation3 + $0x4] sm:$0xf] %vm2635, %v2572
        %2638 = vst.msk [vmem:[#allocation3 + $0x8] sm:$0xf] %vm2635, %v2573
        %2639 = vst.msk [vmem:[#allocation3 + $0xc] sm:$0xf] %vm2635, %v2574
        %2640 = vst.msk [vmem:[#allocation3 + $0x10] sm:$0xf] %vm2635, %v2575
        %2641 = vst.msk [vmem:[#allocation3 + $0x14] sm:$0xf] %vm2635, %v2576
        %2642 = vst.msk [vmem:[#allocation3 + $0x18] sm:$0xf] %vm2635, %v2577
        %2643 = vst.msk [vmem:[#allocation3 + $0x1c] sm:$0xf] %vm2635, %v2578
        %2644 = vst.msk [vmem:[#allocation3 + $0x20] sm:$0xf] %vm2635, %v2579
        %2645 = vst.msk [vmem:[#allocation3 + $0x24] sm:$0xf] %vm2635, %v2580
        %2646 = vst.msk [vmem:[#allocation3 + $0x28] sm:$0xf] %vm2635, %v2581
        %2647 = vst.msk [vmem:[#allocation3 + $0x2c] sm:$0xf] %vm2635, %v2582
        %2648 = vst.msk [vmem:[#allocation3 + $0x30] sm:$0xf] %vm2635, %v2583
        %2649 = vst.msk [vmem:[#allocation3 + $0x34] sm:$0xf] %vm2635, %v2584
        %2650 = vst.msk [vmem:[#allocation3 + $0x38] sm:$0xf] %vm2635, %v2585
        %2651 = vst.msk [vmem:[#allocation3 + $0x3c] sm:$0xf] %vm2635, %v2586
        %2652 = vst.msk [vmem:[#allocation3 + $0x40] sm:$0xf] %vm2635, %v2587
        %2653 = vst.msk [vmem:[#allocation3 + $0x44] sm:$0xf] %vm2635, %v2588
        %2654 = vst.msk [vmem:[#allocation3 + $0x48] sm:$0xf] %vm2635, %v2589
        %2655 = vst.msk [vmem:[#allocation3 + $0x4c] sm:$0xf] %vm2635, %v2590
        %2656 = vst.msk [vmem:[#allocation3 + $0x50] sm:$0xf] %vm2635, %v2591
        %2657 = vst.msk [vmem:[#allocation3 + $0x54] sm:$0xf] %vm2635, %v2592
        %2658 = vst.msk [vmem:[#allocation3 + $0x58] sm:$0xf] %vm2635, %v2593
        %2659 = vst.msk [vmem:[#allocation3 + $0x5c] sm:$0xf] %vm2635, %v2594
        %2660 = vst.msk [vmem:[#allocation3 + $0x60] sm:$0xf] %vm2635, %v2595
        %2661 = vst.msk [vmem:[#allocation3 + $0x64] sm:$0xf] %vm2635, %v2596
        %2662 = vst.msk [vmem:[#allocation3 + $0x68] sm:$0xf] %vm2635, %v2597
        %2663 = vst.msk [vmem:[#allocation3 + $0x6c] sm:$0xf] %vm2635, %v2598
        %2664 = vst.msk [vmem:[#allocation3 + $0x70] sm:$0xf] %vm2635, %v2599
        %2665 = vst.msk [vmem:[#allocation3 + $0x74] sm:$0xf] %vm2635, %v2600
        %2666 = vst.msk [vmem:[#allocation3 + $0x78] sm:$0xf] %vm2635, %v2601
        %2667 = vst.msk [vmem:[#allocation3 + $0x7c] sm:$0xf] %vm2635, %v2602
      $region48: #{wide_basic_block_q_forward.2} parent=43 // pred_fallthru
        _
      %v2668 = vld [vmem:[#allocation3] sm:$0xf]
      %v2669 = vld [vmem:[#allocation3 + $0x4] sm:$0xf]
      %v2670 = vld [vmem:[#allocation3 + $0x8] sm:$0xf]
      %v2671 = vld [vmem:[#allocation3 + $0xc] sm:$0xf]
      %v2672 = vld [vmem:[#allocation3 + $0x10] sm:$0xf]
      %v2673 = vld [vmem:[#allocation3 + $0x14] sm:$0xf]
      %v2674 = vld [vmem:[#allocation3 + $0x18] sm:$0xf]
      %v2675 = vld [vmem:[#allocation3 + $0x1c] sm:$0xf]
      %v2676 = vld [vmem:[#allocation3 + $0x20] sm:$0xf]
      %v2677 = vld [vmem:[#allocation3 + $0x24] sm:$0xf]
      %v2678 = vld [vmem:[#allocation3 + $0x28] sm:$0xf]
      %v2679 = vld [vmem:[#allocation3 + $0x2c] sm:$0xf]
      %v2680 = vld [vmem:[#allocation3 + $0x30] sm:$0xf]
      %v2681 = vld [vmem:[#allocation3 + $0x34] sm:$0xf]
      %v2682 = vld [vmem:[#allocation3 + $0x38] sm:$0xf]
      %v2683 = vld [vmem:[#allocation3 + $0x3c] sm:$0xf]
      %v2684 = vld [vmem:[#allocation3 + $0x40] sm:$0xf]
      %v2685 = vld [vmem:[#allocation3 + $0x44] sm:$0xf]
      %v2686 = vld [vmem:[#allocation3 + $0x48] sm:$0xf]
      %v2687 = vld [vmem:[#allocation3 + $0x4c] sm:$0xf]
      %v2688 = vld [vmem:[#allocation3 + $0x50] sm:$0xf]
      %v2689 = vld [vmem:[#allocation3 + $0x54] sm:$0xf]
      %v2690 = vld [vmem:[#allocation3 + $0x58] sm:$0xf]
      %v2691 = vld [vmem:[#allocation3 + $0x5c] sm:$0xf]
      %v2692 = vld [vmem:[#allocation3 + $0x60] sm:$0xf]
      %v2693 = vld [vmem:[#allocation3 + $0x64] sm:$0xf]
      %v2694 = vld [vmem:[#allocation3 + $0x68] sm:$0xf]
      %v2695 = vld [vmem:[#allocation3 + $0x6c] sm:$0xf]
      %v2696 = vld [vmem:[#allocation3 + $0x70] sm:$0xf]
      %v2697 = vld [vmem:[#allocation3 + $0x74] sm:$0xf]
      %v2698 = vld [vmem:[#allocation3 + $0x78] sm:$0xf]
      %v2699 = vld [vmem:[#allocation3 + $0x7c] sm:$0xf]
      %v2700 = vld [vmem:[%s302] sm:$0xf]
      %v2701 = vld [vmem:[%s302 + $0x4] sm:$0xf]
      %v2702 = vld [vmem:[%s302 + $0x8] sm:$0xf]
      %v2703 = vld [vmem:[%s302 + $0xc] sm:$0xf]
      %v2704 = vld [vmem:[%s302 + $0x10] sm:$0x3]
      %v2737 = vunpack.c.l.b16 %v2668
      %v2738 = vunpack.c.l.b16 %v2669
      %v2739 = vunpack.c.l.b16 %v2670
      %v2740 = vunpack.c.l.b16 %v2671
      %v2741 = vunpack.c.l.b16 %v2672
      %v2742 = vunpack.c.l.b16 %v2673
      %v2743 = vunpack.c.l.b16 %v2674
      %v2744 = vunpack.c.l.b16 %v2675
      %v2745 = vunpack.c.l.b16 %v2676
      %v2746 = vunpack.c.l.b16 %v2677
      %v2747 = vunpack.c.l.b16 %v2678
      %v2748 = vunpack.c.l.b16 %v2679
      %v2749 = vunpack.c.l.b16 %v2680
      %v2750 = vunpack.c.l.b16 %v2681
      %v2751 = vunpack.c.l.b16 %v2682
      %v2752 = vunpack.c.l.b16 %v2683
      %v2753 = vunpack.c.l.b16 %v2684
      %v2754 = vunpack.c.l.b16 %v2685
      %v2755 = vunpack.c.l.b16 %v2686
      %v2756 = vunpack.c.l.b16 %v2687
      %v2757 = vunpack.c.l.b16 %v2688
      %v2758 = vunpack.c.l.b16 %v2689
      %v2759 = vunpack.c.l.b16 %v2690
      %v2760 = vunpack.c.l.b16 %v2691
      %v2761 = vunpack.c.l.b16 %v2692
      %v2762 = vunpack.c.l.b16 %v2693
      %v2763 = vunpack.c.l.b16 %v2694
      %v2764 = vunpack.c.l.b16 %v2695
      %v2765 = vunpack.c.l.b16 %v2696
      %v2766 = vunpack.c.l.b16 %v2697
      %v2767 = vunpack.c.l.b16 %v2698
      %v2768 = vunpack.c.l.b16 %v2699
      %v2769 = vpack.c.b16 %v2738, %v2737
      %v2770 = vpack.c.b16 %v2740, %v2739
      %v2771 = vpack.c.b16 %v2742, %v2741
      %v2772 = vpack.c.b16 %v2744, %v2743
      %v2773 = vpack.c.b16 %v2746, %v2745
      %v2774 = vpack.c.b16 %v2748, %v2747
      %v2775 = vpack.c.b16 %v2750, %v2749
      %v2776 = vpack.c.b16 %v2752, %v2751
      %v2777 = vpack.c.b16 %v2754, %v2753
      %v2778 = vpack.c.b16 %v2756, %v2755
      %v2779 = vpack.c.b16 %v2758, %v2757
      %v2780 = vpack.c.b16 %v2760, %v2759
      %v2781 = vpack.c.b16 %v2762, %v2761
      %v2782 = vpack.c.b16 %v2764, %v2763
      %v2783 = vpack.c.b16 %v2766, %v2765
      %v2784 = vpack.c.b16 %v2768, %v2767
      %v2790 = vunpack.c.l.b16 %v2700
      %v2791 = vunpack.c.l.b16 %v2701
      %v2792 = vunpack.c.l.b16 %v2702
      %v2793 = vunpack.c.l.b16 %v2703
      %v2794 = vunpack.c.l.b16 %v2704
      %v2795 = vpack.c.b16 %v2791, %v2790
      %v2796 = vpack.c.b16 %v2793, %v2792
      %v2797 = vpack.c.b16 %v2794, %v2794
      %vm2800 = vcmask 293888
      %v2802 = vsel %vm2800, %v2769, 0
      %v2805 = vsel %vm2800, %v2770, 0
      %v2808 = vsel %vm2800, %v2771, 0
      %v2811 = vsel %vm2800, %v2772, 0
      %v2814 = vsel %vm2800, %v2773, 0
      %v2817 = vsel %vm2800, %v2774, 0
      %v2820 = vsel %vm2800, %v2775, 0
      %v2823 = vsel %vm2800, %v2776, 0
      %v2826 = vsel %vm2800, %v2777, 0
      %v2829 = vsel %vm2800, %v2778, 0
      %v2832 = vsel %vm2800, %v2779, 0
      %v2835 = vsel %vm2800, %v2780, 0
      %v2838 = vsel %vm2800, %v2781, 0
      %v2841 = vsel %vm2800, %v2782, 0
      %v2844 = vsel %vm2800, %v2783, 0
      %v2847 = vsel %vm2800, %v2784, 0
      %vm2849 = vcmask 1041408
      %v2851 = vsel %vm2849, %v2797, 0
      %2853 = vmatprep.subr.bf16.mxu0 0
      %2854 = vmatpush1.bf16.msra.mxu0 0
      %2855 = vmatprep.subr.bf16.mxu0 0
      %2856 = vmatpush1.bf16.msra.mxu0 0
      %2857 = vmatprep.subr.bf16.mxu0 0
      %2858 = vmatpush1.bf16.msra.mxu0 0
      %2859 = vmatprep.subr.bf16.mxu0 0
      %2860 = vmatpush1.bf16.msra.mxu0 0
      %2861 = vmatprep.subr.bf16.mxu0 0
      %2862 = vmatpush1.bf16.msra.mxu0 0
      %2863 = vmatprep.subr.bf16.mxu0 0
      %2864 = vmatpush1.bf16.msra.mxu0 %v2851
      %2865 = vmatprep.subr.bf16.mxu0 0
      %2866 = vmatpush1.bf16.msra.mxu0 %v2796
      %2867 = vmatprep.subr.bf16.mxu0 0
      %2868 = vmatpush1.bf16.msra.mxu0 %v2795
      %2869 = vmatprep.subr.bf16.mxu0 0
      %2870 = vmatpush2.bf16.msra.mxu0 0
      %2871 = vmatprep.subr.bf16.mxu0 0
      %2872 = vmatpush2.bf16.msra.mxu0 0
      %2873 = vmatprep.subr.bf16.mxu0 0
      %2874 = vmatpush2.bf16.msra.mxu0 0
      %2875 = vmatprep.subr.bf16.mxu0 0
      %2876 = vmatpush2.bf16.msra.mxu0 0
      %2877 = vmatprep.subr.bf16.mxu0 0
      %2878 = vmatpush2.bf16.msra.mxu0 0
      %2879 = vmatprep.subr.bf16.mxu0 0
      %2880 = vmatpush2.bf16.msra.mxu0 0
      %2881 = vmatprep.subr.bf16.mxu0 0
      %2882 = vmatpush2.bf16.msra.mxu0 0
      %2883 = vmatprep.subr.bf16.mxu0 0
      %2884 = vmatpush2.bf16.msra.mxu0 0
      %2885 = vmatprep.mubr.bf16.mxu0 0
      %2886 = vmatmul.mubr.bf16.gmra.mxu0 %v2802
      %v2887 = vpop.f32.mrf.mxu0
      %v2888 = vadd.f32 0.0, %v2887
      %v2889 = vpop.f32.mrf.mxu0
      %v2890 = vpop.f32.mrf.mxu0
      %v2891 = vadd.f32 0.0, %v2890
      %v2892 = vpop.f32.mrf.mxu0
      %2893 = vmatprep.mubr.bf16.mxu0 0
      %2894 = vmatmul.mubr.bf16.gmra.mxu0 %v2805
      %v2895 = vpop.f32.mrf.mxu0
      %v2896 = vadd.f32 0.0, %v2895
      %v2897 = vpop.f32.mrf.mxu0
      %v2898 = vpop.f32.mrf.mxu0
      %v2899 = vadd.f32 0.0, %v2898
      %v2900 = vpop.f32.mrf.mxu0
      %2901 = vmatprep.mubr.bf16.mxu0 0
      %2902 = vmatmul.mubr.bf16.gmra.mxu0 %v2808
      %v2903 = vpop.f32.mrf.mxu0
      %v2904 = vadd.f32 0.0, %v2903
      %v2905 = vpop.f32.mrf.mxu0
      %v2906 = vpop.f32.mrf.mxu0
      %v2907 = vadd.f32 0.0, %v2906
      %v2908 = vpop.f32.mrf.mxu0
      %2909 = vmatprep.mubr.bf16.mxu0 0
      %2910 = vmatmul.mubr.bf16.gmra.mxu0 %v2811
      %v2911 = vpop.f32.mrf.mxu0
      %v2912 = vadd.f32 0.0, %v2911
      %v2913 = vpop.f32.mrf.mxu0
      %v2914 = vpop.f32.mrf.mxu0
      %v2915 = vadd.f32 0.0, %v2914
      %v2916 = vpop.f32.mrf.mxu0
      %2917 = vmatprep.mubr.bf16.mxu0 0
      %2918 = vmatmul.mubr.bf16.gmra.mxu0 %v2814
      %v2919 = vpop.f32.mrf.mxu0
      %v2920 = vadd.f32 0.0, %v2919
      %v2921 = vpop.f32.mrf.mxu0
      %v2922 = vpop.f32.mrf.mxu0
      %v2923 = vadd.f32 0.0, %v2922
      %v2924 = vpop.f32.mrf.mxu0
      %2925 = vmatprep.mubr.bf16.mxu0 0
      %2926 = vmatmul.mubr.bf16.gmra.mxu0 %v2817
      %v2927 = vpop.f32.mrf.mxu0
      %v2928 = vadd.f32 0.0, %v2927
      %v2929 = vpop.f32.mrf.mxu0
      %v2930 = vpop.f32.mrf.mxu0
      %v2931 = vadd.f32 0.0, %v2930
      %v2932 = vpop.f32.mrf.mxu0
      %2933 = vmatprep.mubr.bf16.mxu0 0
      %2934 = vmatmul.mubr.bf16.gmra.mxu0 %v2820
      %v2935 = vpop.f32.mrf.mxu0
      %v2936 = vadd.f32 0.0, %v2935
      %v2937 = vpop.f32.mrf.mxu0
      %v2938 = vpop.f32.mrf.mxu0
      %v2939 = vadd.f32 0.0, %v2938
      %v2940 = vpop.f32.mrf.mxu0
      %2941 = vmatprep.mubr.bf16.mxu0 0
      %2942 = vmatmul.mubr.bf16.gmra.mxu0 %v2823
      %v2943 = vpop.f32.mrf.mxu0
      %v2944 = vadd.f32 0.0, %v2943
      %v2945 = vpop.f32.mrf.mxu0
      %v2946 = vpop.f32.mrf.mxu0
      %v2947 = vadd.f32 0.0, %v2946
      %v2948 = vpop.f32.mrf.mxu0
      %2949 = vmatprep.mubr.bf16.mxu0 0
      %2950 = vmatmul.mubr.bf16.gmra.mxu0 %v2826
      %v2951 = vpop.f32.mrf.mxu0
      %v2952 = vadd.f32 0.0, %v2951
      %v2953 = vpop.f32.mrf.mxu0
      %v2954 = vpop.f32.mrf.mxu0
      %v2955 = vadd.f32 0.0, %v2954
      %v2956 = vpop.f32.mrf.mxu0
      %2957 = vmatprep.mubr.bf16.mxu0 0
      %2958 = vmatmul.mubr.bf16.gmra.mxu0 %v2829
      %v2959 = vpop.f32.mrf.mxu0
      %v2960 = vadd.f32 0.0, %v2959
      %v2961 = vpop.f32.mrf.mxu0
      %v2962 = vpop.f32.mrf.mxu0
      %v2963 = vadd.f32 0.0, %v2962
      %v2964 = vpop.f32.mrf.mxu0
      %2965 = vmatprep.mubr.bf16.mxu0 0
      %2966 = vmatmul.mubr.bf16.gmra.mxu0 %v2832
      %v2967 = vpop.f32.mrf.mxu0
      %v2968 = vadd.f32 0.0, %v2967
      %v2969 = vpop.f32.mrf.mxu0
      %v2970 = vpop.f32.mrf.mxu0
      %v2971 = vadd.f32 0.0, %v2970
      %v2972 = vpop.f32.mrf.mxu0
      %2973 = vmatprep.mubr.bf16.mxu0 0
      %2974 = vmatmul.mubr.bf16.gmra.mxu0 %v2835
      %v2975 = vpop.f32.mrf.mxu0
      %v2976 = vadd.f32 0.0, %v2975
      %v2977 = vpop.f32.mrf.mxu0
      %v2978 = vpop.f32.mrf.mxu0
      %v2979 = vadd.f32 0.0, %v2978
      %v2980 = vpop.f32.mrf.mxu0
      %2981 = vmatprep.mubr.bf16.mxu0 0
      %2982 = vmatmul.mubr.bf16.gmra.mxu0 %v2838
      %v2983 = vpop.f32.mrf.mxu0
      %v2984 = vadd.f32 0.0, %v2983
      %v2985 = vpop.f32.mrf.mxu0
      %v2986 = vpop.f32.mrf.mxu0
      %v2987 = vadd.f32 0.0, %v2986
      %v2988 = vpop.f32.mrf.mxu0
      %2989 = vmatprep.mubr.bf16.mxu0 0
      %2990 = vmatmul.mubr.bf16.gmra.mxu0 %v2841
      %v2991 = vpop.f32.mrf.mxu0
      %v2992 = vadd.f32 0.0, %v2991
      %v2993 = vpop.f32.mrf.mxu0
      %v2994 = vpop.f32.mrf.mxu0
      %v2995 = vadd.f32 0.0, %v2994
      %v2996 = vpop.f32.mrf.mxu0
      %2997 = vmatprep.mubr.bf16.mxu0 0
      %2998 = vmatmul.mubr.bf16.gmra.mxu0 %v2844
      %v2999 = vpop.f32.mrf.mxu0
      %v3000 = vadd.f32 0.0, %v2999
      %v3001 = vpop.f32.mrf.mxu0
      %v3002 = vpop.f32.mrf.mxu0
      %v3003 = vadd.f32 0.0, %v3002
      %v3004 = vpop.f32.mrf.mxu0
      %3005 = vmatprep.mubr.bf16.mxu0 0
      %3006 = vmatmul.mubr.bf16.gmra.mxu0 %v2847
      %v3007 = vpop.f32.mrf.mxu0
      %v3008 = vadd.f32 0.0, %v3007
      %v3009 = vpop.f32.mrf.mxu0
      %v3010 = vpop.f32.mrf.mxu0
      %v3011 = vadd.f32 0.0, %v3010
      %v3012 = vpop.f32.mrf.mxu0
      %3013 = vdwg.mxu0
      %v3014 = vmul.f32 %v2888, 0.0044444446
      %v3015 = vmul.f32 %v2891, 0.0044444446
      %v3016 = vmul.f32 %v2896, 0.0044444446
      %v3017 = vmul.f32 %v2899, 0.0044444446
      %v3018 = vmul.f32 %v2904, 0.0044444446
      %v3019 = vmul.f32 %v2907, 0.0044444446
      %v3020 = vmul.f32 %v2912, 0.0044444446
      %v3021 = vmul.f32 %v2915, 0.0044444446
      %v3022 = vmul.f32 %v2920, 0.0044444446
      %v3023 = vmul.f32 %v2923, 0.0044444446
      %v3024 = vmul.f32 %v2928, 0.0044444446
      %v3025 = vmul.f32 %v2931, 0.0044444446
      %v3026 = vmul.f32 %v2936, 0.0044444446
      %v3027 = vmul.f32 %v2939, 0.0044444446
      %v3028 = vmul.f32 %v2944, 0.0044444446
      %v3029 = vmul.f32 %v2947, 0.0044444446
      %v3030 = vmul.f32 %v2952, 0.0044444446
      %v3031 = vmul.f32 %v2955, 0.0044444446
      %v3032 = vmul.f32 %v2960, 0.0044444446
      %v3033 = vmul.f32 %v2963, 0.0044444446
      %v3034 = vmul.f32 %v2968, 0.0044444446
      %v3035 = vmul.f32 %v2971, 0.0044444446
      %v3036 = vmul.f32 %v2976, 0.0044444446
      %v3037 = vmul.f32 %v2979, 0.0044444446
      %v3038 = vmul.f32 %v2984, 0.0044444446
      %v3039 = vmul.f32 %v2987, 0.0044444446
      %v3040 = vmul.f32 %v2992, 0.0044444446
      %v3041 = vmul.f32 %v2995, 0.0044444446
      %v3042 = vmul.f32 %v3000, 0.0044444446
      %v3043 = vmul.f32 %v3003, 0.0044444446
      %v3044 = vmul.f32 %v3008, 0.0044444446
      %v3045 = vmul.f32 %v3011, 0.0044444446
      %v3046 = vld [vmem:[%s305] sm:$0x1]
      %v3048 = vlaneseq
      %v3049 = vshrl.u32 %v3048, 7
      %v3050 = vsub.s32 0, %v3049
      %v3051 = vrot.slane %v3046, %v3050
      %v3053 = vmul.f32 %v3014, %v3051
      %v3054 = vmul.f32 %v3015, %v3051
      %v3055 = vmul.f32 %v3016, %v3051
      %v3056 = vmul.f32 %v3017, %v3051
      %v3057 = vmul.f32 %v3018, %v3051
      %v3058 = vmul.f32 %v3019, %v3051
      %v3059 = vmul.f32 %v3020, %v3051
      %v3060 = vmul.f32 %v3021, %v3051
      %v3061 = vmul.f32 %v3022, %v3051
      %v3062 = vmul.f32 %v3023, %v3051
      %v3063 = vmul.f32 %v3024, %v3051
      %v3064 = vmul.f32 %v3025, %v3051
      %v3065 = vmul.f32 %v3026, %v3051
      %v3066 = vmul.f32 %v3027, %v3051
      %v3067 = vmul.f32 %v3028, %v3051
      %v3068 = vmul.f32 %v3029, %v3051
      %v3069 = vmul.f32 %v3030, %v3051
      %v3070 = vmul.f32 %v3031, %v3051
      %v3071 = vmul.f32 %v3032, %v3051
      %v3072 = vmul.f32 %v3033, %v3051
      %v3073 = vmul.f32 %v3034, %v3051
      %v3074 = vmul.f32 %v3035, %v3051
      %v3075 = vmul.f32 %v3036, %v3051
      %v3076 = vmul.f32 %v3037, %v3051
      %v3077 = vmul.f32 %v3038, %v3051
      %v3078 = vmul.f32 %v3039, %v3051
      %v3079 = vmul.f32 %v3040, %v3051
      %v3080 = vmul.f32 %v3041, %v3051
      %v3081 = vmul.f32 %v3042, %v3051
      %v3082 = vmul.f32 %v3043, %v3051
      %v3083 = vmul.f32 %v3044, %v3051
      %v3084 = vmul.f32 %v3045, %v3051
      %v3085 = vld [vmem:[%s308] sm:$0x1]
      %v3087 = vlaneseq
      %v3088 = vshrl.u32 %v3087, 7
      %v3089 = vsub.s32 0, %v3088
      %v3090 = vrot.slane %v3085, %v3089
      %v3092 = vadd.f32 %v3053, %v3090
      %v3093 = vadd.f32 %v3054, %v3090
      %v3094 = vadd.f32 %v3055, %v3090
      %v3095 = vadd.f32 %v3056, %v3090
      %v3096 = vadd.f32 %v3057, %v3090
      %v3097 = vadd.f32 %v3058, %v3090
      %v3098 = vadd.f32 %v3059, %v3090
      %v3099 = vadd.f32 %v3060, %v3090
      %v3100 = vadd.f32 %v3061, %v3090
      %v3101 = vadd.f32 %v3062, %v3090
      %v3102 = vadd.f32 %v3063, %v3090
      %v3103 = vadd.f32 %v3064, %v3090
      %v3104 = vadd.f32 %v3065, %v3090
      %v3105 = vadd.f32 %v3066, %v3090
      %v3106 = vadd.f32 %v3067, %v3090
      %v3107 = vadd.f32 %v3068, %v3090
      %v3108 = vadd.f32 %v3069, %v3090
      %v3109 = vadd.f32 %v3070, %v3090
      %v3110 = vadd.f32 %v3071, %v3090
      %v3111 = vadd.f32 %v3072, %v3090
      %v3112 = vadd.f32 %v3073, %v3090
      %v3113 = vadd.f32 %v3074, %v3090
      %v3114 = vadd.f32 %v3075, %v3090
      %v3115 = vadd.f32 %v3076, %v3090
      %v3116 = vadd.f32 %v3077, %v3090
      %v3117 = vadd.f32 %v3078, %v3090
      %v3118 = vadd.f32 %v3079, %v3090
      %v3119 = vadd.f32 %v3080, %v3090
      %v3120 = vadd.f32 %v3081, %v3090
      %v3121 = vadd.f32 %v3082, %v3090
      %v3122 = vadd.f32 %v3083, %v3090
      %v3123 = vadd.f32 %v3084, %v3090
      %v3124 = vmax.f32 %v3092, 0.0
      %v3125 = vmax.f32 %v3093, 0.0
      %v3126 = vmax.f32 %v3094, 0.0
      %v3127 = vmax.f32 %v3095, 0.0
      %v3128 = vmax.f32 %v3096, 0.0
      %v3129 = vmax.f32 %v3097, 0.0
      %v3130 = vmax.f32 %v3098, 0.0
      %v3131 = vmax.f32 %v3099, 0.0
      %v3132 = vmax.f32 %v3100, 0.0
      %v3133 = vmax.f32 %v3101, 0.0
      %v3134 = vmax.f32 %v3102, 0.0
      %v3135 = vmax.f32 %v3103, 0.0
      %v3136 = vmax.f32 %v3104, 0.0
      %v3137 = vmax.f32 %v3105, 0.0
      %v3138 = vmax.f32 %v3106, 0.0
      %v3139 = vmax.f32 %v3107, 0.0
      %v3140 = vmax.f32 %v3108, 0.0
      %v3141 = vmax.f32 %v3109, 0.0
      %v3142 = vmax.f32 %v3110, 0.0
      %v3143 = vmax.f32 %v3111, 0.0
      %v3144 = vmax.f32 %v3112, 0.0
      %v3145 = vmax.f32 %v3113, 0.0
      %v3146 = vmax.f32 %v3114, 0.0
      %v3147 = vmax.f32 %v3115, 0.0
      %v3148 = vmax.f32 %v3116, 0.0
      %v3149 = vmax.f32 %v3117, 0.0
      %v3150 = vmax.f32 %v3118, 0.0
      %v3151 = vmax.f32 %v3119, 0.0
      %v3152 = vmax.f32 %v3120, 0.0
      %v3153 = vmax.f32 %v3121, 0.0
      %v3154 = vmax.f32 %v3122, 0.0
      %v3155 = vmax.f32 %v3123, 0.0
      %v3156 = vmin.f32 %v3124, 1.0
      %v3157 = vmin.f32 %v3125, 1.0
      %v3158 = vmin.f32 %v3126, 1.0
      %v3159 = vmin.f32 %v3127, 1.0
      %v3160 = vmin.f32 %v3128, 1.0
      %v3161 = vmin.f32 %v3129, 1.0
      %v3162 = vmin.f32 %v3130, 1.0
      %v3163 = vmin.f32 %v3131, 1.0
      %v3164 = vmin.f32 %v3132, 1.0
      %v3165 = vmin.f32 %v3133, 1.0
      %v3166 = vmin.f32 %v3134, 1.0
      %v3167 = vmin.f32 %v3135, 1.0
      %v3168 = vmin.f32 %v3136, 1.0
      %v3169 = vmin.f32 %v3137, 1.0
      %v3170 = vmin.f32 %v3138, 1.0
      %v3171 = vmin.f32 %v3139, 1.0
      %v3172 = vmin.f32 %v3140, 1.0
      %v3173 = vmin.f32 %v3141, 1.0
      %v3174 = vmin.f32 %v3142, 1.0
      %v3175 = vmin.f32 %v3143, 1.0
      %v3176 = vmin.f32 %v3144, 1.0
      %v3177 = vmin.f32 %v3145, 1.0
      %v3178 = vmin.f32 %v3146, 1.0
      %v3179 = vmin.f32 %v3147, 1.0
      %v3180 = vmin.f32 %v3148, 1.0
      %v3181 = vmin.f32 %v3149, 1.0
      %v3182 = vmin.f32 %v3150, 1.0
      %v3183 = vmin.f32 %v3151, 1.0
      %v3184 = vmin.f32 %v3152, 1.0
      %v3185 = vmin.f32 %v3153, 1.0
      %v3186 = vmin.f32 %v3154, 1.0
      %v3187 = vmin.f32 %v3155, 1.0
      %v3188 = vmul.f32 %v3156, 15.0
      %v3189 = vmul.f32 %v3157, 15.0
      %v3190 = vmul.f32 %v3158, 15.0
      %v3191 = vmul.f32 %v3159, 15.0
      %v3192 = vmul.f32 %v3160, 15.0
      %v3193 = vmul.f32 %v3161, 15.0
      %v3194 = vmul.f32 %v3162, 15.0
      %v3195 = vmul.f32 %v3163, 15.0
      %v3196 = vmul.f32 %v3164, 15.0
      %v3197 = vmul.f32 %v3165, 15.0
      %v3198 = vmul.f32 %v3166, 15.0
      %v3199 = vmul.f32 %v3167, 15.0
      %v3200 = vmul.f32 %v3168, 15.0
      %v3201 = vmul.f32 %v3169, 15.0
      %v3202 = vmul.f32 %v3170, 15.0
      %v3203 = vmul.f32 %v3171, 15.0
      %v3204 = vmul.f32 %v3172, 15.0
      %v3205 = vmul.f32 %v3173, 15.0
      %v3206 = vmul.f32 %v3174, 15.0
      %v3207 = vmul.f32 %v3175, 15.0
      %v3208 = vmul.f32 %v3176, 15.0
      %v3209 = vmul.f32 %v3177, 15.0
      %v3210 = vmul.f32 %v3178, 15.0
      %v3211 = vmul.f32 %v3179, 15.0
      %v3212 = vmul.f32 %v3180, 15.0
      %v3213 = vmul.f32 %v3181, 15.0
      %v3214 = vmul.f32 %v3182, 15.0
      %v3215 = vmul.f32 %v3183, 15.0
      %v3216 = vmul.f32 %v3184, 15.0
      %v3217 = vmul.f32 %v3185, 15.0
      %v3218 = vmul.f32 %v3186, 15.0
      %v3219 = vmul.f32 %v3187, 15.0
      %v3220 = vround.ne.pseudo %v3188
      %v3221 = vround.ne.pseudo %v3189
      %v3222 = vround.ne.pseudo %v3190
      %v3223 = vround.ne.pseudo %v3191
      %v3224 = vround.ne.pseudo %v3192
      %v3225 = vround.ne.pseudo %v3193
      %v3226 = vround.ne.pseudo %v3194
      %v3227 = vround.ne.pseudo %v3195
      %v3228 = vround.ne.pseudo %v3196
      %v3229 = vround.ne.pseudo %v3197
      %v3230 = vround.ne.pseudo %v3198
      %v3231 = vround.ne.pseudo %v3199
      %v3232 = vround.ne.pseudo %v3200
      %v3233 = vround.ne.pseudo %v3201
      %v3234 = vround.ne.pseudo %v3202
      %v3235 = vround.ne.pseudo %v3203
      %v3236 = vround.ne.pseudo %v3204
      %v3237 = vround.ne.pseudo %v3205
      %v3238 = vround.ne.pseudo %v3206
      %v3239 = vround.ne.pseudo %v3207
      %v3240 = vround.ne.pseudo %v3208
      %v3241 = vround.ne.pseudo %v3209
      %v3242 = vround.ne.pseudo %v3210
      %v3243 = vround.ne.pseudo %v3211
      %v3244 = vround.ne.pseudo %v3212
      %v3245 = vround.ne.pseudo %v3213
      %v3246 = vround.ne.pseudo %v3214
      %v3247 = vround.ne.pseudo %v3215
      %v3248 = vround.ne.pseudo %v3216
      %v3249 = vround.ne.pseudo %v3217
      %v3250 = vround.ne.pseudo %v3218
      %v3251 = vround.ne.pseudo %v3219
      %v3252 = vpack.c.bf16 %v3221, %v3220
      %v3253 = vpack.c.bf16 %v3223, %v3222
      %v3254 = vpack.c.bf16 %v3225, %v3224
      %v3255 = vpack.c.bf16 %v3227, %v3226
      %v3256 = vpack.c.bf16 %v3229, %v3228
      %v3257 = vpack.c.bf16 %v3231, %v3230
      %v3258 = vpack.c.bf16 %v3233, %v3232
      %v3259 = vpack.c.bf16 %v3235, %v3234
      %v3260 = vpack.c.bf16 %v3237, %v3236
      %v3261 = vpack.c.bf16 %v3239, %v3238
      %v3262 = vpack.c.bf16 %v3241, %v3240
      %v3263 = vpack.c.bf16 %v3243, %v3242
      %v3264 = vpack.c.bf16 %v3245, %v3244
      %v3265 = vpack.c.bf16 %v3247, %v3246
      %v3266 = vpack.c.bf16 %v3249, %v3248
      %v3267 = vpack.c.bf16 %v3251, %v3250
      %v3284 = vunpack.c.l.b16 %v3252
      %v3285 = vunpack.c.h.b16 %v3252
      %v3286 = vunpack.c.l.b16 %v3253
      %v3287 = vunpack.c.h.b16 %v3253
      %v3288 = vunpack.c.l.b16 %v3254
      %v3289 = vunpack.c.h.b16 %v3254
      %v3290 = vunpack.c.l.b16 %v3255
      %v3291 = vunpack.c.h.b16 %v3255
      %v3292 = vunpack.c.l.b16 %v3256
      %v3293 = vunpack.c.h.b16 %v3256
      %v3294 = vunpack.c.l.b16 %v3257
      %v3295 = vunpack.c.h.b16 %v3257
      %v3296 = vunpack.c.l.b16 %v3258
      %v3297 = vunpack.c.h.b16 %v3258
      %v3298 = vunpack.c.l.b16 %v3259
      %v3299 = vunpack.c.h.b16 %v3259
      %v3300 = vunpack.c.l.b16 %v3260
      %v3301 = vunpack.c.h.b16 %v3260
      %v3302 = vunpack.c.l.b16 %v3261
      %v3303 = vunpack.c.h.b16 %v3261
      %v3304 = vunpack.c.l.b16 %v3262
      %v3305 = vunpack.c.h.b16 %v3262
      %v3306 = vunpack.c.l.b16 %v3263
      %v3307 = vunpack.c.h.b16 %v3263
      %v3308 = vunpack.c.l.b16 %v3264
      %v3309 = vunpack.c.h.b16 %v3264
      %v3310 = vunpack.c.l.b16 %v3265
      %v3311 = vunpack.c.h.b16 %v3265
      %v3312 = vunpack.c.l.b16 %v3266
      %v3313 = vunpack.c.h.b16 %v3266
      %v3314 = vunpack.c.l.b16 %v3267
      %v3315 = vunpack.c.h.b16 %v3267
      %v3316 = vpack.c.b16 %v3284, %v3284
      %v3317 = vpack.c.b16 %v3285, %v3285
      %v3318 = vpack.c.b16 %v3286, %v3286
      %v3319 = vpack.c.b16 %v3287, %v3287
      %v3320 = vpack.c.b16 %v3288, %v3288
      %v3321 = vpack.c.b16 %v3289, %v3289
      %v3322 = vpack.c.b16 %v3290, %v3290
      %v3323 = vpack.c.b16 %v3291, %v3291
      %v3324 = vpack.c.b16 %v3292, %v3292
      %v3325 = vpack.c.b16 %v3293, %v3293
      %v3326 = vpack.c.b16 %v3294, %v3294
      %v3327 = vpack.c.b16 %v3295, %v3295
      %v3328 = vpack.c.b16 %v3296, %v3296
      %v3329 = vpack.c.b16 %v3297, %v3297
      %v3330 = vpack.c.b16 %v3298, %v3298
      %v3331 = vpack.c.b16 %v3299, %v3299
      %v3332 = vpack.c.b16 %v3300, %v3300
      %v3333 = vpack.c.b16 %v3301, %v3301
      %v3334 = vpack.c.b16 %v3302, %v3302
      %v3335 = vpack.c.b16 %v3303, %v3303
      %v3336 = vpack.c.b16 %v3304, %v3304
      %v3337 = vpack.c.b16 %v3305, %v3305
      %v3338 = vpack.c.b16 %v3306, %v3306
      %v3339 = vpack.c.b16 %v3307, %v3307
      %v3340 = vpack.c.b16 %v3308, %v3308
      %v3341 = vpack.c.b16 %v3309, %v3309
      %v3342 = vpack.c.b16 %v3310, %v3310
      %v3343 = vpack.c.b16 %v3311, %v3311
      %v3344 = vpack.c.b16 %v3312, %v3312
      %v3345 = vpack.c.b16 %v3313, %v3313
      %v3346 = vpack.c.b16 %v3314, %v3314
      %v3347 = vpack.c.b16 %v3315, %v3315
      %vm3380 = vcmask 60416
      %3381 = vst.msk [vmem:[%s316] sm:$0xf] %vm3380, %v3316
      %3382 = vst.msk [vmem:[%s316 + $0x4] sm:$0xf] %vm3380, %v3317
      %3383 = vst.msk [vmem:[%s316 + $0x8] sm:$0xf] %vm3380, %v3318
      %3384 = vst.msk [vmem:[%s316 + $0xc] sm:$0xf] %vm3380, %v3319
      %3385 = vst.msk [vmem:[%s316 + $0x10] sm:$0xf] %vm3380, %v3320
      %3386 = vst.msk [vmem:[%s316 + $0x14] sm:$0xf] %vm3380, %v3321
      %3387 = vst.msk [vmem:[%s316 + $0x18] sm:$0xf] %vm3380, %v3322
      %3388 = vst.msk [vmem:[%s316 + $0x1c] sm:$0xf] %vm3380, %v3323
      %3389 = vst.msk [vmem:[%s316 + $0x20] sm:$0xf] %vm3380, %v3324
      %3390 = vst.msk [vmem:[%s316 + $0x24] sm:$0xf] %vm3380, %v3325
      %3391 = vst.msk [vmem:[%s316 + $0x28] sm:$0xf] %vm3380, %v3326
      %3392 = vst.msk [vmem:[%s316 + $0x2c] sm:$0xf] %vm3380, %v3327
      %3393 = vst.msk [vmem:[%s316 + $0x30] sm:$0xf] %vm3380, %v3328
      %3394 = vst.msk [vmem:[%s316 + $0x34] sm:$0xf] %vm3380, %v3329
      %3395 = vst.msk [vmem:[%s316 + $0x38] sm:$0xf] %vm3380, %v3330
      %3396 = vst.msk [vmem:[%s316 + $0x3c] sm:$0xf] %vm3380, %v3331
      %3397 = vst.msk [vmem:[%s316 + $0x40] sm:$0xf] %vm3380, %v3332
      %3398 = vst.msk [vmem:[%s316 + $0x44] sm:$0xf] %vm3380, %v3333
      %3399 = vst.msk [vmem:[%s316 + $0x48] sm:$0xf] %vm3380, %v3334
      %3400 = vst.msk [vmem:[%s316 + $0x4c] sm:$0xf] %vm3380, %v3335
      %3401 = vst.msk [vmem:[%s316 + $0x50] sm:$0xf] %vm3380, %v3336
      %3402 = vst.msk [vmem:[%s316 + $0x54] sm:$0xf] %vm3380, %v3337
      %3403 = vst.msk [vmem:[%s316 + $0x58] sm:$0xf] %vm3380, %v3338
      %3404 = vst.msk [vmem:[%s316 + $0x5c] sm:$0xf] %vm3380, %v3339
      %3405 = vst.msk [vmem:[%s316 + $0x60] sm:$0xf] %vm3380, %v3340
      %3406 = vst.msk [vmem:[%s316 + $0x64] sm:$0xf] %vm3380, %v3341
      %3407 = vst.msk [vmem:[%s316 + $0x68] sm:$0xf] %vm3380, %v3342
      %3408 = vst.msk [vmem:[%s316 + $0x6c] sm:$0xf] %vm3380, %v3343
      %3409 = vst.msk [vmem:[%s316 + $0x70] sm:$0xf] %vm3380, %v3344
      %3410 = vst.msk [vmem:[%s316 + $0x74] sm:$0xf] %vm3380, %v3345
      %3411 = vst.msk [vmem:[%s316 + $0x78] sm:$0xf] %vm3380, %v3346
      %3412 = vst.msk [vmem:[%s316 + $0x7c] sm:$0xf] %vm3380, %v3347
      %p3413 = scmp.lt.s32.totalorder %s21, 1
      %s3414 = scalar_select %p3413, %s21, 1
      %p3415 = scmp.lt.s32.totalorder %s22, 0
      %s3416 = scalar_select %p3415, %s22, 0
      %s3417 = smul.addr %s3414, 32
      %s3418 = sadd.s32 %s3416, %s3417
      %s3419 = smul.addr %s3418, 4
      %s3420 = scalar_lea.vmem %s6, %s3419
      // Predicated region
      $region49: #{wide_basic_block_q_forward.2} parent=43 // pred_check
        %p3421 = pneg %p195
      $region50: #{wide_basic_block_q_forward.2} parent=43 // pred_check_branch
        %3423 = sbr.rel (%p3421) target = $region52
      $region51: #{wide_basic_block_q_forward.2} parent=43 // pred_region
        _
      $region52: #{wide_basic_block_q_forward.2} parent=43 // pred_fallthru
        _
    $region44: #{wide_basic_block_q_forward.2} parent=5 // pred_fallthru
      _
    %p3424 = scmp.le.s32.totalorder 2, %s12
    // Predicated region
    $region53: #{wide_basic_block_q_forward.2} parent=5 // pred_check
      %p3425 = pneg %p3424
    $region54: #{wide_basic_block_q_forward.2} parent=5 // pred_check_branch
      %3427 = sbr.rel (%p3425) target = $region56
    $region55: #{wide_basic_block_q_forward.2} parent=5 // pred_region
      %s3428 = ssub.s32 %s12, 2
      // Predicated region
      $region57: #{wide_basic_block_q_forward.2} parent=55 // pred_check
        %p3429 = pneg %p201
      $region58: #{wide_basic_block_q_forward.2} parent=55 // pred_check_branch
        %3431 = sbr.rel (%p3429) target = $region60
      $region59: #{wide_basic_block_q_forward.2} parent=55 // pred_region
        %p3432 = scmp.lt.s32.totalorder %s23, 1
        %s3433 = scalar_select %p3432, %s23, 1
        %p3434 = scmp.lt.s32.totalorder %s24, 0
        %s3435 = scalar_select %p3434, %s24, 0
        %s3436 = smul.addr %s3433, 32
        %s3437 = sadd.s32 %s3435, %s3436
        %s3438 = smul.addr %s3437, 4
        %s3439 = scalar_lea.vmem %s6, %s3438
      $region60: #{wide_basic_block_q_forward.2} parent=55 // pred_fallthru
        _
    $region56: #{wide_basic_block_q_forward.2} parent=5 // pred_fallthru
      _
  $region6: #{wide_basic_block_q_forward.2} parent=0 // loop_footer
    %s16 = sadd.s32 1, %s12
  $region7: #{wide_basic_block_q_forward.2} parent=0 // loop_footer_branch
    %11 = sbr.rel target = $region3
  $region8: #{wide_basic_block_q_forward.2} parent=0 // loop_exit
    _

// kernel: wide_basic_block_q_forward.3
$region0: #{wide_basic_block_q_forward.3}
  #allocation0 [shape = 'u32[]', space=smem, size = 0x4, offset = 0x4, fixed_abs, tag = 'smem constant byte address 0x4 - core index']
  #allocation1 [shape = 'u32[144,128]{1,0:T(1,128)}', space=vmem, size = 0x12000, scoped, tag = 'internal scratch']
  #allocation2 [shape = 'bf16[18,18,8]{2,1,0:T(8,128)(2,1)}', space=vmem, size = 0x1b000, scoped, tag = 'scratch operand']
  #allocation3 [shape = 'bf16[256,72]{1,0:T(8,128)(2,1)}', space=vmem, size = 0x10000, scoped, tag = 'scratch operand']
  #allocation4 [shape = 'f32[256,4]{1,0:T(8,128)}', space=vmem, size = 0x20000, scoped, tag = 'scratch operand']
  %s0 = inlined_call_operand.vmem [shape: bf16[2,16,16,8], index: 0, kind: input, shape index: {}]
  %s1 = inlined_call_operand.vmem [shape: bf16[72,8], index: 1, kind: input, shape index: {}]
  %s2 = inlined_call_operand.vmem [shape: f32[2,16,16,4], index: 2, kind: input, shape index: {}]
  %s3 = inlined_call_operand.vmem [shape: f32[1,4], index: 3, kind: input, shape index: {}]
  %s4 = inlined_call_operand.vmem [shape: f32[1,4], index: 4, kind: input, shape index: {}]
  %s5 = inlined_call_operand.vmem [shape: f32[4,8], index: 5, kind: input, shape index: {}]
  %s6 = inlined_call_operand.vmem [shape: f32[2,16,16,8], index: 6, kind: output, shape index: {}]
  %s7 = sld [smem:[#allocation0]]
  $region61: #{wide_basic_block_q_forward.3} parent=0
    _
  %s9 = ssub.s32 1, %s7
  %s10 = scalar_select 0, %s9, %s7
  loop: start=0, step=1, limit=4
  $region2: #{wide_basic_block_q_forward.3} parent=0 // loop_pre_header
    _
  $region3: #{wide_basic_block_q_forward.3} parent=0 // loop_header
    %s12 = sphi 0, %s16
    %p13 = scmp.ge.s32.totalorder %s12, 4
    %s19 = sphi 0, %s31
    %s20 = sphi 0, %s27
    %s21 = sphi 0, %s19
    %s22 = sphi 0, %s20
    %s23 = sphi 0, %s21
    %s24 = sphi 0, %s22
    %s34 = sphi 0, %s36
    %s37 = sphi 0, %s34
    %s38 = sphi 0, %s37
    %s54 = sphi 0, %s38
    %s60 = sphi 0, %s62
    %s63 = sphi 0, %s60
    %s64 = sphi 0, %s63
    %s80 = sphi 0, %s64
    %s86 = sphi 0, %s88
    %s89 = sphi 0, %s86
    %s90 = sphi 0, %s89
    %s106 = sphi 0, %s90
    %s110 = sphi 0, %s110
    %s112 = sphi 0, %s110
    %s113 = sphi 0, %s112
    %s127 = sphi 0, %s113
    %s131 = sphi 0, %s131
    %s133 = sphi 0, %s131
    %s134 = sphi 0, %s133
    %s148 = sphi 0, %s134
    %s154 = sphi 0, %s156
    %s157 = sphi 0, %s154
    %s158 = sphi 0, %s157
    %s174 = sphi 0, %s158
    %s182 = sphi 0, %s184
    %s185 = sphi 0, %s182
    %s186 = sphi 0, %s185
    %s202 = sphi 0, %s186
  $region4: #{wide_basic_block_q_forward.3} parent=0 // loop_header_branch
    %15 = sbr.rel (%p13) target = $region8
  $region5: #{wide_basic_block_q_forward.3} parent=0 // loop_body
    %s17 = ssub.s32 %s12, 1
    %s18 = ssub.s32 %s12, 2
    %s25 = sadd.s32 1, %s20
    %p26 = scmp.ge.s32.totalorder %s25, 1
    %s27 = scalar_select %p26, 0, %s25
    %s28 = sadd.s32 1, %s19
    %s29 = scalar_select %p26, %s28, %s19
    %p30 = scmp.ge.s32.totalorder %s29, 2
    %s31 = scalar_select %p30, 0, %s29
    %s32 = ssub.s32 %s19, %s31
    %p33 = scmp.eq.s32.totalorder %s32, 0
    %s35 = sadd.s32 %s34, 1
    %s36 = scalar_select %p33, %s34, %s35
    %p39 = pneg %p33
    %p40 = scmp.eq.s32.totalorder %s12, 1
    %p41 = por %p39, %p40
    %p42 = scmp.ne.s32.totalorder %s34, %s37
    %p43 = scmp.eq.s32.totalorder %s12, 0
    %p44 = por %p42, %p43
    %p45 = scmp.ne.s32.totalorder %s34, %s37
    %p46 = scmp.eq.s32.totalorder %s17, 1
    %p47 = por %p45, %p46
    %p48 = scmp.ne.s32.totalorder %s37, %s38
    %p49 = scmp.eq.s32.totalorder %s17, 0
    %p50 = por %p48, %p49
    %p51 = scmp.ne.s32.totalorder %s37, %s38
    %p52 = scmp.eq.s32.totalorder %s18, 1
    %p53 = por %p51, %p52
    %p55 = scmp.ne.s32.totalorder %s38, %s54
    %p56 = scmp.eq.s32.totalorder %s18, 0
    %p57 = por %p55, %p56
    %s58 = ssub.s32 %s20, %s27
    %p59 = scmp.eq.s32.totalorder %s58, 0
    %s61 = sadd.s32 %s60, 1
    %s62 = scalar_select %p59, %s60, %s61
    %p65 = pneg %p59
    %p66 = scmp.eq.s32.totalorder %s12, 1
    %p67 = por %p65, %p66
    %p68 = scmp.ne.s32.totalorder %s60, %s63
    %p69 = scmp.eq.s32.totalorder %s12, 0
    %p70 = por %p68, %p69
    %p71 = scmp.ne.s32.totalorder %s60, %s63
    %p72 = scmp.eq.s32.totalorder %s17, 1
    %p73 = por %p71, %p72
    %p74 = scmp.ne.s32.totalorder %s63, %s64
    %p75 = scmp.eq.s32.totalorder %s17, 0
    %p76 = por %p74, %p75
    %p77 = scmp.ne.s32.totalorder %s63, %s64
    %p78 = scmp.eq.s32.totalorder %s18, 1
    %p79 = por %p77, %p78
    %p81 = scmp.ne.s32.totalorder %s64, %s80
    %p82 = scmp.eq.s32.totalorder %s18, 0
    %p83 = por %p81, %p82
    %s84 = ssub.s32 %s19, %s31
    %p85 = scmp.eq.s32.totalorder %s84, 0
    %s87 = sadd.s32 %s86, 1
    %s88 = scalar_select %p85, %s86, %s87
    %p91 = pneg %p85
    %p92 = scmp.eq.s32.totalorder %s12, 1
    %p93 = por %p91, %p92
    %p94 = scmp.ne.s32.totalorder %s86, %s89
    %p95 = scmp.eq.s32.totalorder %s12, 0
    %p96 = por %p94, %p95
    %p97 = scmp.ne.s32.totalorder %s86, %s89
    %p98 = scmp.eq.s32.totalorder %s17, 1
    %p99 = por %p97, %p98
    %p100 = scmp.ne.s32.totalorder %s89, %s90
    %p101 = scmp.eq.s32.totalorder %s17, 0
    %p102 = por %p100, %p101
    %p103 = scmp.ne.s32.totalorder %s89, %s90
    %p104 = scmp.eq.s32.totalorder %s18, 1
    %p105 = por %p103, %p104
    %p107 = scmp.ne.s32.totalorder %s90, %s106
    %p108 = scmp.eq.s32.totalorder %s18, 0
    %p109 = por %p107, %p108
    %s111 = sadd.s32 %s110, 1
    %p114 = scmp.eq.s32.totalorder %s12, 1
    %p115 = scmp.ne.s32.totalorder %s110, %s112
    %p116 = scmp.eq.s32.totalorder %s12, 0
    %p117 = por %p115, %p116
    %p118 = scmp.ne.s32.totalorder %s110, %s112
    %p119 = scmp.eq.s32.totalorder %s17, 1
    %p120 = por %p118, %p119
    %p121 = scmp.ne.s32.totalorder %s112, %s113
    %p122 = scmp.eq.s32.totalorder %s17, 0
    %p123 = por %p121, %p122
    %p124 = scmp.ne.s32.totalorder %s112, %s113
    %p125 = scmp.eq.s32.totalorder %s18, 1
    %p126 = por %p124, %p125
    %p128 = scmp.ne.s32.totalorder %s113, %s127
    %p129 = scmp.eq.s32.totalorder %s18, 0
    %p130 = por %p128, %p129
    %s132 = sadd.s32 %s131, 1
    %p135 = scmp.eq.s32.totalorder %s12, 1
    %p136 = scmp.ne.s32.totalorder %s131, %s133
    %p137 = scmp.eq.s32.totalorder %s12, 0
    %p138 = por %p136, %p137
    %p139 = scmp.ne.s32.totalorder %s131, %s133
    %p140 = scmp.eq.s32.totalorder %s17, 1
    %p141 = por %p139, %p140
    %p142 = scmp.ne.s32.totalorder %s133, %s134
    %p143 = scmp.eq.s32.totalorder %s17, 0
    %p144 = por %p142, %p143
    %p145 = scmp.ne.s32.totalorder %s133, %s134
    %p146 = scmp.eq.s32.totalorder %s18, 1
    %p147 = por %p145, %p146
    %p149 = scmp.ne.s32.totalorder %s134, %s148
    %p150 = scmp.eq.s32.totalorder %s18, 0
    %p151 = por %p149, %p150
    %s152 = ssub.s32 %s20, %s27
    %p153 = scmp.eq.s32.totalorder %s152, 0
    %s155 = sadd.s32 %s154, 1
    %s156 = scalar_select %p153, %s154, %s155
    %p159 = pneg %p153
    %p160 = scmp.eq.s32.totalorder %s12, 1
    %p161 = por %p159, %p160
    %p162 = scmp.ne.s32.totalorder %s154, %s157
    %p163 = scmp.eq.s32.totalorder %s12, 0
    %p164 = por %p162, %p163
    %p165 = scmp.ne.s32.totalorder %s154, %s157
    %p166 = scmp.eq.s32.totalorder %s17, 1
    %p167 = por %p165, %p166
    %p168 = scmp.ne.s32.totalorder %s157, %s158
    %p169 = scmp.eq.s32.totalorder %s17, 0
    %p170 = por %p168, %p169
    %p171 = scmp.ne.s32.totalorder %s157, %s158
    %p172 = scmp.eq.s32.totalorder %s18, 1
    %p173 = por %p171, %p172
    %p175 = scmp.ne.s32.totalorder %s158, %s174
    %p176 = scmp.eq.s32.totalorder %s18, 0
    %p177 = por %p175, %p176
    %s178 = ssub.s32 %s19, %s31
    %s179 = ssub.s32 %s20, %s27
    %s180 = sor.u32 %s178, %s179
    %p181 = scmp.eq.s32.totalorder %s180, 0
    %s183 = sadd.s32 %s182, 1
    %s184 = scalar_select %p181, %s182, %s183
    %p187 = pneg %p181
    %p188 = scmp.eq.s32.totalorder %s12, 1
    %p189 = por %p187, %p188
    %p190 = scmp.ne.s32.totalorder %s182, %s185
    %p191 = scmp.eq.s32.totalorder %s12, 0
    %p192 = por %p190, %p191
    %p193 = scmp.ne.s32.totalorder %s182, %s185
    %p194 = scmp.eq.s32.totalorder %s17, 1
    %p195 = por %p193, %p194
    %p196 = scmp.ne.s32.totalorder %s185, %s186
    %p197 = scmp.eq.s32.totalorder %s17, 0
    %p198 = por %p196, %p197
    %p199 = scmp.ne.s32.totalorder %s185, %s186
    %p200 = scmp.eq.s32.totalorder %s18, 1
    %p201 = por %p199, %p200
    %p203 = scmp.ne.s32.totalorder %s186, %s202
    %p204 = scmp.eq.s32.totalorder %s18, 0
    %p205 = por %p203, %p204
    %p206 = scmp.le.s32.totalorder 1, %s12
    %p207 = scmp.lt.s32.totalorder %s12, 3
    %p208 = pnand %p206, %p207
    %p209 = pneg %p208
    // Predicated region
    $region9: #{wide_basic_block_q_forward.3} parent=5 // pred_check
      _
    $region10: #{wide_basic_block_q_forward.3} parent=5 // pred_check_branch
      %211 = sbr.rel (%p208) target = $region12
    $region11: #{wide_basic_block_q_forward.3} parent=5 // pred_region
      %s212 = ssub.s32 %s12, 1
      // Predicated region
      $region13: #{wide_basic_block_q_forward.3} parent=11 // pred_check
        %p213 = pneg %p76
      $region14: #{wide_basic_block_q_forward.3} parent=11 // pred_check_branch
        %215 = sbr.rel (%p213) target = $region16
      $region15: #{wide_basic_block_q_forward.3} parent=11 // pred_region
        %p216 = scmp.lt.s32.totalorder %s22, 0
        %s217 = scalar_select %p216, %s22, 0
        %s218 = smul.addr %s217, 4
        %s219 = scalar_lea.vmem %s1, %s218
      $region16: #{wide_basic_block_q_forward.3} parent=11 // pred_fallthru
        _
      // Predicated region
      $region17: #{wide_basic_block_q_forward.3} parent=11 // pred_check
        %p220 = pneg %p123
      $region18: #{wide_basic_block_q_forward.3} parent=11 // pred_check_branch
        %222 = sbr.rel (%p220) target = $region20
      $region19: #{wide_basic_block_q_forward.3} parent=11 // pred_region
        _
      $region20: #{wide_basic_block_q_forward.3} parent=11 // pred_fallthru
        _
      // Predicated region
      $region21: #{wide_basic_block_q_forward.3} parent=11 // pred_check
        %p223 = pneg %p144
      $region22: #{wide_basic_block_q_forward.3} parent=11 // pred_check_branch
        %225 = sbr.rel (%p223) target = $region24
      $region23: #{wide_basic_block_q_forward.3} parent=11 // pred_region
        _
      $region24: #{wide_basic_block_q_forward.3} parent=11 // pred_fallthru
        _
      // Predicated region
      $region25: #{wide_basic_block_q_forward.3} parent=11 // pred_check
        %p226 = pneg %p170
      $region26: #{wide_basic_block_q_forward.3} parent=11 // pred_check_branch
        %228 = sbr.rel (%p226) target = $region28
      $region27: #{wide_basic_block_q_forward.3} parent=11 // pred_region
        %p229 = scmp.lt.s32.totalorder %s22, 0
        %s230 = scalar_select %p229, %s22, 0
        %s231 = smul.addr %s230, 4
        %s232 = scalar_lea.vmem %s5, %s231
      $region28: #{wide_basic_block_q_forward.3} parent=11 // pred_fallthru
        _
    $region12: #{wide_basic_block_q_forward.3} parent=5 // pred_fallthru
      _
    %p233 = scmp.lt.s32.totalorder %s12, 2
    // Predicated region
    $region29: #{wide_basic_block_q_forward.3} parent=5 // pred_check
      %p234 = pneg %p233
    $region30: #{wide_basic_block_q_forward.3} parent=5 // pred_check_branch
      %236 = sbr.rel (%p234) target = $region32
    $region31: #{wide_basic_block_q_forward.3} parent=5 // pred_region
      // Predicated region
      $region33: #{wide_basic_block_q_forward.3} parent=31 // pred_check
        %p237 = pneg %p44
      $region34: #{wide_basic_block_q_forward.3} parent=31 // pred_check_branch
        %239 = sbr.rel (%p237) target = $region36
      $region35: #{wide_basic_block_q_forward.3} parent=31 // pred_region
        %p240 = scmp.lt.s32.totalorder %s19, 1
        %s241 = scalar_select %p240, %s19, 1
        %s242 = smul.addr %s241, 32
        %s243 = smul.addr %s242, 4
        %s244 = scalar_lea.vmem %s0, %s243
      $region36: #{wide_basic_block_q_forward.3} parent=31 // pred_fallthru
        _
      // Predicated region
      $region37: #{wide_basic_block_q_forward.3} parent=31 // pred_check
        %p245 = pneg %p96
      $region38: #{wide_basic_block_q_forward.3} parent=31 // pred_check_branch
        %247 = sbr.rel (%p245) target = $region40
      $region39: #{wide_basic_block_q_forward.3} parent=31 // pred_region
        %p248 = scmp.lt.s32.totalorder %s19, 1
        %s249 = scalar_select %p248, %s19, 1
        %s250 = smul.addr %s249, 32
        %s251 = smul.addr %s250, 8
        %s252 = scalar_lea.vmem %s2, %s251
      $region40: #{wide_basic_block_q_forward.3} parent=31 // pred_fallthru
        _
    $region32: #{wide_basic_block_q_forward.3} parent=5 // pred_fallthru
      _
    %p253 = scmp.le.s32.totalorder 1, %s12
    %p254 = scmp.lt.s32.totalorder %s12, 3
    %p255 = pnand %p253, %p254
    %p256 = pneg %p255
    // Predicated region
    $region41: #{wide_basic_block_q_forward.3} parent=5 // pred_check
      _
    $region42: #{wide_basic_block_q_forward.3} parent=5 // pred_check_branch
      %258 = sbr.rel (%p255) target = $region44
    $region43: #{wide_basic_block_q_forward.3} parent=5 // pred_region
      %s259 = ssub.s32 %s12, 1
      %p260 = scmp.lt.s32.totalorder %s21, 1
      %s261 = scalar_select %p260, %s21, 1
      %s262 = smul.addr %s261, 32
      %s263 = smul.addr %s262, 4
      %s264 = scalar_lea.vmem %s0, %s263
      %p265 = pneg %p50
      %p266 = pneg %p47
      %p267 = scmp.lt.s32.totalorder %s22, 0
      %s268 = scalar_select %p267, %s22, 0
      %s269 = smul.addr %s268, 4
      %s270 = scalar_lea.vmem %s1, %s269
      %p271 = pneg %p76
      %p272 = pneg %p73
      %p273 = scmp.lt.s32.totalorder %s21, 1
      %s274 = scalar_select %p273, %s21, 1
      %s275 = smul.addr %s274, 32
      %s276 = smul.addr %s275, 8
      %s277 = scalar_lea.vmem %s2, %s276
      %p278 = pneg %p102
      %p279 = pneg %p99
      %p280 = pneg %p123
      %p281 = pneg %p120
      %p282 = pneg %p144
      %p283 = pneg %p141
      %p284 = scmp.lt.s32.totalorder %s22, 0
      %s285 = scalar_select %p284, %s22, 0
      %s286 = smul.addr %s285, 4
      %s287 = scalar_lea.vmem %s5, %s286
      %p288 = pneg %p170
      %p289 = pneg %p167
      %p290 = pneg %p198
      %p291 = pneg %p195
      %p292 = scmp.lt.s32.totalorder %s21, 1
      %s293 = scalar_select %p292, %s21, 1
      %p294 = scmp.lt.s32.totalorder %s22, 0
      %s295 = scalar_select %p294, %s22, 0
      %s296 = smul.addr %s293, 32
      %s297 = sadd.s32 %s295, %s296
      %s298 = smul.addr %s297, 8
      %s299 = scalar_lea.vmem %s6, %s298
      %p300 = scmp.lt.s32.totalorder %s21, 1
      %s301 = scalar_select %p300, %s21, 1
      %s302 = smul.addr %s301, 32
      %s303 = smul.addr %s302, 4
      %s304 = scalar_lea.vmem %s0, %s303
      %p305 = scmp.lt.s32.totalorder %s22, 0
      %s306 = scalar_select %p305, %s22, 0
      %s307 = smul.addr %s306, 4
      %s308 = scalar_lea.vmem %s1, %s307
      %p309 = scmp.lt.s32.totalorder %s21, 1
      %s310 = scalar_select %p309, %s21, 1
      %s311 = smul.addr %s310, 32
      %s312 = smul.addr %s311, 8
      %s313 = scalar_lea.vmem %s2, %s312
      %p314 = scmp.lt.s32.totalorder %s22, 0
      %s315 = scalar_select %p314, %s22, 0
      %s316 = smul.addr %s315, 4
      %s317 = scalar_lea.vmem %s5, %s316
      %p318 = scmp.lt.s32.totalorder %s21, 1
      %s319 = scalar_select %p318, %s21, 1
      %p320 = scmp.lt.s32.totalorder %s22, 0
      %s321 = scalar_select %p320, %s22, 0
      %s322 = smul.addr %s319, 32
      %s323 = sadd.s32 %s321, %s322
      %s324 = smul.addr %s323, 8
      %s325 = scalar_lea.vmem %s6, %s324
      %p327 = scmp.eq.s32.totalorder %s22, 0
      // Predicated region
      $region45: #{wide_basic_block_q_forward.3} parent=43 // pred_check
        %p328 = pneg %p327
      $region46: #{wide_basic_block_q_forward.3} parent=43 // pred_check_branch
        %330 = sbr.rel (%p328) target = $region48
      $region47: #{wide_basic_block_q_forward.3} parent=43 // pred_region
        %vm331 = vcmask 60416
        %332 = vst.msk [vmem:[#allocation2] sm:$0xf] %vm331, 0
        %333 = vst.msk [vmem:[#allocation2 + $0x4] sm:$0xf] %vm331, 0
        %vm334 = vcmask 57344
        %335 = vst.msk [vmem:[#allocation2 + $0x8] sm:$0x1] %vm334, 0
        %336 = vst.msk [vmem:[#allocation2 + $0xc] sm:$0xf] %vm331, 0
        %337 = vst.msk [vmem:[#allocation2 + $0x10] sm:$0xf] %vm331, 0
        %338 = vst.msk [vmem:[#allocation2 + $0x14] sm:$0x1] %vm334, 0
        %339 = vst.msk [vmem:[#allocation2 + $0x18] sm:$0xf] %vm331, 0
        %340 = vst.msk [vmem:[#allocation2 + $0x1c] sm:$0xf] %vm331, 0
        %341 = vst.msk [vmem:[#allocation2 + $0x20] sm:$0x1] %vm334, 0
        %342 = vst.msk [vmem:[#allocation2 + $0x24] sm:$0xf] %vm331, 0
        %343 = vst.msk [vmem:[#allocation2 + $0x28] sm:$0xf] %vm331, 0
        %344 = vst.msk [vmem:[#allocation2 + $0x2c] sm:$0x1] %vm334, 0
        %345 = vst.msk [vmem:[#allocation2 + $0x30] sm:$0xf] %vm331, 0
        %346 = vst.msk [vmem:[#allocation2 + $0x34] sm:$0xf] %vm331, 0
        %347 = vst.msk [vmem:[#allocation2 + $0x38] sm:$0x1] %vm334, 0
        %348 = vst.msk [vmem:[#allocation2 + $0x3c] sm:$0xf] %vm331, 0
        %349 = vst.msk [vmem:[#allocation2 + $0x40] sm:$0xf] %vm331, 0
        %350 = vst.msk [vmem:[#allocation2 + $0x44] sm:$0x1] %vm334, 0
        %351 = vst.msk [vmem:[#allocation2 + $0x48] sm:$0xf] %vm331, 0
        %352 = vst.msk [vmem:[#allocation2 + $0x4c] sm:$0xf] %vm331, 0
        %353 = vst.msk [vmem:[#allocation2 + $0x50] sm:$0x1] %vm334, 0
        %354 = vst.msk [vmem:[#allocation2 + $0x54] sm:$0xf] %vm331, 0
        %355 = vst.msk [vmem:[#allocation2 + $0x58] sm:$0xf] %vm331, 0
        %356 = vst.msk [vmem:[#allocation2 + $0x5c] sm:$0x1] %vm334, 0
        %357 = vst.msk [vmem:[#allocation2 + $0x60] sm:$0xf] %vm331, 0
        %358 = vst.msk [vmem:[#allocation2 + $0x64] sm:$0xf] %vm331, 0
        %359 = vst.msk [vmem:[#allocation2 + $0x68] sm:$0x1] %vm334, 0
        %360 = vst.msk [vmem:[#allocation2 + $0x6c] sm:$0xf] %vm331, 0
        %361 = vst.msk [vmem:[#allocation2 + $0x70] sm:$0xf] %vm331, 0
        %362 = vst.msk [vmem:[#allocation2 + $0x74] sm:$0x1] %vm334, 0
        %363 = vst.msk [vmem:[#allocation2 + $0x78] sm:$0xf] %vm331, 0
        %364 = vst.msk [vmem:[#allocation2 + $0x7c] sm:$0xf] %vm331, 0
        %365 = vst.msk [vmem:[#allocation2 + $0x80] sm:$0x1] %vm334, 0
        %366 = vst.msk [vmem:[#allocation2 + $0x84] sm:$0xf] %vm331, 0
        %367 = vst.msk [vmem:[#allocation2 + $0x88] sm:$0xf] %vm331, 0
        %368 = vst.msk [vmem:[#allocation2 + $0x8c] sm:$0x1] %vm334, 0
        %369 = vst.msk [vmem:[#allocation2 + $0x90] sm:$0xf] %vm331, 0
        %370 = vst.msk [vmem:[#allocation2 + $0x94] sm:$0xf] %vm331, 0
        %371 = vst.msk [vmem:[#allocation2 + $0x98] sm:$0x1] %vm334, 0
        %372 = vst.msk [vmem:[#allocation2 + $0x9c] sm:$0xf] %vm331, 0
        %373 = vst.msk [vmem:[#allocation2 + $0xa0] sm:$0xf] %vm331, 0
        %374 = vst.msk [vmem:[#allocation2 + $0xa4] sm:$0x1] %vm334, 0
        %375 = vst.msk [vmem:[#allocation2 + $0xa8] sm:$0xf] %vm331, 0
        %376 = vst.msk [vmem:[#allocation2 + $0xac] sm:$0xf] %vm331, 0
        %377 = vst.msk [vmem:[#allocation2 + $0xb0] sm:$0x1] %vm334, 0
        %378 = vst.msk [vmem:[#allocation2 + $0xb4] sm:$0xf] %vm331, 0
        %379 = vst.msk [vmem:[#allocation2 + $0xb8] sm:$0xf] %vm331, 0
        %380 = vst.msk [vmem:[#allocation2 + $0xbc] sm:$0x1] %vm334, 0
        %381 = vst.msk [vmem:[#allocation2 + $0xc0] sm:$0xf] %vm331, 0
        %382 = vst.msk [vmem:[#allocation2 + $0xc4] sm:$0xf] %vm331, 0
        %383 = vst.msk [vmem:[#allocation2 + $0xc8] sm:$0x1] %vm334, 0
        %384 = vst.msk [vmem:[#allocation2 + $0xcc] sm:$0xf] %vm331, 0
        %385 = vst.msk [vmem:[#allocation2 + $0xd0] sm:$0xf] %vm331, 0
        %386 = vst.msk [vmem:[#allocation2 + $0xd4] sm:$0x1] %vm334, 0
        %v387 = vld [vmem:[%s304] sm:$0xf]
        %v388 = vld [vmem:[%s304 + $0x4] sm:$0xf]
        %v389 = vld [vmem:[%s304 + $0x8] sm:$0xf]
        %v390 = vld [vmem:[%s304 + $0xc] sm:$0xf]
        %v391 = vld [vmem:[%s304 + $0x10] sm:$0xf]
        %v392 = vld [vmem:[%s304 + $0x14] sm:$0xf]
        %v393 = vld [vmem:[%s304 + $0x18] sm:$0xf]
        %v394 = vld [vmem:[%s304 + $0x1c] sm:$0xf]
        %v395 = vld [vmem:[%s304 + $0x20] sm:$0xf]
        %v396 = vld [vmem:[%s304 + $0x24] sm:$0xf]
        %v397 = vld [vmem:[%s304 + $0x28] sm:$0xf]
        %v398 = vld [vmem:[%s304 + $0x2c] sm:$0xf]
        %v399 = vld [vmem:[%s304 + $0x30] sm:$0xf]
        %v400 = vld [vmem:[%s304 + $0x34] sm:$0xf]
        %v401 = vld [vmem:[%s304 + $0x38] sm:$0xf]
        %v402 = vld [vmem:[%s304 + $0x3c] sm:$0xf]
        %v403 = vld [vmem:[%s304 + $0x40] sm:$0xf]
        %v404 = vld [vmem:[%s304 + $0x44] sm:$0xf]
        %v405 = vld [vmem:[%s304 + $0x48] sm:$0xf]
        %v406 = vld [vmem:[%s304 + $0x4c] sm:$0xf]
        %v407 = vld [vmem:[%s304 + $0x50] sm:$0xf]
        %v408 = vld [vmem:[%s304 + $0x54] sm:$0xf]
        %v409 = vld [vmem:[%s304 + $0x58] sm:$0xf]
        %v410 = vld [vmem:[%s304 + $0x5c] sm:$0xf]
        %v411 = vld [vmem:[%s304 + $0x60] sm:$0xf]
        %v412 = vld [vmem:[%s304 + $0x64] sm:$0xf]
        %v413 = vld [vmem:[%s304 + $0x68] sm:$0xf]
        %v414 = vld [vmem:[%s304 + $0x6c] sm:$0xf]
        %v415 = vld [vmem:[%s304 + $0x70] sm:$0xf]
        %v416 = vld [vmem:[%s304 + $0x74] sm:$0xf]
        %v417 = vld [vmem:[%s304 + $0x78] sm:$0xf]
        %v418 = vld [vmem:[%s304 + $0x7c] sm:$0xf]
        %vm419 = vsmask.f32 256
        %vm420 = vsmask.f32 4368
        %vm421 = vmor %vm419, %vm420
        %v423 = vshrl.u32 %v387, 16
        %v425 = vrot.slane %v423, 7
        %v426 = vshll.u32 %v387, 16
        %v428 = vor.u32 %v425, %v426
        %v429 = vrot.slane %v425, 4
        %v431 = vshrl.u32 %v388, 16
        %v433 = vrot.slane %v431, 7
        %v434 = vshll.u32 %v388, 16
        %v436 = vor.u32 %v433, %v434
        %v437 = vsel %vm421, %v429, %v436
        %v438 = vrot.slane %v433, 4
        %v440 = vshrl.u32 %v389, 16
        %v442 = vrot.slane %v440, 7
        %v443 = vshll.u32 %v389, 16
        %v445 = vor.u32 %v442, %v443
        %v446 = vrot.slane %v442, 4
        %v448 = vshrl.u32 %v390, 16
        %v450 = vrot.slane %v448, 7
        %v451 = vshll.u32 %v390, 16
        %v453 = vor.u32 %v450, %v451
        %v454 = vsel %vm421, %v446, %v453
        %v455 = vrot.slane %v450, 4
        %v457 = vshrl.u32 %v391, 16
        %v459 = vrot.slane %v457, 7
        %v460 = vshll.u32 %v391, 16
        %v462 = vor.u32 %v459, %v460
        %v463 = vrot.slane %v459, 4
        %v465 = vshrl.u32 %v392, 16
        %v467 = vrot.slane %v465, 7
        %v468 = vshll.u32 %v392, 16
        %v470 = vor.u32 %v467, %v468
        %v471 = vsel %vm421, %v463, %v470
        %v472 = vrot.slane %v467, 4
        %v474 = vshrl.u32 %v393, 16
        %v476 = vrot.slane %v474, 7
        %v477 = vshll.u32 %v393, 16
        %v479 = vor.u32 %v476, %v477
        %v480 = vrot.slane %v476, 4
        %v482 = vshrl.u32 %v394, 16
        %v484 = vrot.slane %v482, 7
        %v485 = vshll.u32 %v394, 16
        %v487 = vor.u32 %v484, %v485
        %v488 = vsel %vm421, %v480, %v487
        %v489 = vrot.slane %v484, 4
        %v491 = vshrl.u32 %v395, 16
        %v493 = vrot.slane %v491, 7
        %v494 = vshll.u32 %v395, 16
        %v496 = vor.u32 %v493, %v494
        %v497 = vrot.slane %v493, 4
        %v499 = vshrl.u32 %v396, 16
        %v501 = vrot.slane %v499, 7
        %v502 = vshll.u32 %v396, 16
        %v504 = vor.u32 %v501, %v502
        %v505 = vsel %vm421, %v497, %v504
        %v506 = vrot.slane %v501, 4
        %v508 = vshrl.u32 %v397, 16
        %v510 = vrot.slane %v508, 7
        %v511 = vshll.u32 %v397, 16
        %v513 = vor.u32 %v510, %v511
        %v514 = vrot.slane %v510, 4
        %v516 = vshrl.u32 %v398, 16
        %v518 = vrot.slane %v516, 7
        %v519 = vshll.u32 %v398, 16
        %v521 = vor.u32 %v518, %v519
        %v522 = vsel %vm421, %v514, %v521
        %v523 = vrot.slane %v518, 4
        %v525 = vshrl.u32 %v399, 16
        %v527 = vrot.slane %v525, 7
        %v528 = vshll.u32 %v399, 16
        %v530 = vor.u32 %v527, %v528
        %v531 = vrot.slane %v527, 4
        %v533 = vshrl.u32 %v400, 16
        %v535 = vrot.slane %v533, 7
        %v536 = vshll.u32 %v400, 16
        %v538 = vor.u32 %v535, %v536
        %v539 = vsel %vm421, %v531, %v538
        %v540 = vrot.slane %v535, 4
        %v542 = vshrl.u32 %v401, 16
        %v544 = vrot.slane %v542, 7
        %v545 = vshll.u32 %v401, 16
        %v547 = vor.u32 %v544, %v545
        %v548 = vrot.slane %v544, 4
        %v550 = vshrl.u32 %v402, 16
        %v552 = vrot.slane %v550, 7
        %v553 = vshll.u32 %v402, 16
        %v555 = vor.u32 %v552, %v553
        %v556 = vsel %vm421, %v548, %v555
        %v557 = vrot.slane %v552, 4
        %v559 = vshrl.u32 %v403, 16
        %v561 = vrot.slane %v559, 7
        %v562 = vshll.u32 %v403, 16
        %v564 = vor.u32 %v561, %v562
        %v565 = vrot.slane %v561, 4
        %v567 = vshrl.u32 %v404, 16
        %v569 = vrot.slane %v567, 7
        %v570 = vshll.u32 %v404, 16
        %v572 = vor.u32 %v569, %v570
        %v573 = vsel %vm421, %v565, %v572
        %v574 = vrot.slane %v569, 4
        %v576 = vshrl.u32 %v405, 16
        %v578 = vrot.slane %v576, 7
        %v579 = vshll.u32 %v405, 16
        %v581 = vor.u32 %v578, %v579
        %v582 = vrot.slane %v578, 4
        %v584 = vshrl.u32 %v406, 16
        %v586 = vrot.slane %v584, 7
        %v587 = vshll.u32 %v406, 16
        %v589 = vor.u32 %v586, %v587
        %v590 = vsel %vm421, %v582, %v589
        %v591 = vrot.slane %v586, 4
        %v593 = vshrl.u32 %v407, 16
        %v595 = vrot.slane %v593, 7
        %v596 = vshll.u32 %v407, 16
        %v598 = vor.u32 %v595, %v596
        %v599 = vrot.slane %v595, 4
        %v601 = vshrl.u32 %v408, 16
        %v603 = vrot.slane %v601, 7
        %v604 = vshll.u32 %v408, 16
        %v606 = vor.u32 %v603, %v604
        %v607 = vsel %vm421, %v599, %v606
        %v608 = vrot.slane %v603, 4
        %v610 = vshrl.u32 %v409, 16
        %v612 = vrot.slane %v610, 7
        %v613 = vshll.u32 %v409, 16
        %v615 = vor.u32 %v612, %v613
        %v616 = vrot.slane %v612, 4
        %v618 = vshrl.u32 %v410, 16
        %v620 = vrot.slane %v618, 7
        %v621 = vshll.u32 %v410, 16
        %v623 = vor.u32 %v620, %v621
        %v624 = vsel %vm421, %v616, %v623
        %v625 = vrot.slane %v620, 4
        %v627 = vshrl.u32 %v411, 16
        %v629 = vrot.slane %v627, 7
        %v630 = vshll.u32 %v411, 16
        %v632 = vor.u32 %v629, %v630
        %v633 = vrot.slane %v629, 4
        %v635 = vshrl.u32 %v412, 16
        %v637 = vrot.slane %v635, 7
        %v638 = vshll.u32 %v412, 16
        %v640 = vor.u32 %v637, %v638
        %v641 = vsel %vm421, %v633, %v640
        %v642 = vrot.slane %v637, 4
        %v644 = vshrl.u32 %v413, 16
        %v646 = vrot.slane %v644, 7
        %v647 = vshll.u32 %v413, 16
        %v649 = vor.u32 %v646, %v647
        %v650 = vrot.slane %v646, 4
        %v652 = vshrl.u32 %v414, 16
        %v654 = vrot.slane %v652, 7
        %v655 = vshll.u32 %v414, 16
        %v657 = vor.u32 %v654, %v655
        %v658 = vsel %vm421, %v650, %v657
        %v659 = vrot.slane %v654, 4
        %v661 = vshrl.u32 %v415, 16
        %v663 = vrot.slane %v661, 7
        %v664 = vshll.u32 %v415, 16
        %v666 = vor.u32 %v663, %v664
        %v667 = vrot.slane %v663, 4
        %v669 = vshrl.u32 %v416, 16
        %v671 = vrot.slane %v669, 7
        %v672 = vshll.u32 %v416, 16
        %v674 = vor.u32 %v671, %v672
        %v675 = vsel %vm421, %v667, %v674
        %v676 = vrot.slane %v671, 4
        %v678 = vshrl.u32 %v417, 16
        %v680 = vrot.slane %v678, 7
        %v681 = vshll.u32 %v417, 16
        %v683 = vor.u32 %v680, %v681
        %v684 = vrot.slane %v680, 4
        %v686 = vshrl.u32 %v418, 16
        %v688 = vrot.slane %v686, 7
        %v689 = vshll.u32 %v418, 16
        %v691 = vor.u32 %v688, %v689
        %v692 = vsel %vm421, %v684, %v691
        %v693 = vrot.slane %v688, 4
        %s742 = scalar_lea.vmem [#allocation2], 12
        %vm743 = vcmask 60416
        %vm744 = vsmask.f32 7938
        %vm745 = vmand %vm743, %vm744
        %v746 = vld [vmem:[%s742] sm:$0xf]
        %v747 = vsel %vm745, %v428, %v746
        %748 = vst [vmem:[%s742] sm:$0xf] %v747
        %749 = vst.msk [vmem:[%s742 + $0x4] sm:$0xf] %vm331, %v437
        %vm750 = vcmask 57344
        %vm751 = vmand %vm750, %vm419
        %v752 = vld [vmem:[%s742 + $0x8] sm:$0x1]
        %v753 = vsel %vm751, %v438, %v752
        %754 = vst [vmem:[%s742 + $0x8] sm:$0x1] %v753
        %v755 = vld [vmem:[%s742 + $0xc] sm:$0xf]
        %v756 = vsel %vm745, %v445, %v755
        %757 = vst [vmem:[%s742 + $0xc] sm:$0xf] %v756
        %758 = vst.msk [vmem:[%s742 + $0x10] sm:$0xf] %vm331, %v454
        %v759 = vld [vmem:[%s742 + $0x14] sm:$0x1]
        %v760 = vsel %vm751, %v455, %v759
        %761 = vst [vmem:[%s742 + $0x14] sm:$0x1] %v760
        %v762 = vld [vmem:[%s742 + $0x18] sm:$0xf]
        %v763 = vsel %vm745, %v462, %v762
        %764 = vst [vmem:[%s742 + $0x18] sm:$0xf] %v763
        %765 = vst.msk [vmem:[%s742 + $0x1c] sm:$0xf] %vm331, %v471
        %v766 = vld [vmem:[%s742 + $0x20] sm:$0x1]
        %v767 = vsel %vm751, %v472, %v766
        %768 = vst [vmem:[%s742 + $0x20] sm:$0x1] %v767
        %v769 = vld [vmem:[%s742 + $0x24] sm:$0xf]
        %v770 = vsel %vm745, %v479, %v769
        %771 = vst [vmem:[%s742 + $0x24] sm:$0xf] %v770
        %772 = vst.msk [vmem:[%s742 + $0x28] sm:$0xf] %vm331, %v488
        %v773 = vld [vmem:[%s742 + $0x2c] sm:$0x1]
        %v774 = vsel %vm751, %v489, %v773
        %775 = vst [vmem:[%s742 + $0x2c] sm:$0x1] %v774
        %v776 = vld [vmem:[%s742 + $0x30] sm:$0xf]
        %v777 = vsel %vm745, %v496, %v776
        %778 = vst [vmem:[%s742 + $0x30] sm:$0xf] %v777
        %779 = vst.msk [vmem:[%s742 + $0x34] sm:$0xf] %vm331, %v505
        %v780 = vld [vmem:[%s742 + $0x38] sm:$0x1]
        %v781 = vsel %vm751, %v506, %v780
        %782 = vst [vmem:[%s742 + $0x38] sm:$0x1] %v781
        %v783 = vld [vmem:[%s742 + $0x3c] sm:$0xf]
        %v784 = vsel %vm745, %v513, %v783
        %785 = vst [vmem:[%s742 + $0x3c] sm:$0xf] %v784
        %786 = vst.msk [vmem:[%s742 + $0x40] sm:$0xf] %vm331, %v522
        %v787 = vld [vmem:[%s742 + $0x44] sm:$0x1]
        %v788 = vsel %vm751, %v523, %v787
        %789 = vst [vmem:[%s742 + $0x44] sm:$0x1] %v788
        %v790 = vld [vmem:[%s742 + $0x48] sm:$0xf]
        %v791 = vsel %vm745, %v530, %v790
        %792 = vst [vmem:[%s742 + $0x48] sm:$0xf] %v791
        %793 = vst.msk [vmem:[%s742 + $0x4c] sm:$0xf] %vm331, %v539
        %v794 = vld [vmem:[%s742 + $0x50] sm:$0x1]
        %v795 = vsel %vm751, %v540, %v794
        %796 = vst [vmem:[%s742 + $0x50] sm:$0x1] %v795
        %v797 = vld [vmem:[%s742 + $0x54] sm:$0xf]
        %v798 = vsel %vm745, %v547, %v797
        %799 = vst [vmem:[%s742 + $0x54] sm:$0xf] %v798
        %800 = vst.msk [vmem:[%s742 + $0x58] sm:$0xf] %vm331, %v556
        %v801 = vld [vmem:[%s742 + $0x5c] sm:$0x1]
        %v802 = vsel %vm751, %v557, %v801
        %803 = vst [vmem:[%s742 + $0x5c] sm:$0x1] %v802
        %v804 = vld [vmem:[%s742 + $0x60] sm:$0xf]
        %v805 = vsel %vm745, %v564, %v804
        %806 = vst [vmem:[%s742 + $0x60] sm:$0xf] %v805
        %807 = vst.msk [vmem:[%s742 + $0x64] sm:$0xf] %vm331, %v573
        %v808 = vld [vmem:[%s742 + $0x68] sm:$0x1]
        %v809 = vsel %vm751, %v574, %v808
        %810 = vst [vmem:[%s742 + $0x68] sm:$0x1] %v809
        %v811 = vld [vmem:[%s742 + $0x6c] sm:$0xf]
        %v812 = vsel %vm745, %v581, %v811
        %813 = vst [vmem:[%s742 + $0x6c] sm:$0xf] %v812
        %814 = vst.msk [vmem:[%s742 + $0x70] sm:$0xf] %vm331, %v590
        %v815 = vld [vmem:[%s742 + $0x74] sm:$0x1]
        %v816 = vsel %vm751, %v591, %v815
        %817 = vst [vmem:[%s742 + $0x74] sm:$0x1] %v816
        %v818 = vld [vmem:[%s742 + $0x78] sm:$0xf]
        %v819 = vsel %vm745, %v598, %v818
        %820 = vst [vmem:[%s742 + $0x78] sm:$0xf] %v819
        %821 = vst.msk [vmem:[%s742 + $0x7c] sm:$0xf] %vm331, %v607
        %v822 = vld [vmem:[%s742 + $0x80] sm:$0x1]
        %v823 = vsel %vm751, %v608, %v822
        %824 = vst [vmem:[%s742 + $0x80] sm:$0x1] %v823
        %v825 = vld [vmem:[%s742 + $0x84] sm:$0xf]
        %v826 = vsel %vm745, %v615, %v825
        %827 = vst [vmem:[%s742 + $0x84] sm:$0xf] %v826
        %828 = vst.msk [vmem:[%s742 + $0x88] sm:$0xf] %vm331, %v624
        %v829 = vld [vmem:[%s742 + $0x8c] sm:$0x1]
        %v830 = vsel %vm751, %v625, %v829
        %831 = vst [vmem:[%s742 + $0x8c] sm:$0x1] %v830
        %v832 = vld [vmem:[%s742 + $0x90] sm:$0xf]
        %v833 = vsel %vm745, %v632, %v832
        %834 = vst [vmem:[%s742 + $0x90] sm:$0xf] %v833
        %835 = vst.msk [vmem:[%s742 + $0x94] sm:$0xf] %vm331, %v641
        %v836 = vld [vmem:[%s742 + $0x98] sm:$0x1]
        %v837 = vsel %vm751, %v642, %v836
        %838 = vst [vmem:[%s742 + $0x98] sm:$0x1] %v837
        %v839 = vld [vmem:[%s742 + $0x9c] sm:$0xf]
        %v840 = vsel %vm745, %v649, %v839
        %841 = vst [vmem:[%s742 + $0x9c] sm:$0xf] %v840
        %842 = vst.msk [vmem:[%s742 + $0xa0] sm:$0xf] %vm331, %v658
        %v843 = vld [vmem:[%s742 + $0xa4] sm:$0x1]
        %v844 = vsel %vm751, %v659, %v843
        %845 = vst [vmem:[%s742 + $0xa4] sm:$0x1] %v844
        %v846 = vld [vmem:[%s742 + $0xa8] sm:$0xf]
        %v847 = vsel %vm745, %v666, %v846
        %848 = vst [vmem:[%s742 + $0xa8] sm:$0xf] %v847
        %849 = vst.msk [vmem:[%s742 + $0xac] sm:$0xf] %vm331, %v675
        %v850 = vld [vmem:[%s742 + $0xb0] sm:$0x1]
        %v851 = vsel %vm751, %v676, %v850
        %852 = vst [vmem:[%s742 + $0xb0] sm:$0x1] %v851
        %v853 = vld [vmem:[%s742 + $0xb4] sm:$0xf]
        %v854 = vsel %vm745, %v683, %v853
        %855 = vst [vmem:[%s742 + $0xb4] sm:$0xf] %v854
        %856 = vst.msk [vmem:[%s742 + $0xb8] sm:$0xf] %vm331, %v692
        %v857 = vld [vmem:[%s742 + $0xbc] sm:$0x1]
        %v858 = vsel %vm751, %v693, %v857
        %859 = vst [vmem:[%s742 + $0xbc] sm:$0x1] %v858
        %v860 = vld [vmem:[#allocation2] sm:$0xf]
        %v861 = vld [vmem:[#allocation2 + $0x4] sm:$0xf]
        %v862 = vld [vmem:[#allocation2 + $0x8] sm:$0x1]
        %v863 = vld [vmem:[#allocation2 + $0xc] sm:$0xf]
        %v864 = vld [vmem:[#allocation2 + $0x10] sm:$0xf]
        %v865 = vld [vmem:[#allocation2 + $0x14] sm:$0x1]
        %v866 = vld [vmem:[#allocation2 + $0x18] sm:$0xf]
        %v867 = vld [vmem:[#allocation2 + $0x1c] sm:$0xf]
        %v868 = vld [vmem:[#allocation2 + $0x20] sm:$0x1]
        %v869 = vld [vmem:[#allocation2 + $0x24] sm:$0xf]
        %v870 = vld [vmem:[#allocation2 + $0x28] sm:$0xf]
        %v871 = vld [vmem:[#allocation2 + $0x2c] sm:$0x1]
        %v872 = vld [vmem:[#allocation2 + $0x30] sm:$0xf]
        %v873 = vld [vmem:[#allocation2 + $0x34] sm:$0xf]
        %v874 = vld [vmem:[#allocation2 + $0x38] sm:$0x1]
        %v875 = vld [vmem:[#allocation2 + $0x3c] sm:$0xf]
        %v876 = vld [vmem:[#allocation2 + $0x40] sm:$0xf]
        %v877 = vld [vmem:[#allocation2 + $0x44] sm:$0x1]
        %v878 = vld [vmem:[#allocation2 + $0x48] sm:$0xf]
        %v879 = vld [vmem:[#allocation2 + $0x4c] sm:$0xf]
        %v880 = vld [vmem:[#allocation2 + $0x50] sm:$0x1]
        %v881 = vld [vmem:[#allocation2 + $0x54] sm:$0xf]
        %v882 = vld [vmem:[#allocation2 + $0x58] sm:$0xf]
        %v883 = vld [vmem:[#allocation2 + $0x5c] sm:$0x1]
        %v884 = vld [vmem:[#allocation2 + $0x60] sm:$0xf]
        %v885 = vld [vmem:[#allocation2 + $0x64] sm:$0xf]
        %v886 = vld [vmem:[#allocation2 + $0x68] sm:$0x1]
        %v887 = vld [vmem:[#allocation2 + $0x6c] sm:$0xf]
        %v888 = vld [vmem:[#allocation2 + $0x70] sm:$0xf]
        %v889 = vld [vmem:[#allocation2 + $0x74] sm:$0x1]
        %v890 = vld [vmem:[#allocation2 + $0x78] sm:$0xf]
        %v891 = vld [vmem:[#allocation2 + $0x7c] sm:$0xf]
        %v892 = vld [vmem:[#allocation2 + $0x80] sm:$0x1]
        %v893 = vld [vmem:[#allocation2 + $0x84] sm:$0xf]
        %v894 = vld [vmem:[#allocation2 + $0x88] sm:$0xf]
        %v895 = vld [vmem:[#allocation2 + $0x8c] sm:$0x1]
        %v896 = vld [vmem:[#allocation2 + $0x90] sm:$0xf]
        %v897 = vld [vmem:[#allocation2 + $0x94] sm:$0xf]
        %v898 = vld [vmem:[#allocation2 + $0x98] sm:$0x1]
        %v899 = vld [vmem:[#allocation2 + $0x9c] sm:$0xf]
        %v900 = vld [vmem:[#allocation2 + $0xa0] sm:$0xf]
        %v901 = vld [vmem:[#allocation2 + $0xa4] sm:$0x1]
        %v902 = vld [vmem:[#allocation2 + $0xa8] sm:$0xf]
        %v903 = vld [vmem:[#allocation2 + $0xac] sm:$0xf]
        %v904 = vld [vmem:[#allocation2 + $0xb0] sm:$0x1]
        %v905 = vld [vmem:[#allocation2 + $0xb4] sm:$0xf]
        %v906 = vld [vmem:[#allocation2 + $0xb8] sm:$0xf]
        %v907 = vld [vmem:[#allocation2 + $0xbc] sm:$0x1]
        %v908 = vld [vmem:[#allocation2 + $0xc0] sm:$0xf]
        %v909 = vld [vmem:[#allocation2 + $0xc4] sm:$0xf]
        %v910 = vld [vmem:[#allocation2 + $0xc8] sm:$0x1]
        %v911 = vld [vmem:[#allocation2 + $0xcc] sm:$0xf]
        %v912 = vld [vmem:[#allocation2 + $0xd0] sm:$0xf]
        %v913 = vld [vmem:[#allocation2 + $0xd4] sm:$0x1]
        %vm914 = vsmask.f32 3328
        %vm915 = vsmask.f32 7440
        %vm916 = vmor %vm914, %vm915
        %v918 = vshrl.u32 %v860, 16
        %v920 = vrot.slane %v918, 4
        %v921 = vshll.u32 %v860, 16
        %v923 = vrot.slane %v921, 5
        %v924 = vor.u32 %v920, %v923
        %v925 = vrot.slane %v924, 4
        %v927 = vshll.u32 %v861, 16
        %v929 = vrot.slane %v927, 5
        %v930 = vsel %vm916, %v925, %v929
        %v931 = vshrl.u32 %v861, 16
        %v933 = vrot.slane %v931, 4
        %v934 = vor.u32 %v933, %v929
        %v935 = vrot.slane %v934, 4
        %v937 = vshll.u32 %v862, 16
        %v939 = vrot.slane %v937, 5
        %v940 = vsel %vm916, %v935, %v939
        %v942 = vshrl.u32 %v863, 16
        %v944 = vrot.slane %v942, 4
        %v945 = vshll.u32 %v863, 16
        %v947 = vrot.slane %v945, 5
        %v948 = vor.u32 %v944, %v947
        %v949 = vrot.slane %v948, 4
        %v951 = vshll.u32 %v864, 16
        %v953 = vrot.slane %v951, 5
        %v954 = vsel %vm916, %v949, %v953
        %v955 = vshrl.u32 %v864, 16
        %v957 = vrot.slane %v955, 4
        %v958 = vor.u32 %v957, %v953
        %v959 = vrot.slane %v958, 4
        %v961 = vshll.u32 %v865, 16
        %v963 = vrot.slane %v961, 5
        %v964 = vsel %vm916, %v959, %v963
        %v966 = vshrl.u32 %v866, 16
        %v968 = vrot.slane %v966, 4
        %v969 = vshll.u32 %v866, 16
        %v971 = vrot.slane %v969, 5
        %v972 = vor.u32 %v968, %v971
        %v973 = vrot.slane %v972, 4
        %v975 = vshll.u32 %v867, 16
        %v977 = vrot.slane %v975, 5
        %v978 = vsel %vm916, %v973, %v977
        %v979 = vshrl.u32 %v867, 16
        %v981 = vrot.slane %v979, 4
        %v982 = vor.u32 %v981, %v977
        %v983 = vrot.slane %v982, 4
        %v985 = vshll.u32 %v868, 16
        %v987 = vrot.slane %v985, 5
        %v988 = vsel %vm916, %v983, %v987
        %v990 = vshrl.u32 %v869, 16
        %v992 = vrot.slane %v990, 4
        %v993 = vshll.u32 %v869, 16
        %v995 = vrot.slane %v993, 5
        %v996 = vor.u32 %v992, %v995
        %v997 = vrot.slane %v996, 4
        %v999 = vshll.u32 %v870, 16
        %v1001 = vrot.slane %v999, 5
        %v1002 = vsel %vm916, %v997, %v1001
        %v1003 = vshrl.u32 %v870, 16
        %v1005 = vrot.slane %v1003, 4
        %v1006 = vor.u32 %v1005, %v1001
        %v1007 = vrot.slane %v1006, 4
        %v1009 = vshll.u32 %v871, 16
        %v1011 = vrot.slane %v1009, 5
        %v1012 = vsel %vm916, %v1007, %v1011
        %v1014 = vshrl.u32 %v872, 16
        %v1016 = vrot.slane %v1014, 4
        %v1017 = vshll.u32 %v872, 16
        %v1019 = vrot.slane %v1017, 5
        %v1020 = vor.u32 %v1016, %v1019
        %v1021 = vrot.slane %v1020, 4
        %v1023 = vshll.u32 %v873, 16
        %v1025 = vrot.slane %v1023, 5
        %v1026 = vsel %vm916, %v1021, %v1025
        %v1027 = vshrl.u32 %v873, 16
        %v1029 = vrot.slane %v1027, 4
        %v1030 = vor.u32 %v1029, %v1025
        %v1031 = vrot.slane %v1030, 4
        %v1033 = vshll.u32 %v874, 16
        %v1035 = vrot.slane %v1033, 5
        %v1036 = vsel %vm916, %v1031, %v1035
        %v1038 = vshrl.u32 %v875, 16
        %v1040 = vrot.slane %v1038, 4
        %v1041 = vshll.u32 %v875, 16
        %v1043 = vrot.slane %v1041, 5
        %v1044 = vor.u32 %v1040, %v1043
        %v1045 = vrot.slane %v1044, 4
        %v1047 = vshll.u32 %v876, 16
        %v1049 = vrot.slane %v1047, 5
        %v1050 = vsel %vm916, %v1045, %v1049
        %v1051 = vshrl.u32 %v876, 16
        %v1053 = vrot.slane %v1051, 4
        %v1054 = vor.u32 %v1053, %v1049
        %v1055 = vrot.slane %v1054, 4
        %v1057 = vshll.u32 %v877, 16
        %v1059 = vrot.slane %v1057, 5
        %v1060 = vsel %vm916, %v1055, %v1059
        %v1062 = vshrl.u32 %v878, 16
        %v1064 = vrot.slane %v1062, 4
        %v1065 = vshll.u32 %v878, 16
        %v1067 = vrot.slane %v1065, 5
        %v1068 = vor.u32 %v1064, %v1067
        %v1069 = vrot.slane %v1068, 4
        %v1071 = vshll.u32 %v879, 16
        %v1073 = vrot.slane %v1071, 5
        %v1074 = vsel %vm916, %v1069, %v1073
        %v1075 = vshrl.u32 %v879, 16
        %v1077 = vrot.slane %v1075, 4
        %v1078 = vor.u32 %v1077, %v1073
        %v1079 = vrot.slane %v1078, 4
        %v1081 = vshll.u32 %v880, 16
        %v1083 = vrot.slane %v1081, 5
        %v1084 = vsel %vm916, %v1079, %v1083
        %v1086 = vshrl.u32 %v881, 16
        %v1088 = vrot.slane %v1086, 4
        %v1089 = vshll.u32 %v881, 16
        %v1091 = vrot.slane %v1089, 5
        %v1092 = vor.u32 %v1088, %v1091
        %v1093 = vrot.slane %v1092, 4
        %v1095 = vshll.u32 %v882, 16
        %v1097 = vrot.slane %v1095, 5
        %v1098 = vsel %vm916, %v1093, %v1097
        %v1099 = vshrl.u32 %v882, 16
        %v1101 = vrot.slane %v1099, 4
        %v1102 = vor.u32 %v1101, %v1097
        %v1103 = vrot.slane %v1102, 4
        %v1105 = vshll.u32 %v883, 16
        %v1107 = vrot.slane %v1105, 5
        %v1108 = vsel %vm916, %v1103, %v1107
        %v1110 = vshrl.u32 %v884, 16
        %v1112 = vrot.slane %v1110, 4
        %v1113 = vshll.u32 %v884, 16
        %v1115 = vrot.slane %v1113, 5
        %v1116 = vor.u32 %v1112, %v1115
        %v1117 = vrot.slane %v1116, 4
        %v1119 = vshll.u32 %v885, 16
        %v1121 = vrot.slane %v1119, 5
        %v1122 = vsel %vm916, %v1117, %v1121
        %v1123 = vshrl.u32 %v885, 16
        %v1125 = vrot.slane %v1123, 4
        %v1126 = vor.u32 %v1125, %v1121
        %v1127 = vrot.slane %v1126, 4
        %v1129 = vshll.u32 %v886, 16
        %v1131 = vrot.slane %v1129, 5
        %v1132 = vsel %vm916, %v1127, %v1131
        %v1134 = vshrl.u32 %v887, 16
        %v1136 = vrot.slane %v1134, 4
        %v1137 = vshll.u32 %v887, 16
        %v1139 = vrot.slane %v1137, 5
        %v1140 = vor.u32 %v1136, %v1139
        %v1141 = vrot.slane %v1140, 4
        %v1143 = vshll.u32 %v888, 16
        %v1145 = vrot.slane %v1143, 5
        %v1146 = vsel %vm916, %v1141, %v1145
        %v1147 = vshrl.u32 %v888, 16
        %v1149 = vrot.slane %v1147, 4
        %v1150 = vor.u32 %v1149, %v1145
        %v1151 = vrot.slane %v1150, 4
        %v1153 = vshll.u32 %v889, 16
        %v1155 = vrot.slane %v1153, 5
        %v1156 = vsel %vm916, %v1151, %v1155
        %v1158 = vshrl.u32 %v890, 16
        %v1160 = vrot.slane %v1158, 4
        %v1161 = vshll.u32 %v890, 16
        %v1163 = vrot.slane %v1161, 5
        %v1164 = vor.u32 %v1160, %v1163
        %v1165 = vrot.slane %v1164, 4
        %v1167 = vshll.u32 %v891, 16
        %v1169 = vrot.slane %v1167, 5
        %v1170 = vsel %vm916, %v1165, %v1169
        %v1171 = vshrl.u32 %v891, 16
        %v1173 = vrot.slane %v1171, 4
        %v1174 = vor.u32 %v1173, %v1169
        %v1175 = vrot.slane %v1174, 4
        %v1177 = vshll.u32 %v892, 16
        %v1179 = vrot.slane %v1177, 5
        %v1180 = vsel %vm916, %v1175, %v1179
        %v1182 = vshrl.u32 %v893, 16
        %v1184 = vrot.slane %v1182, 4
        %v1185 = vshll.u32 %v893, 16
        %v1187 = vrot.slane %v1185, 5
        %v1188 = vor.u32 %v1184, %v1187
        %v1189 = vrot.slane %v1188, 4
        %v1191 = vshll.u32 %v894, 16
        %v1193 = vrot.slane %v1191, 5
        %v1194 = vsel %vm916, %v1189, %v1193
        %v1195 = vshrl.u32 %v894, 16
        %v1197 = vrot.slane %v1195, 4
        %v1198 = vor.u32 %v1197, %v1193
        %v1199 = vrot.slane %v1198, 4
        %v1201 = vshll.u32 %v895, 16
        %v1203 = vrot.slane %v1201, 5
        %v1204 = vsel %vm916, %v1199, %v1203
        %v1206 = vshrl.u32 %v896, 16
        %v1208 = vrot.slane %v1206, 4
        %v1209 = vshll.u32 %v896, 16
        %v1211 = vrot.slane %v1209, 5
        %v1212 = vor.u32 %v1208, %v1211
        %v1213 = vrot.slane %v1212, 4
        %v1215 = vshll.u32 %v897, 16
        %v1217 = vrot.slane %v1215, 5
        %v1218 = vsel %vm916, %v1213, %v1217
        %v1219 = vshrl.u32 %v897, 16
        %v1221 = vrot.slane %v1219, 4
        %v1222 = vor.u32 %v1221, %v1217
        %v1223 = vrot.slane %v1222, 4
        %v1225 = vshll.u32 %v898, 16
        %v1227 = vrot.slane %v1225, 5
        %v1228 = vsel %vm916, %v1223, %v1227
        %v1230 = vshrl.u32 %v899, 16
        %v1232 = vrot.slane %v1230, 4
        %v1233 = vshll.u32 %v899, 16
        %v1235 = vrot.slane %v1233, 5
        %v1236 = vor.u32 %v1232, %v1235
        %v1237 = vrot.slane %v1236, 4
        %v1239 = vshll.u32 %v900, 16
        %v1241 = vrot.slane %v1239, 5
        %v1242 = vsel %vm916, %v1237, %v1241
        %v1243 = vshrl.u32 %v900, 16
        %v1245 = vrot.slane %v1243, 4
        %v1246 = vor.u32 %v1245, %v1241
        %v1247 = vrot.slane %v1246, 4
        %v1249 = vshll.u32 %v901, 16
        %v1251 = vrot.slane %v1249, 5
        %v1252 = vsel %vm916, %v1247, %v1251
        %v1254 = vshrl.u32 %v902, 16
        %v1256 = vrot.slane %v1254, 4
        %v1257 = vshll.u32 %v902, 16
        %v1259 = vrot.slane %v1257, 5
        %v1260 = vor.u32 %v1256, %v1259
        %v1261 = vrot.slane %v1260, 4
        %v1263 = vshll.u32 %v903, 16
        %v1265 = vrot.slane %v1263, 5
        %v1266 = vsel %vm916, %v1261, %v1265
        %v1267 = vshrl.u32 %v903, 16
        %v1269 = vrot.slane %v1267, 4
        %v1270 = vor.u32 %v1269, %v1265
        %v1271 = vrot.slane %v1270, 4
        %v1273 = vshll.u32 %v904, 16
        %v1275 = vrot.slane %v1273, 5
        %v1276 = vsel %vm916, %v1271, %v1275
        %v1278 = vshrl.u32 %v905, 16
        %v1280 = vrot.slane %v1278, 4
        %v1281 = vshll.u32 %v905, 16
        %v1283 = vrot.slane %v1281, 5
        %v1284 = vor.u32 %v1280, %v1283
        %v1285 = vrot.slane %v1284, 4
        %v1287 = vshll.u32 %v906, 16
        %v1289 = vrot.slane %v1287, 5
        %v1290 = vsel %vm916, %v1285, %v1289
        %v1291 = vshrl.u32 %v906, 16
        %v1293 = vrot.slane %v1291, 4
        %v1294 = vor.u32 %v1293, %v1289
        %v1295 = vrot.slane %v1294, 4
        %v1297 = vshll.u32 %v907, 16
        %v1299 = vrot.slane %v1297, 5
        %v1300 = vsel %vm916, %v1295, %v1299
        %vm1349 = vcmask 1042432
        %vm1350 = vcmask 1046532
        %vm1351 = vmor %vm1349, %vm1350
        %v1352 = vrot.slane %v860, 5
        %v1353 = vrot.slane %v1352, 4
        %v1354 = vrot.slane %v861, 5
        %v1355 = vsel %vm1351, %v1353, %v1354
        %v1356 = vrot.slane %v1354, 4
        %v1357 = vrot.slane %v862, 5
        %v1358 = vsel %vm1351, %v1356, %v1357
        %v1359 = vrot.slane %v863, 5
        %v1360 = vrot.slane %v1359, 4
        %v1361 = vrot.slane %v864, 5
        %v1362 = vsel %vm1351, %v1360, %v1361
        %v1363 = vrot.slane %v1361, 4
        %v1364 = vrot.slane %v865, 5
        %v1365 = vsel %vm1351, %v1363, %v1364
        %v1366 = vrot.slane %v866, 5
        %v1367 = vrot.slane %v1366, 4
        %v1368 = vrot.slane %v867, 5
        %v1369 = vsel %vm1351, %v1367, %v1368
        %v1370 = vrot.slane %v1368, 4
        %v1371 = vrot.slane %v868, 5
        %v1372 = vsel %vm1351, %v1370, %v1371
        %v1373 = vrot.slane %v869, 5
        %v1374 = vrot.slane %v1373, 4
        %v1375 = vrot.slane %v870, 5
        %v1376 = vsel %vm1351, %v1374, %v1375
        %v1377 = vrot.slane %v1375, 4
        %v1378 = vrot.slane %v871, 5
        %v1379 = vsel %vm1351, %v1377, %v1378
        %v1380 = vrot.slane %v872, 5
        %v1381 = vrot.slane %v1380, 4
        %v1382 = vrot.slane %v873, 5
        %v1383 = vsel %vm1351, %v1381, %v1382
        %v1384 = vrot.slane %v1382, 4
        %v1385 = vrot.slane %v874, 5
        %v1386 = vsel %vm1351, %v1384, %v1385
        %v1387 = vrot.slane %v875, 5
        %v1388 = vrot.slane %v1387, 4
        %v1389 = vrot.slane %v876, 5
        %v1390 = vsel %vm1351, %v1388, %v1389
        %v1391 = vrot.slane %v1389, 4
        %v1392 = vrot.slane %v877, 5
        %v1393 = vsel %vm1351, %v1391, %v1392
        %v1394 = vrot.slane %v878, 5
        %v1395 = vrot.slane %v1394, 4
        %v1396 = vrot.slane %v879, 5
        %v1397 = vsel %vm1351, %v1395, %v1396
        %v1398 = vrot.slane %v1396, 4
        %v1399 = vrot.slane %v880, 5
        %v1400 = vsel %vm1351, %v1398, %v1399
        %v1401 = vrot.slane %v881, 5
        %v1402 = vrot.slane %v1401, 4
        %v1403 = vrot.slane %v882, 5
        %v1404 = vsel %vm1351, %v1402, %v1403
        %v1405 = vrot.slane %v1403, 4
        %v1406 = vrot.slane %v883, 5
        %v1407 = vsel %vm1351, %v1405, %v1406
        %v1408 = vrot.slane %v884, 5
        %v1409 = vrot.slane %v1408, 4
        %v1410 = vrot.slane %v885, 5
        %v1411 = vsel %vm1351, %v1409, %v1410
        %v1412 = vrot.slane %v1410, 4
        %v1413 = vrot.slane %v886, 5
        %v1414 = vsel %vm1351, %v1412, %v1413
        %v1415 = vrot.slane %v887, 5
        %v1416 = vrot.slane %v1415, 4
        %v1417 = vrot.slane %v888, 5
        %v1418 = vsel %vm1351, %v1416, %v1417
        %v1419 = vrot.slane %v1417, 4
        %v1420 = vrot.slane %v889, 5
        %v1421 = vsel %vm1351, %v1419, %v1420
        %v1422 = vrot.slane %v890, 5
        %v1423 = vrot.slane %v1422, 4
        %v1424 = vrot.slane %v891, 5
        %v1425 = vsel %vm1351, %v1423, %v1424
        %v1426 = vrot.slane %v1424, 4
        %v1427 = vrot.slane %v892, 5
        %v1428 = vsel %vm1351, %v1426, %v1427
        %v1429 = vrot.slane %v893, 5
        %v1430 = vrot.slane %v1429, 4
        %v1431 = vrot.slane %v894, 5
        %v1432 = vsel %vm1351, %v1430, %v1431
        %v1433 = vrot.slane %v1431, 4
        %v1434 = vrot.slane %v895, 5
        %v1435 = vsel %vm1351, %v1433, %v1434
        %v1436 = vrot.slane %v896, 5
        %v1437 = vrot.slane %v1436, 4
        %v1438 = vrot.slane %v897, 5
        %v1439 = vsel %vm1351, %v1437, %v1438
        %v1440 = vrot.slane %v1438, 4
        %v1441 = vrot.slane %v898, 5
        %v1442 = vsel %vm1351, %v1440, %v1441
        %v1443 = vrot.slane %v899, 5
        %v1444 = vrot.slane %v1443, 4
        %v1445 = vrot.slane %v900, 5
        %v1446 = vsel %vm1351, %v1444, %v1445
        %v1447 = vrot.slane %v1445, 4
        %v1448 = vrot.slane %v901, 5
        %v1449 = vsel %vm1351, %v1447, %v1448
        %v1450 = vrot.slane %v902, 5
        %v1451 = vrot.slane %v1450, 4
        %v1452 = vrot.slane %v903, 5
        %v1453 = vsel %vm1351, %v1451, %v1452
        %v1454 = vrot.slane %v1452, 4
        %v1455 = vrot.slane %v904, 5
        %v1456 = vsel %vm1351, %v1454, %v1455
        %v1457 = vrot.slane %v905, 5
        %v1458 = vrot.slane %v1457, 4
        %v1459 = vrot.slane %v906, 5
        %v1460 = vsel %vm1351, %v1458, %v1459
        %v1461 = vrot.slane %v1459, 4
        %v1462 = vrot.slane %v907, 5
        %v1463 = vsel %vm1351, %v1461, %v1462
        %v1465 = vshrl.u32 %v908, 16
        %v1467 = vrot.slane %v1465, 4
        %v1468 = vshll.u32 %v908, 16
        %v1470 = vrot.slane %v1468, 5
        %v1471 = vor.u32 %v1467, %v1470
        %v1472 = vrot.slane %v1471, 4
        %v1474 = vshll.u32 %v909, 16
        %v1476 = vrot.slane %v1474, 5
        %v1477 = vsel %vm916, %v1472, %v1476
        %v1478 = vshrl.u32 %v909, 16
        %v1480 = vrot.slane %v1478, 4
        %v1481 = vor.u32 %v1480, %v1476
        %v1482 = vrot.slane %v1481, 4
        %v1484 = vshll.u32 %v910, 16
        %v1486 = vrot.slane %v1484, 5
        %v1487 = vsel %vm916, %v1482, %v1486
        %v1491 = vrot.slane %v908, 5
        %v1492 = vrot.slane %v1491, 4
        %v1493 = vrot.slane %v909, 5
        %v1494 = vsel %vm1351, %v1492, %v1493
        %v1495 = vrot.slane %v1493, 4
        %v1496 = vrot.slane %v910, 5
        %v1497 = vsel %vm1351, %v1495, %v1496
        %v1499 = vshrl.u32 %v911, 16
        %v1501 = vrot.slane %v1499, 4
        %v1502 = vshll.u32 %v911, 16
        %v1504 = vrot.slane %v1502, 5
        %v1505 = vor.u32 %v1501, %v1504
        %v1506 = vrot.slane %v1505, 4
        %v1508 = vshll.u32 %v912, 16
        %v1510 = vrot.slane %v1508, 5
        %v1511 = vsel %vm916, %v1506, %v1510
        %v1512 = vshrl.u32 %v912, 16
        %v1514 = vrot.slane %v1512, 4
        %v1515 = vor.u32 %v1514, %v1510
        %v1516 = vrot.slane %v1515, 4
        %v1518 = vshll.u32 %v913, 16
        %v1520 = vrot.slane %v1518, 5
        %v1521 = vsel %vm916, %v1516, %v1520
        %v1525 = vrot.slane %v911, 5
        %v1526 = vrot.slane %v1525, 4
        %v1527 = vrot.slane %v912, 5
        %v1528 = vsel %vm1351, %v1526, %v1527
        %v1529 = vrot.slane %v1527, 4
        %v1530 = vrot.slane %v913, 5
        %v1531 = vsel %vm1351, %v1529, %v1530
        %v1532 = vunpack.c.l.b16 %v860
        %v1533 = vunpack.c.l.b16 %v861
        %v1534 = vunpack.c.l.b16 %v863
        %v1535 = vunpack.c.l.b16 %v864
        %v1536 = vunpack.c.l.b16 %v866
        %v1537 = vunpack.c.l.b16 %v867
        %v1538 = vunpack.c.l.b16 %v869
        %v1539 = vunpack.c.l.b16 %v870
        %v1540 = vunpack.c.l.b16 %v872
        %v1541 = vunpack.c.l.b16 %v873
        %v1542 = vunpack.c.l.b16 %v875
        %v1543 = vunpack.c.l.b16 %v876
        %v1544 = vunpack.c.l.b16 %v878
        %v1545 = vunpack.c.l.b16 %v879
        %v1546 = vunpack.c.l.b16 %v881
        %v1547 = vunpack.c.l.b16 %v882
        %v1548 = vunpack.c.l.b16 %v884
        %v1549 = vunpack.c.l.b16 %v885
        %v1550 = vunpack.c.l.b16 %v887
        %v1551 = vunpack.c.l.b16 %v888
        %v1552 = vunpack.c.l.b16 %v890
        %v1553 = vunpack.c.l.b16 %v891
        %v1554 = vunpack.c.l.b16 %v893
        %v1555 = vunpack.c.l.b16 %v894
        %v1556 = vunpack.c.l.b16 %v896
        %v1557 = vunpack.c.l.b16 %v897
        %v1558 = vunpack.c.l.b16 %v899
        %v1559 = vunpack.c.l.b16 %v900
        %v1560 = vunpack.c.l.b16 %v902
        %v1561 = vunpack.c.l.b16 %v903
        %v1562 = vunpack.c.l.b16 %v905
        %v1563 = vunpack.c.l.b16 %v906
        %v1564 = vpack.c.b16 %v1533, %v1532
        %v1565 = vpack.c.b16 %v1535, %v1534
        %v1566 = vpack.c.b16 %v1537, %v1536
        %v1567 = vpack.c.b16 %v1539, %v1538
        %v1568 = vpack.c.b16 %v1541, %v1540
        %v1569 = vpack.c.b16 %v1543, %v1542
        %v1570 = vpack.c.b16 %v1545, %v1544
        %v1571 = vpack.c.b16 %v1547, %v1546
        %v1572 = vpack.c.b16 %v1549, %v1548
        %v1573 = vpack.c.b16 %v1551, %v1550
        %v1574 = vpack.c.b16 %v1553, %v1552
        %v1575 = vpack.c.b16 %v1555, %v1554
        %v1576 = vpack.c.b16 %v1557, %v1556
        %v1577 = vpack.c.b16 %v1559, %v1558
        %v1578 = vpack.c.b16 %v1561, %v1560
        %v1579 = vpack.c.b16 %v1563, %v1562
        %v1580 = vunpack.c.l.b16 %v930
        %v1581 = vunpack.c.l.b16 %v940
        %v1582 = vunpack.c.l.b16 %v954
        %v1583 = vunpack.c.l.b16 %v964
        %v1584 = vunpack.c.l.b16 %v978
        %v1585 = vunpack.c.l.b16 %v988
        %v1586 = vunpack.c.l.b16 %v1002
        %v1587 = vunpack.c.l.b16 %v1012
        %v1588 = vunpack.c.l.b16 %v1026
        %v1589 = vunpack.c.l.b16 %v1036
        %v1590 = vunpack.c.l.b16 %v1050
        %v1591 = vunpack.c.l.b16 %v1060
        %v1592 = vunpack.c.l.b16 %v1074
        %v1593 = vunpack.c.l.b16 %v1084
        %v1594 = vunpack.c.l.b16 %v1098
        %v1595 = vunpack.c.l.b16 %v1108
        %v1596 = vunpack.c.l.b16 %v1122
        %v1597 = vunpack.c.l.b16 %v1132
        %v1598 = vunpack.c.l.b16 %v1146
        %v1599 = vunpack.c.l.b16 %v1156
        %v1600 = vunpack.c.l.b16 %v1170
        %v1601 = vunpack.c.l.b16 %v1180
        %v1602 = vunpack.c.l.b16 %v1194
        %v1603 = vunpack.c.l.b16 %v1204
        %v1604 = vunpack.c.l.b16 %v1218
        %v1605 = vunpack.c.l.b16 %v1228
        %v1606 = vunpack.c.l.b16 %v1242
        %v1607 = vunpack.c.l.b16 %v1252
        %v1608 = vunpack.c.l.b16 %v1266
        %v1609 = vunpack.c.l.b16 %v1276
        %v1610 = vunpack.c.l.b16 %v1290
        %v1611 = vunpack.c.l.b16 %v1300
        %v1612 = vpack.c.b16 %v1581, %v1580
        %v1613 = vpack.c.b16 %v1583, %v1582
        %v1614 = vpack.c.b16 %v1585, %v1584
        %v1615 = vpack.c.b16 %v1587, %v1586
        %v1616 = vpack.c.b16 %v1589, %v1588
        %v1617 = vpack.c.b16 %v1591, %v1590
        %v1618 = vpack.c.b16 %v1593, %v1592
        %v1619 = vpack.c.b16 %v1595, %v1594
        %v1620 = vpack.c.b16 %v1597, %v1596
        %v1621 = vpack.c.b16 %v1599, %v1598
        %v1622 = vpack.c.b16 %v1601, %v1600
        %v1623 = vpack.c.b16 %v1603, %v1602
        %v1624 = vpack.c.b16 %v1605, %v1604
        %v1625 = vpack.c.b16 %v1607, %v1606
        %v1626 = vpack.c.b16 %v1609, %v1608
        %v1627 = vpack.c.b16 %v1611, %v1610
        %1628 = vrot.lane.b32.xlu0 %v1612, 8
        %v1629 = vpop.permute.xlu0 %1628
        %1630 = vrot.lane.b32.xlu0 %v1613, 8
        %v1631 = vpop.permute.xlu0 %1630
        %1632 = vrot.lane.b32.xlu0 %v1614, 8
        %v1633 = vpop.permute.xlu0 %1632
        %1634 = vrot.lane.b32.xlu0 %v1615, 8
        %v1635 = vpop.permute.xlu0 %1634
        %1636 = vrot.lane.b32.xlu0 %v1616, 8
        %v1637 = vpop.permute.xlu0 %1636
        %1638 = vrot.lane.b32.xlu0 %v1617, 8
        %v1639 = vpop.permute.xlu0 %1638
        %1640 = vrot.lane.b32.xlu0 %v1618, 8
        %v1641 = vpop.permute.xlu0 %1640
        %1642 = vrot.lane.b32.xlu0 %v1619, 8
        %v1643 = vpop.permute.xlu0 %1642
        %1644 = vrot.lane.b32.xlu0 %v1620, 8
        %v1645 = vpop.permute.xlu0 %1644
        %1646 = vrot.lane.b32.xlu0 %v1621, 8
        %v1647 = vpop.permute.xlu0 %1646
        %1648 = vrot.lane.b32.xlu0 %v1622, 8
        %v1649 = vpop.permute.xlu0 %1648
        %1650 = vrot.lane.b32.xlu0 %v1623, 8
        %v1651 = vpop.permute.xlu0 %1650
        %1652 = vrot.lane.b32.xlu0 %v1624, 8
        %v1653 = vpop.permute.xlu0 %1652
        %1654 = vrot.lane.b32.xlu0 %v1625, 8
        %v1655 = vpop.permute.xlu0 %1654
        %1656 = vrot.lane.b32.xlu0 %v1626, 8
        %v1657 = vpop.permute.xlu0 %1656
        %1658 = vrot.lane.b32.xlu0 %v1627, 8
        %v1659 = vpop.permute.xlu0 %1658
        %v1660 = vunpack.c.l.b16 %v1355
        %v1661 = vunpack.c.l.b16 %v1358
        %v1662 = vunpack.c.l.b16 %v1362
        %v1663 = vunpack.c.l.b16 %v1365
        %v1664 = vunpack.c.l.b16 %v1369
        %v1665 = vunpack.c.l.b16 %v1372
        %v1666 = vunpack.c.l.b16 %v1376
        %v1667 = vunpack.c.l.b16 %v1379
        %v1668 = vunpack.c.l.b16 %v1383
        %v1669 = vunpack.c.l.b16 %v1386
        %v1670 = vunpack.c.l.b16 %v1390
        %v1671 = vunpack.c.l.b16 %v1393
        %v1672 = vunpack.c.l.b16 %v1397
        %v1673 = vunpack.c.l.b16 %v1400
        %v1674 = vunpack.c.l.b16 %v1404
        %v1675 = vunpack.c.l.b16 %v1407
        %v1676 = vunpack.c.l.b16 %v1411
        %v1677 = vunpack.c.l.b16 %v1414
        %v1678 = vunpack.c.l.b16 %v1418
        %v1679 = vunpack.c.l.b16 %v1421
        %v1680 = vunpack.c.l.b16 %v1425
        %v1681 = vunpack.c.l.b16 %v1428
        %v1682 = vunpack.c.l.b16 %v1432
        %v1683 = vunpack.c.l.b16 %v1435
        %v1684 = vunpack.c.l.b16 %v1439
        %v1685 = vunpack.c.l.b16 %v1442
        %v1686 = vunpack.c.l.b16 %v1446
        %v1687 = vunpack.c.l.b16 %v1449
        %v1688 = vunpack.c.l.b16 %v1453
        %v1689 = vunpack.c.l.b16 %v1456
        %v1690 = vunpack.c.l.b16 %v1460
        %v1691 = vunpack.c.l.b16 %v1463
        %v1692 = vpack.c.b16 %v1661, %v1660
        %v1693 = vpack.c.b16 %v1663, %v1662
        %v1694 = vpack.c.b16 %v1665, %v1664
        %v1695 = vpack.c.b16 %v1667, %v1666
        %v1696 = vpack.c.b16 %v1669, %v1668
        %v1697 = vpack.c.b16 %v1671, %v1670
        %v1698 = vpack.c.b16 %v1673, %v1672
        %v1699 = vpack.c.b16 %v1675, %v1674
        %v1700 = vpack.c.b16 %v1677, %v1676
        %v1701 = vpack.c.b16 %v1679, %v1678
        %v1702 = vpack.c.b16 %v1681, %v1680
        %v1703 = vpack.c.b16 %v1683, %v1682
        %v1704 = vpack.c.b16 %v1685, %v1684
        %v1705 = vpack.c.b16 %v1687, %v1686
        %v1706 = vpack.c.b16 %v1689, %v1688
        %v1707 = vpack.c.b16 %v1691, %v1690
        %1708 = vrot.lane.b32.xlu0 %v1692, 16
        %v1709 = vpop.permute.xlu0 %1708
        %1710 = vrot.lane.b32.xlu0 %v1693, 16
        %v1711 = vpop.permute.xlu0 %1710
        %1712 = vrot.lane.b32.xlu0 %v1694, 16
        %v1713 = vpop.permute.xlu0 %1712
        %1714 = vrot.lane.b32.xlu0 %v1695, 16
        %v1715 = vpop.permute.xlu0 %1714
        %1716 = vrot.lane.b32.xlu0 %v1696, 16
        %v1717 = vpop.permute.xlu0 %1716
        %1718 = vrot.lane.b32.xlu0 %v1697, 16
        %v1719 = vpop.permute.xlu0 %1718
        %1720 = vrot.lane.b32.xlu0 %v1698, 16
        %v1721 = vpop.permute.xlu0 %1720
        %1722 = vrot.lane.b32.xlu0 %v1699, 16
        %v1723 = vpop.permute.xlu0 %1722
        %1724 = vrot.lane.b32.xlu0 %v1700, 16
        %v1725 = vpop.permute.xlu0 %1724
        %1726 = vrot.lane.b32.xlu0 %v1701, 16
        %v1727 = vpop.permute.xlu0 %1726
        %1728 = vrot.lane.b32.xlu0 %v1702, 16
        %v1729 = vpop.permute.xlu0 %1728
        %1730 = vrot.lane.b32.xlu0 %v1703, 16
        %v1731 = vpop.permute.xlu0 %1730
        %1732 = vrot.lane.b32.xlu0 %v1704, 16
        %v1733 = vpop.permute.xlu0 %1732
        %1734 = vrot.lane.b32.xlu0 %v1705, 16
        %v1735 = vpop.permute.xlu0 %1734
        %1736 = vrot.lane.b32.xlu0 %v1706, 16
        %v1737 = vpop.permute.xlu0 %1736
        %1738 = vrot.lane.b32.xlu0 %v1707, 16
        %v1739 = vpop.permute.xlu0 %1738
        %v1740 = vunpack.c.l.b16 %v908
        %v1741 = vunpack.c.l.b16 %v909
        %v1742 = vpack.c.b16 %v1741, %v1740
        %1743 = vrot.lane.b32.xlu0 %v1565, 24
        %v1744 = vpop.permute.xlu0 %1743
        %1745 = vrot.lane.b32.xlu0 %v1566, 24
        %v1746 = vpop.permute.xlu0 %1745
        %1747 = vrot.lane.b32.xlu0 %v1567, 24
        %v1748 = vpop.permute.xlu0 %1747
        %1749 = vrot.lane.b32.xlu0 %v1568, 24
        %v1750 = vpop.permute.xlu0 %1749
        %1751 = vrot.lane.b32.xlu0 %v1569, 24
        %v1752 = vpop.permute.xlu0 %1751
        %1753 = vrot.lane.b32.xlu0 %v1570, 24
        %v1754 = vpop.permute.xlu0 %1753
        %1755 = vrot.lane.b32.xlu0 %v1571, 24
        %v1756 = vpop.permute.xlu0 %1755
        %1757 = vrot.lane.b32.xlu0 %v1572, 24
        %v1758 = vpop.permute.xlu0 %1757
        %1759 = vrot.lane.b32.xlu0 %v1573, 24
        %v1760 = vpop.permute.xlu0 %1759
        %1761 = vrot.lane.b32.xlu0 %v1574, 24
        %v1762 = vpop.permute.xlu0 %1761
        %1763 = vrot.lane.b32.xlu0 %v1575, 24
        %v1764 = vpop.permute.xlu0 %1763
        %1765 = vrot.lane.b32.xlu0 %v1576, 24
        %v1766 = vpop.permute.xlu0 %1765
        %1767 = vrot.lane.b32.xlu0 %v1577, 24
        %v1768 = vpop.permute.xlu0 %1767
        %1769 = vrot.lane.b32.xlu0 %v1578, 24
        %v1770 = vpop.permute.xlu0 %1769
        %1771 = vrot.lane.b32.xlu0 %v1579, 24
        %v1772 = vpop.permute.xlu0 %1771
        %1773 = vrot.lane.b32.xlu0 %v1742, 24
        %v1774 = vpop.permute.xlu0 %1773
        %v1775 = vunpack.c.l.b16 %v1477
        %v1776 = vunpack.c.l.b16 %v1487
        %v1777 = vpack.c.b16 %v1776, %v1775
        %1778 = vrot.lane.b32.xlu0 %v1613, 32
        %v1779 = vpop.permute.xlu0 %1778
        %1780 = vrot.lane.b32.xlu0 %v1614, 32
        %v1781 = vpop.permute.xlu0 %1780
        %1782 = vrot.lane.b32.xlu0 %v1615, 32
        %v1783 = vpop.permute.xlu0 %1782
        %1784 = vrot.lane.b32.xlu0 %v1616, 32
        %v1785 = vpop.permute.xlu0 %1784
        %1786 = vrot.lane.b32.xlu0 %v1617, 32
        %v1787 = vpop.permute.xlu0 %1786
        %1788 = vrot.lane.b32.xlu0 %v1618, 32
        %v1789 = vpop.permute.xlu0 %1788
        %1790 = vrot.lane.b32.xlu0 %v1619, 32
        %v1791 = vpop.permute.xlu0 %1790
        %1792 = vrot.lane.b32.xlu0 %v1620, 32
        %v1793 = vpop.permute.xlu0 %1792
        %1794 = vrot.lane.b32.xlu0 %v1621, 32
        %v1795 = vpop.permute.xlu0 %1794
        %1796 = vrot.lane.b32.xlu0 %v1622, 32
        %v1797 = vpop.permute.xlu0 %1796
        %1798 = vrot.lane.b32.xlu0 %v1623, 32
        %v1799 = vpop.permute.xlu0 %1798
        %1800 = vrot.lane.b32.xlu0 %v1624, 32
        %v1801 = vpop.permute.xlu0 %1800
        %1802 = vrot.lane.b32.xlu0 %v1625, 32
        %v1803 = vpop.permute.xlu0 %1802
        %1804 = vrot.lane.b32.xlu0 %v1626, 32
        %v1805 = vpop.permute.xlu0 %1804
        %1806 = vrot.lane.b32.xlu0 %v1627, 32
        %v1807 = vpop.permute.xlu0 %1806
        %1808 = vrot.lane.b32.xlu0 %v1777, 32
        %v1809 = vpop.permute.xlu0 %1808
        %v1810 = vunpack.c.l.b16 %v1494
        %v1811 = vunpack.c.l.b16 %v1497
        %v1812 = vpack.c.b16 %v1811, %v1810
        %1813 = vrot.lane.b32.xlu0 %v1693, 40
        %v1814 = vpop.permute.xlu0 %1813
        %1815 = vrot.lane.b32.xlu0 %v1694, 40
        %v1816 = vpop.permute.xlu0 %1815
        %1817 = vrot.lane.b32.xlu0 %v1695, 40
        %v1818 = vpop.permute.xlu0 %1817
        %1819 = vrot.lane.b32.xlu0 %v1696, 40
        %v1820 = vpop.permute.xlu0 %1819
        %1821 = vrot.lane.b32.xlu0 %v1697, 40
        %v1822 = vpop.permute.xlu0 %1821
        %1823 = vrot.lane.b32.xlu0 %v1698, 40
        %v1824 = vpop.permute.xlu0 %1823
        %1825 = vrot.lane.b32.xlu0 %v1699, 40
        %v1826 = vpop.permute.xlu0 %1825
        %1827 = vrot.lane.b32.xlu0 %v1700, 40
        %v1828 = vpop.permute.xlu0 %1827
        %1829 = vrot.lane.b32.xlu0 %v1701, 40
        %v1830 = vpop.permute.xlu0 %1829
        %1831 = vrot.lane.b32.xlu0 %v1702, 40
        %v1832 = vpop.permute.xlu0 %1831
        %1833 = vrot.lane.b32.xlu0 %v1703, 40
        %v1834 = vpop.permute.xlu0 %1833
        %1835 = vrot.lane.b32.xlu0 %v1704, 40
        %v1836 = vpop.permute.xlu0 %1835
        %1837 = vrot.lane.b32.xlu0 %v1705, 40
        %v1838 = vpop.permute.xlu0 %1837
        %1839 = vrot.lane.b32.xlu0 %v1706, 40
        %v1840 = vpop.permute.xlu0 %1839
        %1841 = vrot.lane.b32.xlu0 %v1707, 40
        %v1842 = vpop.permute.xlu0 %1841
        %1843 = vrot.lane.b32.xlu0 %v1812, 40
        %v1844 = vpop.permute.xlu0 %1843
        %v1845 = vunpack.c.l.b16 %v911
        %v1846 = vunpack.c.l.b16 %v912
        %v1847 = vpack.c.b16 %v1846, %v1845
        %1848 = vrot.lane.b32.xlu0 %v1566, 48
        %v1849 = vpop.permute.xlu0 %1848
        %1850 = vrot.lane.b32.xlu0 %v1567, 48
        %v1851 = vpop.permute.xlu0 %1850
        %1852 = vrot.lane.b32.xlu0 %v1568, 48
        %v1853 = vpop.permute.xlu0 %1852
        %1854 = vrot.lane.b32.xlu0 %v1569, 48
        %v1855 = vpop.permute.xlu0 %1854
        %1856 = vrot.lane.b32.xlu0 %v1570, 48
        %v1857 = vpop.permute.xlu0 %1856
        %1858 = vrot.lane.b32.xlu0 %v1571, 48
        %v1859 = vpop.permute.xlu0 %1858
        %1860 = vrot.lane.b32.xlu0 %v1572, 48
        %v1861 = vpop.permute.xlu0 %1860
        %1862 = vrot.lane.b32.xlu0 %v1573, 48
        %v1863 = vpop.permute.xlu0 %1862
        %1864 = vrot.lane.b32.xlu0 %v1574, 48
        %v1865 = vpop.permute.xlu0 %1864
        %1866 = vrot.lane.b32.xlu0 %v1575, 48
        %v1867 = vpop.permute.xlu0 %1866
        %1868 = vrot.lane.b32.xlu0 %v1576, 48
        %v1869 = vpop.permute.xlu0 %1868
        %1870 = vrot.lane.b32.xlu0 %v1577, 48
        %v1871 = vpop.permute.xlu0 %1870
        %1872 = vrot.lane.b32.xlu0 %v1578, 48
        %v1873 = vpop.permute.xlu0 %1872
        %1874 = vrot.lane.b32.xlu0 %v1579, 48
        %v1875 = vpop.permute.xlu0 %1874
        %1876 = vrot.lane.b32.xlu0 %v1742, 48
        %v1877 = vpop.permute.xlu0 %1876
        %1878 = vrot.lane.b32.xlu0 %v1847, 48
        %v1879 = vpop.permute.xlu0 %1878
        %v1880 = vunpack.c.l.b16 %v1511
        %v1881 = vunpack.c.l.b16 %v1521
        %v1882 = vpack.c.b16 %v1881, %v1880
        %1883 = vrot.lane.b32.xlu0 %v1614, 56
        %v1884 = vpop.permute.xlu0 %1883
        %1885 = vrot.lane.b32.xlu0 %v1615, 56
        %v1886 = vpop.permute.xlu0 %1885
        %1887 = vrot.lane.b32.xlu0 %v1616, 56
        %v1888 = vpop.permute.xlu0 %1887
        %1889 = vrot.lane.b32.xlu0 %v1617, 56
        %v1890 = vpop.permute.xlu0 %1889
        %1891 = vrot.lane.b32.xlu0 %v1618, 56
        %v1892 = vpop.permute.xlu0 %1891
        %1893 = vrot.lane.b32.xlu0 %v1619, 56
        %v1894 = vpop.permute.xlu0 %1893
        %1895 = vrot.lane.b32.xlu0 %v1620, 56
        %v1896 = vpop.permute.xlu0 %1895
        %1897 = vrot.lane.b32.xlu0 %v1621, 56
        %v1898 = vpop.permute.xlu0 %1897
        %1899 = vrot.lane.b32.xlu0 %v1622, 56
        %v1900 = vpop.permute.xlu0 %1899
        %1901 = vrot.lane.b32.xlu0 %v1623, 56
        %v1902 = vpop.permute.xlu0 %1901
        %1903 = vrot.lane.b32.xlu0 %v1624, 56
        %v1904 = vpop.permute.xlu0 %1903
        %1905 = vrot.lane.b32.xlu0 %v1625, 56
        %v1906 = vpop.permute.xlu0 %1905
        %1907 = vrot.lane.b32.xlu0 %v1626, 56
        %v1908 = vpop.permute.xlu0 %1907
        %1909 = vrot.lane.b32.xlu0 %v1627, 56
        %v1910 = vpop.permute.xlu0 %1909
        %1911 = vrot.lane.b32.xlu0 %v1777, 56
        %v1912 = vpop.permute.xlu0 %1911
        %1913 = vrot.lane.b32.xlu0 %v1882, 56
        %v1914 = vpop.permute.xlu0 %1913
        %v1915 = vunpack.c.l.b16 %v1528
        %v1916 = vunpack.c.l.b16 %v1531
        %v1917 = vpack.c.b16 %v1916, %v1915
        %1918 = vrot.lane.b32.xlu0 %v1694, 64
        %v1919 = vpop.permute.xlu0 %1918
        %1920 = vrot.lane.b32.xlu0 %v1695, 64
        %v1921 = vpop.permute.xlu0 %1920
        %1922 = vrot.lane.b32.xlu0 %v1696, 64
        %v1923 = vpop.permute.xlu0 %1922
        %1924 = vrot.lane.b32.xlu0 %v1697, 64
        %v1925 = vpop.permute.xlu0 %1924
        %1926 = vrot.lane.b32.xlu0 %v1698, 64
        %v1927 = vpop.permute.xlu0 %1926
        %1928 = vrot.lane.b32.xlu0 %v1699, 64
        %v1929 = vpop.permute.xlu0 %1928
        %1930 = vrot.lane.b32.xlu0 %v1700, 64
        %v1931 = vpop.permute.xlu0 %1930
        %1932 = vrot.lane.b32.xlu0 %v1701, 64
        %v1933 = vpop.permute.xlu0 %1932
        %1934 = vrot.lane.b32.xlu0 %v1702, 64
        %v1935 = vpop.permute.xlu0 %1934
        %1936 = vrot.lane.b32.xlu0 %v1703, 64
        %v1937 = vpop.permute.xlu0 %1936
        %1938 = vrot.lane.b32.xlu0 %v1704, 64
        %v1939 = vpop.permute.xlu0 %1938
        %1940 = vrot.lane.b32.xlu0 %v1705, 64
        %v1941 = vpop.permute.xlu0 %1940
        %1942 = vrot.lane.b32.xlu0 %v1706, 64
        %v1943 = vpop.permute.xlu0 %1942
        %1944 = vrot.lane.b32.xlu0 %v1707, 64
        %v1945 = vpop.permute.xlu0 %1944
        %1946 = vrot.lane.b32.xlu0 %v1812, 64
        %v1947 = vpop.permute.xlu0 %1946
        %1948 = vrot.lane.b32.xlu0 %v1917, 64
        %v1949 = vpop.permute.xlu0 %1948
        %vm1950 = vcmask 64512
        %v1953 = vsel %vm1950, %v1564, %v1629
        %v1956 = vsel %vm1950, %v1565, %v1631
        %v1959 = vsel %vm1950, %v1566, %v1633
        %v1962 = vsel %vm1950, %v1567, %v1635
        %v1965 = vsel %vm1950, %v1568, %v1637
        %v1968 = vsel %vm1950, %v1569, %v1639
        %v1971 = vsel %vm1950, %v1570, %v1641
        %v1974 = vsel %vm1950, %v1571, %v1643
        %v1977 = vsel %vm1950, %v1572, %v1645
        %v1980 = vsel %vm1950, %v1573, %v1647
        %v1983 = vsel %vm1950, %v1574, %v1649
        %v1986 = vsel %vm1950, %v1575, %v1651
        %v1989 = vsel %vm1950, %v1576, %v1653
        %v1992 = vsel %vm1950, %v1577, %v1655
        %v1995 = vsel %vm1950, %v1578, %v1657
        %v1998 = vsel %vm1950, %v1579, %v1659
        %vm1999 = vcmask 130048
        %v2001 = vsel %vm1999, %v1953, %v1709
        %v2003 = vsel %vm1999, %v1956, %v1711
        %v2005 = vsel %vm1999, %v1959, %v1713
        %v2007 = vsel %vm1999, %v1962, %v1715
        %v2009 = vsel %vm1999, %v1965, %v1717
        %v2011 = vsel %vm1999, %v1968, %v1719
        %v2013 = vsel %vm1999, %v1971, %v1721
        %v2015 = vsel %vm1999, %v1974, %v1723
        %v2017 = vsel %vm1999, %v1977, %v1725
        %v2019 = vsel %vm1999, %v1980, %v1727
        %v2021 = vsel %vm1999, %v1983, %v1729
        %v2023 = vsel %vm1999, %v1986, %v1731
        %v2025 = vsel %vm1999, %v1989, %v1733
        %v2027 = vsel %vm1999, %v1992, %v1735
        %v2029 = vsel %vm1999, %v1995, %v1737
        %v2031 = vsel %vm1999, %v1998, %v1739
        %vm2032 = vcmask 195584
        %v2034 = vsel %vm2032, %v2001, %v1744
        %v2036 = vsel %vm2032, %v2003, %v1746
        %v2038 = vsel %vm2032, %v2005, %v1748
        %v2040 = vsel %vm2032, %v2007, %v1750
        %v2042 = vsel %vm2032, %v2009, %v1752
        %v2044 = vsel %vm2032, %v2011, %v1754
        %v2046 = vsel %vm2032, %v2013, %v1756
        %v2048 = vsel %vm2032, %v2015, %v1758
        %v2050 = vsel %vm2032, %v2017, %v1760
        %v2052 = vsel %vm2032, %v2019, %v1762
        %v2054 = vsel %vm2032, %v2021, %v1764
        %v2056 = vsel %vm2032, %v2023, %v1766
        %v2058 = vsel %vm2032, %v2025, %v1768
        %v2060 = vsel %vm2032, %v2027, %v1770
        %v2062 = vsel %vm2032, %v2029, %v1772
        %v2064 = vsel %vm2032, %v2031, %v1774
        %vm2065 = vcmask 261120
        %v2067 = vsel %vm2065, %v2034, %v1779
        %v2069 = vsel %vm2065, %v2036, %v1781
        %v2071 = vsel %vm2065, %v2038, %v1783
        %v2073 = vsel %vm2065, %v2040, %v1785
        %v2075 = vsel %vm2065, %v2042, %v1787
        %v2077 = vsel %vm2065, %v2044, %v1789
        %v2079 = vsel %vm2065, %v2046, %v1791
        %v2081 = vsel %vm2065, %v2048, %v1793
        %v2083 = vsel %vm2065, %v2050, %v1795
        %v2085 = vsel %vm2065, %v2052, %v1797
        %v2087 = vsel %vm2065, %v2054, %v1799
        %v2089 = vsel %vm2065, %v2056, %v1801
        %v2091 = vsel %vm2065, %v2058, %v1803
        %v2093 = vsel %vm2065, %v2060, %v1805
        %v2095 = vsel %vm2065, %v2062, %v1807
        %v2097 = vsel %vm2065, %v2064, %v1809
        %vm2098 = vcmask 326656
        %v2100 = vsel %vm2098, %v2067, %v1814
        %v2102 = vsel %vm2098, %v2069, %v1816
        %v2104 = vsel %vm2098, %v2071, %v1818
        %v2106 = vsel %vm2098, %v2073, %v1820
        %v2108 = vsel %vm2098, %v2075, %v1822
        %v2110 = vsel %vm2098, %v2077, %v1824
        %v2112 = vsel %vm2098, %v2079, %v1826
        %v2114 = vsel %vm2098, %v2081, %v1828
        %v2116 = vsel %vm2098, %v2083, %v1830
        %v2118 = vsel %vm2098, %v2085, %v1832
        %v2120 = vsel %vm2098, %v2087, %v1834
        %v2122 = vsel %vm2098, %v2089, %v1836
        %v2124 = vsel %vm2098, %v2091, %v1838
        %v2126 = vsel %vm2098, %v2093, %v1840
        %v2128 = vsel %vm2098, %v2095, %v1842
        %v2130 = vsel %vm2098, %v2097, %v1844
        %vm2131 = vcmask 392192
        %v2133 = vsel %vm2131, %v2100, %v1849
        %v2135 = vsel %vm2131, %v2102, %v1851
        %v2137 = vsel %vm2131, %v2104, %v1853
        %v2139 = vsel %vm2131, %v2106, %v1855
        %v2141 = vsel %vm2131, %v2108, %v1857
        %v2143 = vsel %vm2131, %v2110, %v1859
        %v2145 = vsel %vm2131, %v2112, %v1861
        %v2147 = vsel %vm2131, %v2114, %v1863
        %v2149 = vsel %vm2131, %v2116, %v1865
        %v2151 = vsel %vm2131, %v2118, %v1867
        %v2153 = vsel %vm2131, %v2120, %v1869
        %v2155 = vsel %vm2131, %v2122, %v1871
        %v2157 = vsel %vm2131, %v2124, %v1873
        %v2159 = vsel %vm2131, %v2126, %v1875
        %v2161 = vsel %vm2131, %v2128, %v1877
        %v2163 = vsel %vm2131, %v2130, %v1879
        %vm2164 = vcmask 457728
        %v2166 = vsel %vm2164, %v2133, %v1884
        %v2168 = vsel %vm2164, %v2135, %v1886
        %v2170 = vsel %vm2164, %v2137, %v1888
        %v2172 = vsel %vm2164, %v2139, %v1890
        %v2174 = vsel %vm2164, %v2141, %v1892
        %v2176 = vsel %vm2164, %v2143, %v1894
        %v2178 = vsel %vm2164, %v2145, %v1896
        %v2180 = vsel %vm2164, %v2147, %v1898
        %v2182 = vsel %vm2164, %v2149, %v1900
        %v2184 = vsel %vm2164, %v2151, %v1902
        %v2186 = vsel %vm2164, %v2153, %v1904
        %v2188 = vsel %vm2164, %v2155, %v1906
        %v2190 = vsel %vm2164, %v2157, %v1908
        %v2192 = vsel %vm2164, %v2159, %v1910
        %v2194 = vsel %vm2164, %v2161, %v1912
        %v2196 = vsel %vm2164, %v2163, %v1914
        %vm2197 = vcmask 523264
        %v2199 = vsel %vm2197, %v2166, %v1919
        %v2201 = vsel %vm2197, %v2168, %v1921
        %v2203 = vsel %vm2197, %v2170, %v1923
        %v2205 = vsel %vm2197, %v2172, %v1925
        %v2207 = vsel %vm2197, %v2174, %v1927
        %v2209 = vsel %vm2197, %v2176, %v1929
        %v2211 = vsel %vm2197, %v2178, %v1931
        %v2213 = vsel %vm2197, %v2180, %v1933
        %v2215 = vsel %vm2197, %v2182, %v1935
        %v2217 = vsel %vm2197, %v2184, %v1937
        %v2219 = vsel %vm2197, %v2186, %v1939
        %v2221 = vsel %vm2197, %v2188, %v1941
        %v2223 = vsel %vm2197, %v2190, %v1943
        %v2225 = vsel %vm2197, %v2192, %v1945
        %v2227 = vsel %vm2197, %v2194, %v1947
        %v2229 = vsel %vm2197, %v2196, %v1949
        %v2246 = vunpack.c.l.b16 %v2199
        %v2247 = vunpack.c.h.b16 %v2199
        %v2248 = vunpack.c.l.b16 %v2201
        %v2249 = vunpack.c.h.b16 %v2201
        %v2250 = vunpack.c.l.b16 %v2203
        %v2251 = vunpack.c.h.b16 %v2203
        %v2252 = vunpack.c.l.b16 %v2205
        %v2253 = vunpack.c.h.b16 %v2205
        %v2254 = vunpack.c.l.b16 %v2207
        %v2255 = vunpack.c.h.b16 %v2207
        %v2256 = vunpack.c.l.b16 %v2209
        %v2257 = vunpack.c.h.b16 %v2209
        %v2258 = vunpack.c.l.b16 %v2211
        %v2259 = vunpack.c.h.b16 %v2211
        %v2260 = vunpack.c.l.b16 %v2213
        %v2261 = vunpack.c.h.b16 %v2213
        %v2262 = vunpack.c.l.b16 %v2215
        %v2263 = vunpack.c.h.b16 %v2215
        %v2264 = vunpack.c.l.b16 %v2217
        %v2265 = vunpack.c.h.b16 %v2217
        %v2266 = vunpack.c.l.b16 %v2219
        %v2267 = vunpack.c.h.b16 %v2219
        %v2268 = vunpack.c.l.b16 %v2221
        %v2269 = vunpack.c.h.b16 %v2221
        %v2270 = vunpack.c.l.b16 %v2223
        %v2271 = vunpack.c.h.b16 %v2223
        %v2272 = vunpack.c.l.b16 %v2225
        %v2273 = vunpack.c.h.b16 %v2225
        %v2274 = vunpack.c.l.b16 %v2227
        %v2275 = vunpack.c.h.b16 %v2227
        %v2276 = vunpack.c.l.b16 %v2229
        %v2277 = vunpack.c.h.b16 %v2229
        %v2278 = vpack.c.b16 %v2246, %v2246
        %v2279 = vpack.c.b16 %v2247, %v2247
        %v2280 = vpack.c.b16 %v2248, %v2248
        %v2281 = vpack.c.b16 %v2249, %v2249
        %v2282 = vpack.c.b16 %v2250, %v2250
        %v2283 = vpack.c.b16 %v2251, %v2251
        %v2284 = vpack.c.b16 %v2252, %v2252
        %v2285 = vpack.c.b16 %v2253, %v2253
        %v2286 = vpack.c.b16 %v2254, %v2254
        %v2287 = vpack.c.b16 %v2255, %v2255
        %v2288 = vpack.c.b16 %v2256, %v2256
        %v2289 = vpack.c.b16 %v2257, %v2257
        %v2290 = vpack.c.b16 %v2258, %v2258
        %v2291 = vpack.c.b16 %v2259, %v2259
        %v2292 = vpack.c.b16 %v2260, %v2260
        %v2293 = vpack.c.b16 %v2261, %v2261
        %v2294 = vpack.c.b16 %v2262, %v2262
        %v2295 = vpack.c.b16 %v2263, %v2263
        %v2296 = vpack.c.b16 %v2264, %v2264
        %v2297 = vpack.c.b16 %v2265, %v2265
        %v2298 = vpack.c.b16 %v2266, %v2266
        %v2299 = vpack.c.b16 %v2267, %v2267
        %v2300 = vpack.c.b16 %v2268, %v2268
        %v2301 = vpack.c.b16 %v2269, %v2269
        %v2302 = vpack.c.b16 %v2270, %v2270
        %v2303 = vpack.c.b16 %v2271, %v2271
        %v2304 = vpack.c.b16 %v2272, %v2272
        %v2305 = vpack.c.b16 %v2273, %v2273
        %v2306 = vpack.c.b16 %v2274, %v2274
        %v2307 = vpack.c.b16 %v2275, %v2275
        %v2308 = vpack.c.b16 %v2276, %v2276
        %v2309 = vpack.c.b16 %v2277, %v2277
        %vm2342 = vcmask 584704
        %2343 = vst.msk [vmem:[#allocation3] sm:$0xf] %vm2342, %v2278
        %2344 = vst.msk [vmem:[#allocation3 + $0x4] sm:$0xf] %vm2342, %v2279
        %2345 = vst.msk [vmem:[#allocation3 + $0x8] sm:$0xf] %vm2342, %v2280
        %2346 = vst.msk [vmem:[#allocation3 + $0xc] sm:$0xf] %vm2342, %v2281
        %2347 = vst.msk [vmem:[#allocation3 + $0x10] sm:$0xf] %vm2342, %v2282
        %2348 = vst.msk [vmem:[#allocation3 + $0x14] sm:$0xf] %vm2342, %v2283
        %2349 = vst.msk [vmem:[#allocation3 + $0x18] sm:$0xf] %vm2342, %v2284
        %2350 = vst.msk [vmem:[#allocation3 + $0x1c] sm:$0xf] %vm2342, %v2285
        %2351 = vst.msk [vmem:[#allocation3 + $0x20] sm:$0xf] %vm2342, %v2286
        %2352 = vst.msk [vmem:[#allocation3 + $0x24] sm:$0xf] %vm2342, %v2287
        %2353 = vst.msk [vmem:[#allocation3 + $0x28] sm:$0xf] %vm2342, %v2288
        %2354 = vst.msk [vmem:[#allocation3 + $0x2c] sm:$0xf] %vm2342, %v2289
        %2355 = vst.msk [vmem:[#allocation3 + $0x30] sm:$0xf] %vm2342, %v2290
        %2356 = vst.msk [vmem:[#allocation3 + $0x34] sm:$0xf] %vm2342, %v2291
        %2357 = vst.msk [vmem:[#allocation3 + $0x38] sm:$0xf] %vm2342, %v2292
        %2358 = vst.msk [vmem:[#allocation3 + $0x3c] sm:$0xf] %vm2342, %v2293
        %2359 = vst.msk [vmem:[#allocation3 + $0x40] sm:$0xf] %vm2342, %v2294
        %2360 = vst.msk [vmem:[#allocation3 + $0x44] sm:$0xf] %vm2342, %v2295
        %2361 = vst.msk [vmem:[#allocation3 + $0x48] sm:$0xf] %vm2342, %v2296
        %2362 = vst.msk [vmem:[#allocation3 + $0x4c] sm:$0xf] %vm2342, %v2297
        %2363 = vst.msk [vmem:[#allocation3 + $0x50] sm:$0xf] %vm2342, %v2298
        %2364 = vst.msk [vmem:[#allocation3 + $0x54] sm:$0xf] %vm2342, %v2299
        %2365 = vst.msk [vmem:[#allocation3 + $0x58] sm:$0xf] %vm2342, %v2300
        %2366 = vst.msk [vmem:[#allocation3 + $0x5c] sm:$0xf] %vm2342, %v2301
        %2367 = vst.msk [vmem:[#allocation3 + $0x60] sm:$0xf] %vm2342, %v2302
        %2368 = vst.msk [vmem:[#allocation3 + $0x64] sm:$0xf] %vm2342, %v2303
        %2369 = vst.msk [vmem:[#allocation3 + $0x68] sm:$0xf] %vm2342, %v2304
        %2370 = vst.msk [vmem:[#allocation3 + $0x6c] sm:$0xf] %vm2342, %v2305
        %2371 = vst.msk [vmem:[#allocation3 + $0x70] sm:$0xf] %vm2342, %v2306
        %2372 = vst.msk [vmem:[#allocation3 + $0x74] sm:$0xf] %vm2342, %v2307
        %2373 = vst.msk [vmem:[#allocation3 + $0x78] sm:$0xf] %vm2342, %v2308
        %2374 = vst.msk [vmem:[#allocation3 + $0x7c] sm:$0xf] %vm2342, %v2309
        %v2375 = vld [vmem:[%s3] sm:$0x1]
        %v2376 = vld [vmem:[%s4] sm:$0x1]
        %v2377 = vld [vmem:[%s313] sm:$0xff]
        %v2378 = vld [vmem:[%s313 + $0x8] sm:$0xff]
        %v2379 = vld [vmem:[%s313 + $0x10] sm:$0xff]
        %v2380 = vld [vmem:[%s313 + $0x18] sm:$0xff]
        %v2381 = vld [vmem:[%s313 + $0x20] sm:$0xff]
        %v2382 = vld [vmem:[%s313 + $0x28] sm:$0xff]
        %v2383 = vld [vmem:[%s313 + $0x30] sm:$0xff]
        %v2384 = vld [vmem:[%s313 + $0x38] sm:$0xff]
        %v2385 = vld [vmem:[%s313 + $0x40] sm:$0xff]
        %v2386 = vld [vmem:[%s313 + $0x48] sm:$0xff]
        %v2387 = vld [vmem:[%s313 + $0x50] sm:$0xff]
        %v2388 = vld [vmem:[%s313 + $0x58] sm:$0xff]
        %v2389 = vld [vmem:[%s313 + $0x60] sm:$0xff]
        %v2390 = vld [vmem:[%s313 + $0x68] sm:$0xff]
        %v2391 = vld [vmem:[%s313 + $0x70] sm:$0xff]
        %v2392 = vld [vmem:[%s313 + $0x78] sm:$0xff]
        %v2393 = vld [vmem:[%s313 + $0x80] sm:$0xff]
        %v2394 = vld [vmem:[%s313 + $0x88] sm:$0xff]
        %v2395 = vld [vmem:[%s313 + $0x90] sm:$0xff]
        %v2396 = vld [vmem:[%s313 + $0x98] sm:$0xff]
        %v2397 = vld [vmem:[%s313 + $0xa0] sm:$0xff]
        %v2398 = vld [vmem:[%s313 + $0xa8] sm:$0xff]
        %v2399 = vld [vmem:[%s313 + $0xb0] sm:$0xff]
        %v2400 = vld [vmem:[%s313 + $0xb8] sm:$0xff]
        %v2401 = vld [vmem:[%s313 + $0xc0] sm:$0xff]
        %v2402 = vld [vmem:[%s313 + $0xc8] sm:$0xff]
        %v2403 = vld [vmem:[%s313 + $0xd0] sm:$0xff]
        %v2404 = vld [vmem:[%s313 + $0xd8] sm:$0xff]
        %v2405 = vld [vmem:[%s313 + $0xe0] sm:$0xff]
        %v2406 = vld [vmem:[%s313 + $0xe8] sm:$0xff]
        %v2407 = vld [vmem:[%s313 + $0xf0] sm:$0xff]
        %v2408 = vld [vmem:[%s313 + $0xf8] sm:$0xff]
        %v2410 = vlaneseq
        %v2411 = vshrl.u32 %v2410, 7
        %v2412 = vsub.s32 0, %v2411
        %v2413 = vrot.slane %v2375, %v2412
        %v2415 = vmul.f32 %v2377, %v2413
        %v2416 = vmul.f32 %v2378, %v2413
        %v2417 = vmul.f32 %v2379, %v2413
        %v2418 = vmul.f32 %v2380, %v2413
        %v2419 = vmul.f32 %v2381, %v2413
        %v2420 = vmul.f32 %v2382, %v2413
        %v2421 = vmul.f32 %v2383, %v2413
        %v2422 = vmul.f32 %v2384, %v2413
        %v2423 = vmul.f32 %v2385, %v2413
        %v2424 = vmul.f32 %v2386, %v2413
        %v2425 = vmul.f32 %v2387, %v2413
        %v2426 = vmul.f32 %v2388, %v2413
        %v2427 = vmul.f32 %v2389, %v2413
        %v2428 = vmul.f32 %v2390, %v2413
        %v2429 = vmul.f32 %v2391, %v2413
        %v2430 = vmul.f32 %v2392, %v2413
        %v2431 = vmul.f32 %v2393, %v2413
        %v2432 = vmul.f32 %v2394, %v2413
        %v2433 = vmul.f32 %v2395, %v2413
        %v2434 = vmul.f32 %v2396, %v2413
        %v2435 = vmul.f32 %v2397, %v2413
        %v2436 = vmul.f32 %v2398, %v2413
        %v2437 = vmul.f32 %v2399, %v2413
        %v2438 = vmul.f32 %v2400, %v2413
        %v2439 = vmul.f32 %v2401, %v2413
        %v2440 = vmul.f32 %v2402, %v2413
        %v2441 = vmul.f32 %v2403, %v2413
        %v2442 = vmul.f32 %v2404, %v2413
        %v2443 = vmul.f32 %v2405, %v2413
        %v2444 = vmul.f32 %v2406, %v2413
        %v2445 = vmul.f32 %v2407, %v2413
        %v2446 = vmul.f32 %v2408, %v2413
        %v2448 = vlaneseq
        %v2449 = vshrl.u32 %v2448, 7
        %v2450 = vsub.s32 0, %v2449
        %v2451 = vrot.slane %v2376, %v2450
        %v2453 = vadd.f32 %v2415, %v2451
        %v2454 = vadd.f32 %v2416, %v2451
        %v2455 = vadd.f32 %v2417, %v2451
        %v2456 = vadd.f32 %v2418, %v2451
        %v2457 = vadd.f32 %v2419, %v2451
        %v2458 = vadd.f32 %v2420, %v2451
        %v2459 = vadd.f32 %v2421, %v2451
        %v2460 = vadd.f32 %v2422, %v2451
        %v2461 = vadd.f32 %v2423, %v2451
        %v2462 = vadd.f32 %v2424, %v2451
        %v2463 = vadd.f32 %v2425, %v2451
        %v2464 = vadd.f32 %v2426, %v2451
        %v2465 = vadd.f32 %v2427, %v2451
        %v2466 = vadd.f32 %v2428, %v2451
        %v2467 = vadd.f32 %v2429, %v2451
        %v2468 = vadd.f32 %v2430, %v2451
        %v2469 = vadd.f32 %v2431, %v2451
        %v2470 = vadd.f32 %v2432, %v2451
        %v2471 = vadd.f32 %v2433, %v2451
        %v2472 = vadd.f32 %v2434, %v2451
        %v2473 = vadd.f32 %v2435, %v2451
        %v2474 = vadd.f32 %v2436, %v2451
        %v2475 = vadd.f32 %v2437, %v2451
        %v2476 = vadd.f32 %v2438, %v2451
        %v2477 = vadd.f32 %v2439, %v2451
        %v2478 = vadd.f32 %v2440, %v2451
        %v2479 = vadd.f32 %v2441, %v2451
        %v2480 = vadd.f32 %v2442, %v2451
        %v2481 = vadd.f32 %v2443, %v2451
        %v2482 = vadd.f32 %v2444, %v2451
        %v2483 = vadd.f32 %v2445, %v2451
        %v2484 = vadd.f32 %v2446, %v2451
        %v2485 = vmax.f32 %v2453, 0.0
        %v2486 = vmax.f32 %v2454, 0.0
        %v2487 = vmax.f32 %v2455, 0.0
        %v2488 = vmax.f32 %v2456, 0.0
        %v2489 = vmax.f32 %v2457, 0.0
        %v2490 = vmax.f32 %v2458, 0.0
        %v2491 = vmax.f32 %v2459, 0.0
        %v2492 = vmax.f32 %v2460, 0.0
        %v2493 = vmax.f32 %v2461, 0.0
        %v2494 = vmax.f32 %v2462, 0.0
        %v2495 = vmax.f32 %v2463, 0.0
        %v2496 = vmax.f32 %v2464, 0.0
        %v2497 = vmax.f32 %v2465, 0.0
        %v2498 = vmax.f32 %v2466, 0.0
        %v2499 = vmax.f32 %v2467, 0.0
        %v2500 = vmax.f32 %v2468, 0.0
        %v2501 = vmax.f32 %v2469, 0.0
        %v2502 = vmax.f32 %v2470, 0.0
        %v2503 = vmax.f32 %v2471, 0.0
        %v2504 = vmax.f32 %v2472, 0.0
        %v2505 = vmax.f32 %v2473, 0.0
        %v2506 = vmax.f32 %v2474, 0.0
        %v2507 = vmax.f32 %v2475, 0.0
        %v2508 = vmax.f32 %v2476, 0.0
        %v2509 = vmax.f32 %v2477, 0.0
        %v2510 = vmax.f32 %v2478, 0.0
        %v2511 = vmax.f32 %v2479, 0.0
        %v2512 = vmax.f32 %v2480, 0.0
        %v2513 = vmax.f32 %v2481, 0.0
        %v2514 = vmax.f32 %v2482, 0.0
        %v2515 = vmax.f32 %v2483, 0.0
        %v2516 = vmax.f32 %v2484, 0.0
        %v2517 = vmin.f32 %v2485, 1.0
        %v2518 = vmin.f32 %v2486, 1.0
        %v2519 = vmin.f32 %v2487, 1.0
        %v2520 = vmin.f32 %v2488, 1.0
        %v2521 = vmin.f32 %v2489, 1.0
        %v2522 = vmin.f32 %v2490, 1.0
        %v2523 = vmin.f32 %v2491, 1.0
        %v2524 = vmin.f32 %v2492, 1.0
        %v2525 = vmin.f32 %v2493, 1.0
        %v2526 = vmin.f32 %v2494, 1.0
        %v2527 = vmin.f32 %v2495, 1.0
        %v2528 = vmin.f32 %v2496, 1.0
        %v2529 = vmin.f32 %v2497, 1.0
        %v2530 = vmin.f32 %v2498, 1.0
        %v2531 = vmin.f32 %v2499, 1.0
        %v2532 = vmin.f32 %v2500, 1.0
        %v2533 = vmin.f32 %v2501, 1.0
        %v2534 = vmin.f32 %v2502, 1.0
        %v2535 = vmin.f32 %v2503, 1.0
        %v2536 = vmin.f32 %v2504, 1.0
        %v2537 = vmin.f32 %v2505, 1.0
        %v2538 = vmin.f32 %v2506, 1.0
        %v2539 = vmin.f32 %v2507, 1.0
        %v2540 = vmin.f32 %v2508, 1.0
        %v2541 = vmin.f32 %v2509, 1.0
        %v2542 = vmin.f32 %v2510, 1.0
        %v2543 = vmin.f32 %v2511, 1.0
        %v2544 = vmin.f32 %v2512, 1.0
        %v2545 = vmin.f32 %v2513, 1.0
        %v2546 = vmin.f32 %v2514, 1.0
        %v2547 = vmin.f32 %v2515, 1.0
        %v2548 = vmin.f32 %v2516, 1.0
        %v2549 = vmul.f32 %v2517, 15.0
        %v2550 = vmul.f32 %v2518, 15.0
        %v2551 = vmul.f32 %v2519, 15.0
        %v2552 = vmul.f32 %v2520, 15.0
        %v2553 = vmul.f32 %v2521, 15.0
        %v2554 = vmul.f32 %v2522, 15.0
        %v2555 = vmul.f32 %v2523, 15.0
        %v2556 = vmul.f32 %v2524, 15.0
        %v2557 = vmul.f32 %v2525, 15.0
        %v2558 = vmul.f32 %v2526, 15.0
        %v2559 = vmul.f32 %v2527, 15.0
        %v2560 = vmul.f32 %v2528, 15.0
        %v2561 = vmul.f32 %v2529, 15.0
        %v2562 = vmul.f32 %v2530, 15.0
        %v2563 = vmul.f32 %v2531, 15.0
        %v2564 = vmul.f32 %v2532, 15.0
        %v2565 = vmul.f32 %v2533, 15.0
        %v2566 = vmul.f32 %v2534, 15.0
        %v2567 = vmul.f32 %v2535, 15.0
        %v2568 = vmul.f32 %v2536, 15.0
        %v2569 = vmul.f32 %v2537, 15.0
        %v2570 = vmul.f32 %v2538, 15.0
        %v2571 = vmul.f32 %v2539, 15.0
        %v2572 = vmul.f32 %v2540, 15.0
        %v2573 = vmul.f32 %v2541, 15.0
        %v2574 = vmul.f32 %v2542, 15.0
        %v2575 = vmul.f32 %v2543, 15.0
        %v2576 = vmul.f32 %v2544, 15.0
        %v2577 = vmul.f32 %v2545, 15.0
        %v2578 = vmul.f32 %v2546, 15.0
        %v2579 = vmul.f32 %v2547, 15.0
        %v2580 = vmul.f32 %v2548, 15.0
        %v2581 = vround.ne.pseudo %v2549
        %v2582 = vround.ne.pseudo %v2550
        %v2583 = vround.ne.pseudo %v2551
        %v2584 = vround.ne.pseudo %v2552
        %v2585 = vround.ne.pseudo %v2553
        %v2586 = vround.ne.pseudo %v2554
        %v2587 = vround.ne.pseudo %v2555
        %v2588 = vround.ne.pseudo %v2556
        %v2589 = vround.ne.pseudo %v2557
        %v2590 = vround.ne.pseudo %v2558
        %v2591 = vround.ne.pseudo %v2559
        %v2592 = vround.ne.pseudo %v2560
        %v2593 = vround.ne.pseudo %v2561
        %v2594 = vround.ne.pseudo %v2562
        %v2595 = vround.ne.pseudo %v2563
        %v2596 = vround.ne.pseudo %v2564
        %v2597 = vround.ne.pseudo %v2565
        %v2598 = vround.ne.pseudo %v2566
        %v2599 = vround.ne.pseudo %v2567
        %v2600 = vround.ne.pseudo %v2568
        %v2601 = vround.ne.pseudo %v2569
        %v2602 = vround.ne.pseudo %v2570
        %v2603 = vround.ne.pseudo %v2571
        %v2604 = vround.ne.pseudo %v2572
        %v2605 = vround.ne.pseudo %v2573
        %v2606 = vround.ne.pseudo %v2574
        %v2607 = vround.ne.pseudo %v2575
        %v2608 = vround.ne.pseudo %v2576
        %v2609 = vround.ne.pseudo %v2577
        %v2610 = vround.ne.pseudo %v2578
        %v2611 = vround.ne.pseudo %v2579
        %v2612 = vround.ne.pseudo %v2580
        %vm2613 = vcmask 31744
        %2614 = vst.msk [vmem:[#allocation4] sm:$0xff] %vm2613, %v2581
        %2615 = vst.msk [vmem:[#allocation4 + $0x8] sm:$0xff] %vm2613, %v2582
        %2616 = vst.msk [vmem:[#allocation4 + $0x10] sm:$0xff] %vm2613, %v2583
        %2617 = vst.msk [vmem:[#allocation4 + $0x18] sm:$0xff] %vm2613, %v2584
        %2618 = vst.msk [vmem:[#allocation4 + $0x20] sm:$0xff] %vm2613, %v2585
        %2619 = vst.msk [vmem:[#allocation4 + $0x28] sm:$0xff] %vm2613, %v2586
        %2620 = vst.msk [vmem:[#allocation4 + $0x30] sm:$0xff] %vm2613, %v2587
        %2621 = vst.msk [vmem:[#allocation4 + $0x38] sm:$0xff] %vm2613, %v2588
        %2622 = vst.msk [vmem:[#allocation4 + $0x40] sm:$0xff] %vm2613, %v2589
        %2623 = vst.msk [vmem:[#allocation4 + $0x48] sm:$0xff] %vm2613, %v2590
        %2624 = vst.msk [vmem:[#allocation4 + $0x50] sm:$0xff] %vm2613, %v2591
        %2625 = vst.msk [vmem:[#allocation4 + $0x58] sm:$0xff] %vm2613, %v2592
        %2626 = vst.msk [vmem:[#allocation4 + $0x60] sm:$0xff] %vm2613, %v2593
        %2627 = vst.msk [vmem:[#allocation4 + $0x68] sm:$0xff] %vm2613, %v2594
        %2628 = vst.msk [vmem:[#allocation4 + $0x70] sm:$0xff] %vm2613, %v2595
        %2629 = vst.msk [vmem:[#allocation4 + $0x78] sm:$0xff] %vm2613, %v2596
        %2630 = vst.msk [vmem:[#allocation4 + $0x80] sm:$0xff] %vm2613, %v2597
        %2631 = vst.msk [vmem:[#allocation4 + $0x88] sm:$0xff] %vm2613, %v2598
        %2632 = vst.msk [vmem:[#allocation4 + $0x90] sm:$0xff] %vm2613, %v2599
        %2633 = vst.msk [vmem:[#allocation4 + $0x98] sm:$0xff] %vm2613, %v2600
        %2634 = vst.msk [vmem:[#allocation4 + $0xa0] sm:$0xff] %vm2613, %v2601
        %2635 = vst.msk [vmem:[#allocation4 + $0xa8] sm:$0xff] %vm2613, %v2602
        %2636 = vst.msk [vmem:[#allocation4 + $0xb0] sm:$0xff] %vm2613, %v2603
        %2637 = vst.msk [vmem:[#allocation4 + $0xb8] sm:$0xff] %vm2613, %v2604
        %2638 = vst.msk [vmem:[#allocation4 + $0xc0] sm:$0xff] %vm2613, %v2605
        %2639 = vst.msk [vmem:[#allocation4 + $0xc8] sm:$0xff] %vm2613, %v2606
        %2640 = vst.msk [vmem:[#allocation4 + $0xd0] sm:$0xff] %vm2613, %v2607
        %2641 = vst.msk [vmem:[#allocation4 + $0xd8] sm:$0xff] %vm2613, %v2608
        %2642 = vst.msk [vmem:[#allocation4 + $0xe0] sm:$0xff] %vm2613, %v2609
        %2643 = vst.msk [vmem:[#allocation4 + $0xe8] sm:$0xff] %vm2613, %v2610
        %2644 = vst.msk [vmem:[#allocation4 + $0xf0] sm:$0xff] %vm2613, %v2611
        %2645 = vst.msk [vmem:[#allocation4 + $0xf8] sm:$0xff] %vm2613, %v2612
      $region48: #{wide_basic_block_q_forward.3} parent=43 // pred_fallthru
        _
      %v2646 = vld [vmem:[#allocation3] sm:$0xf]
      %v2647 = vld [vmem:[#allocation3 + $0x4] sm:$0xf]
      %v2648 = vld [vmem:[#allocation3 + $0x8] sm:$0xf]
      %v2649 = vld [vmem:[#allocation3 + $0xc] sm:$0xf]
      %v2650 = vld [vmem:[#allocation3 + $0x10] sm:$0xf]
      %v2651 = vld [vmem:[#allocation3 + $0x14] sm:$0xf]
      %v2652 = vld [vmem:[#allocation3 + $0x18] sm:$0xf]
      %v2653 = vld [vmem:[#allocation3 + $0x1c] sm:$0xf]
      %v2654 = vld [vmem:[#allocation3 + $0x20] sm:$0xf]
      %v2655 = vld [vmem:[#allocation3 + $0x24] sm:$0xf]
      %v2656 = vld [vmem:[#allocation3 + $0x28] sm:$0xf]
      %v2657 = vld [vmem:[#allocation3 + $0x2c] sm:$0xf]
      %v2658 = vld [vmem:[#allocation3 + $0x30] sm:$0xf]
      %v2659 = vld [vmem:[#allocation3 + $0x34] sm:$0xf]
      %v2660 = vld [vmem:[#allocation3 + $0x38] sm:$0xf]
      %v2661 = vld [vmem:[#allocation3 + $0x3c] sm:$0xf]
      %v2662 = vld [vmem:[#allocation3 + $0x40] sm:$0xf]
      %v2663 = vld [vmem:[#allocation3 + $0x44] sm:$0xf]
      %v2664 = vld [vmem:[#allocation3 + $0x48] sm:$0xf]
      %v2665 = vld [vmem:[#allocation3 + $0x4c] sm:$0xf]
      %v2666 = vld [vmem:[#allocation3 + $0x50] sm:$0xf]
      %v2667 = vld [vmem:[#allocation3 + $0x54] sm:$0xf]
      %v2668 = vld [vmem:[#allocation3 + $0x58] sm:$0xf]
      %v2669 = vld [vmem:[#allocation3 + $0x5c] sm:$0xf]
      %v2670 = vld [vmem:[#allocation3 + $0x60] sm:$0xf]
      %v2671 = vld [vmem:[#allocation3 + $0x64] sm:$0xf]
      %v2672 = vld [vmem:[#allocation3 + $0x68] sm:$0xf]
      %v2673 = vld [vmem:[#allocation3 + $0x6c] sm:$0xf]
      %v2674 = vld [vmem:[#allocation3 + $0x70] sm:$0xf]
      %v2675 = vld [vmem:[#allocation3 + $0x74] sm:$0xf]
      %v2676 = vld [vmem:[#allocation3 + $0x78] sm:$0xf]
      %v2677 = vld [vmem:[#allocation3 + $0x7c] sm:$0xf]
      %v2678 = vld [vmem:[%s308] sm:$0xf]
      %v2679 = vld [vmem:[%s308 + $0x4] sm:$0xf]
      %v2680 = vld [vmem:[%s308 + $0x8] sm:$0xf]
      %v2681 = vld [vmem:[%s308 + $0xc] sm:$0xf]
      %v2682 = vld [vmem:[%s308 + $0x10] sm:$0xf]
      %v2683 = vld [vmem:[%s308 + $0x14] sm:$0xf]
      %v2684 = vld [vmem:[%s308 + $0x18] sm:$0xf]
      %v2685 = vld [vmem:[%s308 + $0x1c] sm:$0xf]
      %v2686 = vld [vmem:[%s308 + $0x20] sm:$0xf]
      %v2719 = vunpack.c.l.b16 %v2646
      %v2720 = vunpack.c.l.b16 %v2647
      %v2721 = vunpack.c.l.b16 %v2648
      %v2722 = vunpack.c.l.b16 %v2649
      %v2723 = vunpack.c.l.b16 %v2650
      %v2724 = vunpack.c.l.b16 %v2651
      %v2725 = vunpack.c.l.b16 %v2652
      %v2726 = vunpack.c.l.b16 %v2653
      %v2727 = vunpack.c.l.b16 %v2654
      %v2728 = vunpack.c.l.b16 %v2655
      %v2729 = vunpack.c.l.b16 %v2656
      %v2730 = vunpack.c.l.b16 %v2657
      %v2731 = vunpack.c.l.b16 %v2658
      %v2732 = vunpack.c.l.b16 %v2659
      %v2733 = vunpack.c.l.b16 %v2660
      %v2734 = vunpack.c.l.b16 %v2661
      %v2735 = vunpack.c.l.b16 %v2662
      %v2736 = vunpack.c.l.b16 %v2663
      %v2737 = vunpack.c.l.b16 %v2664
      %v2738 = vunpack.c.l.b16 %v2665
      %v2739 = vunpack.c.l.b16 %v2666
      %v2740 = vunpack.c.l.b16 %v2667
      %v2741 = vunpack.c.l.b16 %v2668
      %v2742 = vunpack.c.l.b16 %v2669
      %v2743 = vunpack.c.l.b16 %v2670
      %v2744 = vunpack.c.l.b16 %v2671
      %v2745 = vunpack.c.l.b16 %v2672
      %v2746 = vunpack.c.l.b16 %v2673
      %v2747 = vunpack.c.l.b16 %v2674
      %v2748 = vunpack.c.l.b16 %v2675
      %v2749 = vunpack.c.l.b16 %v2676
      %v2750 = vunpack.c.l.b16 %v2677
      %v2751 = vpack.c.b16 %v2720, %v2719
      %v2752 = vpack.c.b16 %v2722, %v2721
      %v2753 = vpack.c.b16 %v2724, %v2723
      %v2754 = vpack.c.b16 %v2726, %v2725
      %v2755 = vpack.c.b16 %v2728, %v2727
      %v2756 = vpack.c.b16 %v2730, %v2729
      %v2757 = vpack.c.b16 %v2732, %v2731
      %v2758 = vpack.c.b16 %v2734, %v2733
      %v2759 = vpack.c.b16 %v2736, %v2735
      %v2760 = vpack.c.b16 %v2738, %v2737
      %v2761 = vpack.c.b16 %v2740, %v2739
      %v2762 = vpack.c.b16 %v2742, %v2741
      %v2763 = vpack.c.b16 %v2744, %v2743
      %v2764 = vpack.c.b16 %v2746, %v2745
      %v2765 = vpack.c.b16 %v2748, %v2747
      %v2766 = vpack.c.b16 %v2750, %v2749
      %v2776 = vunpack.c.l.b16 %v2678
      %v2777 = vunpack.c.l.b16 %v2679
      %v2778 = vunpack.c.l.b16 %v2680
      %v2779 = vunpack.c.l.b16 %v2681
      %v2780 = vunpack.c.l.b16 %v2682
      %v2781 = vunpack.c.l.b16 %v2683
      %v2782 = vunpack.c.l.b16 %v2684
      %v2783 = vunpack.c.l.b16 %v2685
      %v2784 = vunpack.c.l.b16 %v2686
      %v2785 = vpack.c.b16 %v2777, %v2776
      %v2786 = vpack.c.b16 %v2779, %v2778
      %v2787 = vpack.c.b16 %v2781, %v2780
      %v2788 = vpack.c.b16 %v2783, %v2782
      %v2789 = vpack.c.b16 %v2784, %v2784
      %vm2794 = vcmask 588800
      %v2796 = vsel %vm2794, %v2751, 0
      %v2799 = vsel %vm2794, %v2752, 0
      %v2802 = vsel %vm2794, %v2753, 0
      %v2805 = vsel %vm2794, %v2754, 0
      %v2808 = vsel %vm2794, %v2755, 0
      %v2811 = vsel %vm2794, %v2756, 0
      %v2814 = vsel %vm2794, %v2757, 0
      %v2817 = vsel %vm2794, %v2758, 0
      %v2820 = vsel %vm2794, %v2759, 0
      %v2823 = vsel %vm2794, %v2760, 0
      %v2826 = vsel %vm2794, %v2761, 0
      %v2829 = vsel %vm2794, %v2762, 0
      %v2832 = vsel %vm2794, %v2763, 0
      %v2835 = vsel %vm2794, %v2764, 0
      %v2838 = vsel %vm2794, %v2765, 0
      %v2841 = vsel %vm2794, %v2766, 0
      %vm2843 = vcmask 1043456
      %v2845 = vsel %vm2843, %v2789, 0
      %2847 = vmatprep.subr.bf16.mxu0 0
      %2848 = vmatpush1.bf16.msra.mxu0 0
      %2849 = vmatprep.subr.bf16.mxu0 0
      %2850 = vmatpush1.bf16.msra.mxu0 0
      %2851 = vmatprep.subr.bf16.mxu0 0
      %2852 = vmatpush1.bf16.msra.mxu0 0
      %2853 = vmatprep.subr.bf16.mxu0 0
      %2854 = vmatpush1.bf16.msra.mxu0 %v2845
      %2855 = vmatprep.subr.bf16.mxu0 0
      %2856 = vmatpush1.bf16.msra.mxu0 %v2788
      %2857 = vmatprep.subr.bf16.mxu0 0
      %2858 = vmatpush1.bf16.msra.mxu0 %v2787
      %2859 = vmatprep.subr.bf16.mxu0 0
      %2860 = vmatpush1.bf16.msra.mxu0 %v2786
      %2861 = vmatprep.subr.bf16.mxu0 0
      %2862 = vmatpush1.bf16.msra.mxu0 %v2785
      %2863 = vmatprep.subr.bf16.mxu0 0
      %2864 = vmatpush2.bf16.msra.mxu0 0
      %2865 = vmatprep.subr.bf16.mxu0 0
      %2866 = vmatpush2.bf16.msra.mxu0 0
      %2867 = vmatprep.subr.bf16.mxu0 0
      %2868 = vmatpush2.bf16.msra.mxu0 0
      %2869 = vmatprep.subr.bf16.mxu0 0
      %2870 = vmatpush2.bf16.msra.mxu0 0
      %2871 = vmatprep.subr.bf16.mxu0 0
      %2872 = vmatpush2.bf16.msra.mxu0 0
      %2873 = vmatprep.subr.bf16.mxu0 0
      %2874 = vmatpush2.bf16.msra.mxu0 0
      %2875 = vmatprep.subr.bf16.mxu0 0
      %2876 = vmatpush2.bf16.msra.mxu0 0
      %2877 = vmatprep.subr.bf16.mxu0 0
      %2878 = vmatpush2.bf16.msra.mxu0 0
      %2879 = vmatprep.mubr.bf16.mxu0 0
      %2880 = vmatmul.mubr.bf16.gmra.mxu0 %v2796
      %v2881 = vpop.f32.mrf.mxu0
      %v2882 = vadd.f32 0.0, %v2881
      %v2883 = vpop.f32.mrf.mxu0
      %v2884 = vpop.f32.mrf.mxu0
      %v2885 = vadd.f32 0.0, %v2884
      %v2886 = vpop.f32.mrf.mxu0
      %2887 = vmatprep.mubr.bf16.mxu0 0
      %2888 = vmatmul.mubr.bf16.gmra.mxu0 %v2799
      %v2889 = vpop.f32.mrf.mxu0
      %v2890 = vadd.f32 0.0, %v2889
      %v2891 = vpop.f32.mrf.mxu0
      %v2892 = vpop.f32.mrf.mxu0
      %v2893 = vadd.f32 0.0, %v2892
      %v2894 = vpop.f32.mrf.mxu0
      %2895 = vmatprep.mubr.bf16.mxu0 0
      %2896 = vmatmul.mubr.bf16.gmra.mxu0 %v2802
      %v2897 = vpop.f32.mrf.mxu0
      %v2898 = vadd.f32 0.0, %v2897
      %v2899 = vpop.f32.mrf.mxu0
      %v2900 = vpop.f32.mrf.mxu0
      %v2901 = vadd.f32 0.0, %v2900
      %v2902 = vpop.f32.mrf.mxu0
      %2903 = vmatprep.mubr.bf16.mxu0 0
      %2904 = vmatmul.mubr.bf16.gmra.mxu0 %v2805
      %v2905 = vpop.f32.mrf.mxu0
      %v2906 = vadd.f32 0.0, %v2905
      %v2907 = vpop.f32.mrf.mxu0
      %v2908 = vpop.f32.mrf.mxu0
      %v2909 = vadd.f32 0.0, %v2908
      %v2910 = vpop.f32.mrf.mxu0
      %2911 = vmatprep.mubr.bf16.mxu0 0
      %2912 = vmatmul.mubr.bf16.gmra.mxu0 %v2808
      %v2913 = vpop.f32.mrf.mxu0
      %v2914 = vadd.f32 0.0, %v2913
      %v2915 = vpop.f32.mrf.mxu0
      %v2916 = vpop.f32.mrf.mxu0
      %v2917 = vadd.f32 0.0, %v2916
      %v2918 = vpop.f32.mrf.mxu0
      %2919 = vmatprep.mubr.bf16.mxu0 0
      %2920 = vmatmul.mubr.bf16.gmra.mxu0 %v2811
      %v2921 = vpop.f32.mrf.mxu0
      %v2922 = vadd.f32 0.0, %v2921
      %v2923 = vpop.f32.mrf.mxu0
      %v2924 = vpop.f32.mrf.mxu0
      %v2925 = vadd.f32 0.0, %v2924
      %v2926 = vpop.f32.mrf.mxu0
      %2927 = vmatprep.mubr.bf16.mxu0 0
      %2928 = vmatmul.mubr.bf16.gmra.mxu0 %v2814
      %v2929 = vpop.f32.mrf.mxu0
      %v2930 = vadd.f32 0.0, %v2929
      %v2931 = vpop.f32.mrf.mxu0
      %v2932 = vpop.f32.mrf.mxu0
      %v2933 = vadd.f32 0.0, %v2932
      %v2934 = vpop.f32.mrf.mxu0
      %2935 = vmatprep.mubr.bf16.mxu0 0
      %2936 = vmatmul.mubr.bf16.gmra.mxu0 %v2817
      %v2937 = vpop.f32.mrf.mxu0
      %v2938 = vadd.f32 0.0, %v2937
      %v2939 = vpop.f32.mrf.mxu0
      %v2940 = vpop.f32.mrf.mxu0
      %v2941 = vadd.f32 0.0, %v2940
      %v2942 = vpop.f32.mrf.mxu0
      %2943 = vmatprep.mubr.bf16.mxu0 0
      %2944 = vmatmul.mubr.bf16.gmra.mxu0 %v2820
      %v2945 = vpop.f32.mrf.mxu0
      %v2946 = vadd.f32 0.0, %v2945
      %v2947 = vpop.f32.mrf.mxu0
      %v2948 = vpop.f32.mrf.mxu0
      %v2949 = vadd.f32 0.0, %v2948
      %v2950 = vpop.f32.mrf.mxu0
      %2951 = vmatprep.mubr.bf16.mxu0 0
      %2952 = vmatmul.mubr.bf16.gmra.mxu0 %v2823
      %v2953 = vpop.f32.mrf.mxu0
      %v2954 = vadd.f32 0.0, %v2953
      %v2955 = vpop.f32.mrf.mxu0
      %v2956 = vpop.f32.mrf.mxu0
      %v2957 = vadd.f32 0.0, %v2956
      %v2958 = vpop.f32.mrf.mxu0
      %2959 = vmatprep.mubr.bf16.mxu0 0
      %2960 = vmatmul.mubr.bf16.gmra.mxu0 %v2826
      %v2961 = vpop.f32.mrf.mxu0
      %v2962 = vadd.f32 0.0, %v2961
      %v2963 = vpop.f32.mrf.mxu0
      %v2964 = vpop.f32.mrf.mxu0
      %v2965 = vadd.f32 0.0, %v2964
      %v2966 = vpop.f32.mrf.mxu0
      %2967 = vmatprep.mubr.bf16.mxu0 0
      %2968 = vmatmul.mubr.bf16.gmra.mxu0 %v2829
      %v2969 = vpop.f32.mrf.mxu0
      %v2970 = vadd.f32 0.0, %v2969
      %v2971 = vpop.f32.mrf.mxu0
      %v2972 = vpop.f32.mrf.mxu0
      %v2973 = vadd.f32 0.0, %v2972
      %v2974 = vpop.f32.mrf.mxu0
      %2975 = vmatprep.mubr.bf16.mxu0 0
      %2976 = vmatmul.mubr.bf16.gmra.mxu0 %v2832
      %v2977 = vpop.f32.mrf.mxu0
      %v2978 = vadd.f32 0.0, %v2977
      %v2979 = vpop.f32.mrf.mxu0
      %v2980 = vpop.f32.mrf.mxu0
      %v2981 = vadd.f32 0.0, %v2980
      %v2982 = vpop.f32.mrf.mxu0
      %2983 = vmatprep.mubr.bf16.mxu0 0
      %2984 = vmatmul.mubr.bf16.gmra.mxu0 %v2835
      %v2985 = vpop.f32.mrf.mxu0
      %v2986 = vadd.f32 0.0, %v2985
      %v2987 = vpop.f32.mrf.mxu0
      %v2988 = vpop.f32.mrf.mxu0
      %v2989 = vadd.f32 0.0, %v2988
      %v2990 = vpop.f32.mrf.mxu0
      %2991 = vmatprep.mubr.bf16.mxu0 0
      %2992 = vmatmul.mubr.bf16.gmra.mxu0 %v2838
      %v2993 = vpop.f32.mrf.mxu0
      %v2994 = vadd.f32 0.0, %v2993
      %v2995 = vpop.f32.mrf.mxu0
      %v2996 = vpop.f32.mrf.mxu0
      %v2997 = vadd.f32 0.0, %v2996
      %v2998 = vpop.f32.mrf.mxu0
      %2999 = vmatprep.mubr.bf16.mxu0 0
      %3000 = vmatmul.mubr.bf16.gmra.mxu0 %v2841
      %v3001 = vpop.f32.mrf.mxu0
      %v3002 = vadd.f32 0.0, %v3001
      %v3003 = vpop.f32.mrf.mxu0
      %v3004 = vpop.f32.mrf.mxu0
      %v3005 = vadd.f32 0.0, %v3004
      %v3006 = vpop.f32.mrf.mxu0
      %3007 = vdwg.mxu0
      %v3008 = vmul.f32 %v2882, 0.0044444446
      %v3009 = vmul.f32 %v2885, 0.0044444446
      %v3010 = vmul.f32 %v2890, 0.0044444446
      %v3011 = vmul.f32 %v2893, 0.0044444446
      %v3012 = vmul.f32 %v2898, 0.0044444446
      %v3013 = vmul.f32 %v2901, 0.0044444446
      %v3014 = vmul.f32 %v2906, 0.0044444446
      %v3015 = vmul.f32 %v2909, 0.0044444446
      %v3016 = vmul.f32 %v2914, 0.0044444446
      %v3017 = vmul.f32 %v2917, 0.0044444446
      %v3018 = vmul.f32 %v2922, 0.0044444446
      %v3019 = vmul.f32 %v2925, 0.0044444446
      %v3020 = vmul.f32 %v2930, 0.0044444446
      %v3021 = vmul.f32 %v2933, 0.0044444446
      %v3022 = vmul.f32 %v2938, 0.0044444446
      %v3023 = vmul.f32 %v2941, 0.0044444446
      %v3024 = vmul.f32 %v2946, 0.0044444446
      %v3025 = vmul.f32 %v2949, 0.0044444446
      %v3026 = vmul.f32 %v2954, 0.0044444446
      %v3027 = vmul.f32 %v2957, 0.0044444446
      %v3028 = vmul.f32 %v2962, 0.0044444446
      %v3029 = vmul.f32 %v2965, 0.0044444446
      %v3030 = vmul.f32 %v2970, 0.0044444446
      %v3031 = vmul.f32 %v2973, 0.0044444446
      %v3032 = vmul.f32 %v2978, 0.0044444446
      %v3033 = vmul.f32 %v2981, 0.0044444446
      %v3034 = vmul.f32 %v2986, 0.0044444446
      %v3035 = vmul.f32 %v2989, 0.0044444446
      %v3036 = vmul.f32 %v2994, 0.0044444446
      %v3037 = vmul.f32 %v2997, 0.0044444446
      %v3038 = vmul.f32 %v3002, 0.0044444446
      %v3039 = vmul.f32 %v3005, 0.0044444446
      %v3040 = vld [vmem:[#allocation4] sm:$0xff]
      %v3041 = vld [vmem:[#allocation4 + $0x8] sm:$0xff]
      %v3042 = vld [vmem:[#allocation4 + $0x10] sm:$0xff]
      %v3043 = vld [vmem:[#allocation4 + $0x18] sm:$0xff]
      %v3044 = vld [vmem:[#allocation4 + $0x20] sm:$0xff]
      %v3045 = vld [vmem:[#allocation4 + $0x28] sm:$0xff]
      %v3046 = vld [vmem:[#allocation4 + $0x30] sm:$0xff]
      %v3047 = vld [vmem:[#allocation4 + $0x38] sm:$0xff]
      %v3048 = vld [vmem:[#allocation4 + $0x40] sm:$0xff]
      %v3049 = vld [vmem:[#allocation4 + $0x48] sm:$0xff]
      %v3050 = vld [vmem:[#allocation4 + $0x50] sm:$0xff]
      %v3051 = vld [vmem:[#allocation4 + $0x58] sm:$0xff]
      %v3052 = vld [vmem:[#allocation4 + $0x60] sm:$0xff]
      %v3053 = vld [vmem:[#allocation4 + $0x68] sm:$0xff]
      %v3054 = vld [vmem:[#allocation4 + $0x70] sm:$0xff]
      %v3055 = vld [vmem:[#allocation4 + $0x78] sm:$0xff]
      %v3056 = vld [vmem:[#allocation4 + $0x80] sm:$0xff]
      %v3057 = vld [vmem:[#allocation4 + $0x88] sm:$0xff]
      %v3058 = vld [vmem:[#allocation4 + $0x90] sm:$0xff]
      %v3059 = vld [vmem:[#allocation4 + $0x98] sm:$0xff]
      %v3060 = vld [vmem:[#allocation4 + $0xa0] sm:$0xff]
      %v3061 = vld [vmem:[#allocation4 + $0xa8] sm:$0xff]
      %v3062 = vld [vmem:[#allocation4 + $0xb0] sm:$0xff]
      %v3063 = vld [vmem:[#allocation4 + $0xb8] sm:$0xff]
      %v3064 = vld [vmem:[#allocation4 + $0xc0] sm:$0xff]
      %v3065 = vld [vmem:[#allocation4 + $0xc8] sm:$0xff]
      %v3066 = vld [vmem:[#allocation4 + $0xd0] sm:$0xff]
      %v3067 = vld [vmem:[#allocation4 + $0xd8] sm:$0xff]
      %v3068 = vld [vmem:[#allocation4 + $0xe0] sm:$0xff]
      %v3069 = vld [vmem:[#allocation4 + $0xe8] sm:$0xff]
      %v3070 = vld [vmem:[#allocation4 + $0xf0] sm:$0xff]
      %v3071 = vld [vmem:[#allocation4 + $0xf8] sm:$0xff]
      %v3072 = vld [vmem:[%s317] sm:$0xf]
      %vm3073 = vcmask 31744
      %v3075 = vsel %vm3073, %v3040, 0
      %v3078 = vsel %vm3073, %v3041, 0
      %v3081 = vsel %vm3073, %v3042, 0
      %v3084 = vsel %vm3073, %v3043, 0
      %v3087 = vsel %vm3073, %v3044, 0
      %v3090 = vsel %vm3073, %v3045, 0
      %v3093 = vsel %vm3073, %v3046, 0
      %v3096 = vsel %vm3073, %v3047, 0
      %v3099 = vsel %vm3073, %v3048, 0
      %v3102 = vsel %vm3073, %v3049, 0
      %v3105 = vsel %vm3073, %v3050, 0
      %v3108 = vsel %vm3073, %v3051, 0
      %v3111 = vsel %vm3073, %v3052, 0
      %v3114 = vsel %vm3073, %v3053, 0
      %v3117 = vsel %vm3073, %v3054, 0
      %v3120 = vsel %vm3073, %v3055, 0
      %v3123 = vsel %vm3073, %v3056, 0
      %v3126 = vsel %vm3073, %v3057, 0
      %v3129 = vsel %vm3073, %v3058, 0
      %v3132 = vsel %vm3073, %v3059, 0
      %v3135 = vsel %vm3073, %v3060, 0
      %v3138 = vsel %vm3073, %v3061, 0
      %v3141 = vsel %vm3073, %v3062, 0
      %v3144 = vsel %vm3073, %v3063, 0
      %v3147 = vsel %vm3073, %v3064, 0
      %v3150 = vsel %vm3073, %v3065, 0
      %v3153 = vsel %vm3073, %v3066, 0
      %v3156 = vsel %vm3073, %v3067, 0
      %v3159 = vsel %vm3073, %v3068, 0
      %v3162 = vsel %vm3073, %v3069, 0
      %v3165 = vsel %vm3073, %v3070, 0
      %v3168 = vsel %vm3073, %v3071, 0
      %v3171 = vsel %vm2843, %v3072, 0
      %3173 = vmatprep.subr.mxu0 0.0
      %3174 = vmatpush1.msra.mxu0 0.0
      %3175 = vmatprep.subr.mxu0 0.0
      %3176 = vmatpush1.msra.mxu0 0.0
      %3177 = vmatprep.subr.mxu0 0.0
      %3178 = vmatpush1.msra.mxu0 0.0
      %3179 = vmatprep.subr.mxu0 0.0
      %3180 = vmatpush1.msra.mxu0 0.0
      %3181 = vmatprep.subr.mxu0 0.0
      %3182 = vmatpush1.msra.mxu0 0.0
      %3183 = vmatprep.subr.mxu0 0.0
      %3184 = vmatpush1.msra.mxu0 0.0
      %3185 = vmatprep.subr.mxu0 0.0
      %3186 = vmatpush1.msra.mxu0 0.0
      %3187 = vmatprep.subr.mxu0 0.0
      %3188 = vmatpush1.msra.mxu0 0.0
      %3189 = vmatprep.subr.mxu0 0.0
      %3190 = vmatpush1.msra.mxu0 0.0
      %3191 = vmatprep.subr.mxu0 0.0
      %3192 = vmatpush1.msra.mxu0 0.0
      %3193 = vmatprep.subr.mxu0 0.0
      %3194 = vmatpush1.msra.mxu0 0.0
      %3195 = vmatprep.subr.mxu0 0.0
      %3196 = vmatpush1.msra.mxu0 0.0
      %3197 = vmatprep.subr.mxu0 0.0
      %3198 = vmatpush1.msra.mxu0 0.0
      %3199 = vmatprep.subr.mxu0 0.0
      %3200 = vmatpush1.msra.mxu0 0.0
      %3201 = vmatprep.subr.mxu0 0.0
      %3202 = vmatpush1.msra.mxu0 0.0
      %3203 = vmatprep.subr.mxu0 0.0
      %3204 = vmatpush1.msra.mxu0 %v3171
      %3205 = vmatprep.subr.mxu0 0.0
      %3206 = vmatpush2.msra.mxu0 0.0
      %3207 = vmatprep.subr.mxu0 0.0
      %3208 = vmatpush2.msra.mxu0 0.0
      %3209 = vmatprep.subr.mxu0 0.0
      %3210 = vmatpush2.msra.mxu0 0.0
      %3211 = vmatprep.subr.mxu0 0.0
      %3212 = vmatpush2.msra.mxu0 0.0
      %3213 = vmatprep.subr.mxu0 0.0
      %3214 = vmatpush2.msra.mxu0 0.0
      %3215 = vmatprep.subr.mxu0 0.0
      %3216 = vmatpush2.msra.mxu0 0.0
      %3217 = vmatprep.subr.mxu0 0.0
      %3218 = vmatpush2.msra.mxu0 0.0
      %3219 = vmatprep.subr.mxu0 0.0
      %3220 = vmatpush2.msra.mxu0 0.0
      %3221 = vmatprep.subr.mxu0 0.0
      %3222 = vmatpush2.msra.mxu0 0.0
      %3223 = vmatprep.subr.mxu0 0.0
      %3224 = vmatpush2.msra.mxu0 0.0
      %3225 = vmatprep.subr.mxu0 0.0
      %3226 = vmatpush2.msra.mxu0 0.0
      %3227 = vmatprep.subr.mxu0 0.0
      %3228 = vmatpush2.msra.mxu0 0.0
      %3229 = vmatprep.subr.mxu0 0.0
      %3230 = vmatpush2.msra.mxu0 0.0
      %3231 = vmatprep.subr.mxu0 0.0
      %3232 = vmatpush2.msra.mxu0 0.0
      %3233 = vmatprep.subr.mxu0 0.0
      %3234 = vmatpush2.msra.mxu0 0.0
      %3235 = vmatprep.subr.mxu0 0.0
      %3236 = vmatpush2.msra.mxu0 0.0
      %3237 = vmatprep.mubr.f32.mxu0 0.0
      %3238 = vmatmul.mubr.f32.gmra.mxu0 %v3075
      %v3239 = vpop.f32.mrf.mxu0
      %v3240 = vadd.f32 0.0, %v3239
      %v3241 = vpop.f32.mrf.mxu0
      %3242 = vmatprep.mubr.f32.mxu0 0.0
      %3243 = vmatmul.mubr.f32.gmra.mxu0 %v3078
      %v3244 = vpop.f32.mrf.mxu0
      %v3245 = vadd.f32 0.0, %v3244
      %v3246 = vpop.f32.mrf.mxu0
      %3247 = vmatprep.mubr.f32.mxu0 0.0
      %3248 = vmatmul.mubr.f32.gmra.mxu0 %v3081
      %v3249 = vpop.f32.mrf.mxu0
      %v3250 = vadd.f32 0.0, %v3249
      %v3251 = vpop.f32.mrf.mxu0
      %3252 = vmatprep.mubr.f32.mxu0 0.0
      %3253 = vmatmul.mubr.f32.gmra.mxu0 %v3084
      %v3254 = vpop.f32.mrf.mxu0
      %v3255 = vadd.f32 0.0, %v3254
      %v3256 = vpop.f32.mrf.mxu0
      %3257 = vmatprep.mubr.f32.mxu0 0.0
      %3258 = vmatmul.mubr.f32.gmra.mxu0 %v3087
      %v3259 = vpop.f32.mrf.mxu0
      %v3260 = vadd.f32 0.0, %v3259
      %v3261 = vpop.f32.mrf.mxu0
      %3262 = vmatprep.mubr.f32.mxu0 0.0
      %3263 = vmatmul.mubr.f32.gmra.mxu0 %v3090
      %v3264 = vpop.f32.mrf.mxu0
      %v3265 = vadd.f32 0.0, %v3264
      %v3266 = vpop.f32.mrf.mxu0
      %3267 = vmatprep.mubr.f32.mxu0 0.0
      %3268 = vmatmul.mubr.f32.gmra.mxu0 %v3093
      %v3269 = vpop.f32.mrf.mxu0
      %v3270 = vadd.f32 0.0, %v3269
      %v3271 = vpop.f32.mrf.mxu0
      %3272 = vmatprep.mubr.f32.mxu0 0.0
      %3273 = vmatmul.mubr.f32.gmra.mxu0 %v3096
      %v3274 = vpop.f32.mrf.mxu0
      %v3275 = vadd.f32 0.0, %v3274
      %v3276 = vpop.f32.mrf.mxu0
      %3277 = vmatprep.mubr.f32.mxu0 0.0
      %3278 = vmatmul.mubr.f32.gmra.mxu0 %v3099
      %v3279 = vpop.f32.mrf.mxu0
      %v3280 = vadd.f32 0.0, %v3279
      %v3281 = vpop.f32.mrf.mxu0
      %3282 = vmatprep.mubr.f32.mxu0 0.0
      %3283 = vmatmul.mubr.f32.gmra.mxu0 %v3102
      %v3284 = vpop.f32.mrf.mxu0
      %v3285 = vadd.f32 0.0, %v3284
      %v3286 = vpop.f32.mrf.mxu0
      %3287 = vmatprep.mubr.f32.mxu0 0.0
      %3288 = vmatmul.mubr.f32.gmra.mxu0 %v3105
      %v3289 = vpop.f32.mrf.mxu0
      %v3290 = vadd.f32 0.0, %v3289
      %v3291 = vpop.f32.mrf.mxu0
      %3292 = vmatprep.mubr.f32.mxu0 0.0
      %3293 = vmatmul.mubr.f32.gmra.mxu0 %v3108
      %v3294 = vpop.f32.mrf.mxu0
      %v3295 = vadd.f32 0.0, %v3294
      %v3296 = vpop.f32.mrf.mxu0
      %3297 = vmatprep.mubr.f32.mxu0 0.0
      %3298 = vmatmul.mubr.f32.gmra.mxu0 %v3111
      %v3299 = vpop.f32.mrf.mxu0
      %v3300 = vadd.f32 0.0, %v3299
      %v3301 = vpop.f32.mrf.mxu0
      %3302 = vmatprep.mubr.f32.mxu0 0.0
      %3303 = vmatmul.mubr.f32.gmra.mxu0 %v3114
      %v3304 = vpop.f32.mrf.mxu0
      %v3305 = vadd.f32 0.0, %v3304
      %v3306 = vpop.f32.mrf.mxu0
      %3307 = vmatprep.mubr.f32.mxu0 0.0
      %3308 = vmatmul.mubr.f32.gmra.mxu0 %v3117
      %v3309 = vpop.f32.mrf.mxu0
      %v3310 = vadd.f32 0.0, %v3309
      %v3311 = vpop.f32.mrf.mxu0
      %3312 = vmatprep.mubr.f32.mxu0 0.0
      %3313 = vmatmul.mubr.f32.gmra.mxu0 %v3120
      %v3314 = vpop.f32.mrf.mxu0
      %v3315 = vadd.f32 0.0, %v3314
      %v3316 = vpop.f32.mrf.mxu0
      %3317 = vmatprep.mubr.f32.mxu0 0.0
      %3318 = vmatmul.mubr.f32.gmra.mxu0 %v3123
      %v3319 = vpop.f32.mrf.mxu0
      %v3320 = vadd.f32 0.0, %v3319
      %v3321 = vpop.f32.mrf.mxu0
      %3322 = vmatprep.mubr.f32.mxu0 0.0
      %3323 = vmatmul.mubr.f32.gmra.mxu0 %v3126
      %v3324 = vpop.f32.mrf.mxu0
      %v3325 = vadd.f32 0.0, %v3324
      %v3326 = vpop.f32.mrf.mxu0
      %3327 = vmatprep.mubr.f32.mxu0 0.0
      %3328 = vmatmul.mubr.f32.gmra.mxu0 %v3129
      %v3329 = vpop.f32.mrf.mxu0
      %v3330 = vadd.f32 0.0, %v3329
      %v3331 = vpop.f32.mrf.mxu0
      %3332 = vmatprep.mubr.f32.mxu0 0.0
      %3333 = vmatmul.mubr.f32.gmra.mxu0 %v3132
      %v3334 = vpop.f32.mrf.mxu0
      %v3335 = vadd.f32 0.0, %v3334
      %v3336 = vpop.f32.mrf.mxu0
      %3337 = vmatprep.mubr.f32.mxu0 0.0
      %3338 = vmatmul.mubr.f32.gmra.mxu0 %v3135
      %v3339 = vpop.f32.mrf.mxu0
      %v3340 = vadd.f32 0.0, %v3339
      %v3341 = vpop.f32.mrf.mxu0
      %3342 = vmatprep.mubr.f32.mxu0 0.0
      %3343 = vmatmul.mubr.f32.gmra.mxu0 %v3138
      %v3344 = vpop.f32.mrf.mxu0
      %v3345 = vadd.f32 0.0, %v3344
      %v3346 = vpop.f32.mrf.mxu0
      %3347 = vmatprep.mubr.f32.mxu0 0.0
      %3348 = vmatmul.mubr.f32.gmra.mxu0 %v3141
      %v3349 = vpop.f32.mrf.mxu0
      %v3350 = vadd.f32 0.0, %v3349
      %v3351 = vpop.f32.mrf.mxu0
      %3352 = vmatprep.mubr.f32.mxu0 0.0
      %3353 = vmatmul.mubr.f32.gmra.mxu0 %v3144
      %v3354 = vpop.f32.mrf.mxu0
      %v3355 = vadd.f32 0.0, %v3354
      %v3356 = vpop.f32.mrf.mxu0
      %3357 = vmatprep.mubr.f32.mxu0 0.0
      %3358 = vmatmul.mubr.f32.gmra.mxu0 %v3147
      %v3359 = vpop.f32.mrf.mxu0
      %v3360 = vadd.f32 0.0, %v3359
      %v3361 = vpop.f32.mrf.mxu0
      %3362 = vmatprep.mubr.f32.mxu0 0.0
      %3363 = vmatmul.mubr.f32.gmra.mxu0 %v3150
      %v3364 = vpop.f32.mrf.mxu0
      %v3365 = vadd.f32 0.0, %v3364
      %v3366 = vpop.f32.mrf.mxu0
      %3367 = vmatprep.mubr.f32.mxu0 0.0
      %3368 = vmatmul.mubr.f32.gmra.mxu0 %v3153
      %v3369 = vpop.f32.mrf.mxu0
      %v3370 = vadd.f32 0.0, %v3369
      %v3371 = vpop.f32.mrf.mxu0
      %3372 = vmatprep.mubr.f32.mxu0 0.0
      %3373 = vmatmul.mubr.f32.gmra.mxu0 %v3156
      %v3374 = vpop.f32.mrf.mxu0
      %v3375 = vadd.f32 0.0, %v3374
      %v3376 = vpop.f32.mrf.mxu0
      %3377 = vmatprep.mubr.f32.mxu0 0.0
      %3378 = vmatmul.mubr.f32.gmra.mxu0 %v3159
      %v3379 = vpop.f32.mrf.mxu0
      %v3380 = vadd.f32 0.0, %v3379
      %v3381 = vpop.f32.mrf.mxu0
      %3382 = vmatprep.mubr.f32.mxu0 0.0
      %3383 = vmatmul.mubr.f32.gmra.mxu0 %v3162
      %v3384 = vpop.f32.mrf.mxu0
      %v3385 = vadd.f32 0.0, %v3384
      %v3386 = vpop.f32.mrf.mxu0
      %3387 = vmatprep.mubr.f32.mxu0 0.0
      %3388 = vmatmul.mubr.f32.gmra.mxu0 %v3165
      %v3389 = vpop.f32.mrf.mxu0
      %v3390 = vadd.f32 0.0, %v3389
      %v3391 = vpop.f32.mrf.mxu0
      %3392 = vmatprep.mubr.f32.mxu0 0.0
      %3393 = vmatmul.mubr.f32.gmra.mxu0 %v3168
      %v3394 = vpop.f32.mrf.mxu0
      %v3395 = vadd.f32 0.0, %v3394
      %v3396 = vpop.f32.mrf.mxu0
      %3397 = vdwg.mxu0
      %v3398 = vadd.f32 %v3008, %v3240
      %v3399 = vadd.f32 %v3009, %v3245
      %v3400 = vadd.f32 %v3010, %v3250
      %v3401 = vadd.f32 %v3011, %v3255
      %v3402 = vadd.f32 %v3012, %v3260
      %v3403 = vadd.f32 %v3013, %v3265
      %v3404 = vadd.f32 %v3014, %v3270
      %v3405 = vadd.f32 %v3015, %v3275
      %v3406 = vadd.f32 %v3016, %v3280
      %v3407 = vadd.f32 %v3017, %v3285
      %v3408 = vadd.f32 %v3018, %v3290
      %v3409 = vadd.f32 %v3019, %v3295
      %v3410 = vadd.f32 %v3020, %v3300
      %v3411 = vadd.f32 %v3021, %v3305
      %v3412 = vadd.f32 %v3022, %v3310
      %v3413 = vadd.f32 %v3023, %v3315
      %v3414 = vadd.f32 %v3024, %v3320
      %v3415 = vadd.f32 %v3025, %v3325
      %v3416 = vadd.f32 %v3026, %v3330
      %v3417 = vadd.f32 %v3027, %v3335
      %v3418 = vadd.f32 %v3028, %v3340
      %v3419 = vadd.f32 %v3029, %v3345
      %v3420 = vadd.f32 %v3030, %v3350
      %v3421 = vadd.f32 %v3031, %v3355
      %v3422 = vadd.f32 %v3032, %v3360
      %v3423 = vadd.f32 %v3033, %v3365
      %v3424 = vadd.f32 %v3034, %v3370
      %v3425 = vadd.f32 %v3035, %v3375
      %v3426 = vadd.f32 %v3036, %v3380
      %v3427 = vadd.f32 %v3037, %v3385
      %v3428 = vadd.f32 %v3038, %v3390
      %v3429 = vadd.f32 %v3039, %v3395
      %vm3430 = vcmask 64512
      %3431 = vst.msk [vmem:[%s325] sm:$0xff] %vm3430, %v3398
      %3432 = vst.msk [vmem:[%s325 + $0x8] sm:$0xff] %vm3430, %v3399
      %3433 = vst.msk [vmem:[%s325 + $0x10] sm:$0xff] %vm3430, %v3400
      %3434 = vst.msk [vmem:[%s325 + $0x18] sm:$0xff] %vm3430, %v3401
      %3435 = vst.msk [vmem:[%s325 + $0x20] sm:$0xff] %vm3430, %v3402
      %3436 = vst.msk [vmem:[%s325 + $0x28] sm:$0xff] %vm3430, %v3403
      %3437 = vst.msk [vmem:[%s325 + $0x30] sm:$0xff] %vm3430, %v3404
      %3438 = vst.msk [vmem:[%s325 + $0x38] sm:$0xff] %vm3430, %v3405
      %3439 = vst.msk [vmem:[%s325 + $0x40] sm:$0xff] %vm3430, %v3406
      %3440 = vst.msk [vmem:[%s325 + $0x48] sm:$0xff] %vm3430, %v3407
      %3441 = vst.msk [vmem:[%s325 + $0x50] sm:$0xff] %vm3430, %v3408
      %3442 = vst.msk [vmem:[%s325 + $0x58] sm:$0xff] %vm3430, %v3409
      %3443 = vst.msk [vmem:[%s325 + $0x60] sm:$0xff] %vm3430, %v3410
      %3444 = vst.msk [vmem:[%s325 + $0x68] sm:$0xff] %vm3430, %v3411
      %3445 = vst.msk [vmem:[%s325 + $0x70] sm:$0xff] %vm3430, %v3412
      %3446 = vst.msk [vmem:[%s325 + $0x78] sm:$0xff] %vm3430, %v3413
      %3447 = vst.msk [vmem:[%s325 + $0x80] sm:$0xff] %vm3430, %v3414
      %3448 = vst.msk [vmem:[%s325 + $0x88] sm:$0xff] %vm3430, %v3415
      %3449 = vst.msk [vmem:[%s325 + $0x90] sm:$0xff] %vm3430, %v3416
      %3450 = vst.msk [vmem:[%s325 + $0x98] sm:$0xff] %vm3430, %v3417
      %3451 = vst.msk [vmem:[%s325 + $0xa0] sm:$0xff] %vm3430, %v3418
      %3452 = vst.msk [vmem:[%s325 + $0xa8] sm:$0xff] %vm3430, %v3419
      %3453 = vst.msk [vmem:[%s325 + $0xb0] sm:$0xff] %vm3430, %v3420
      %3454 = vst.msk [vmem:[%s325 + $0xb8] sm:$0xff] %vm3430, %v3421
      %3455 = vst.msk [vmem:[%s325 + $0xc0] sm:$0xff] %vm3430, %v3422
      %3456 = vst.msk [vmem:[%s325 + $0xc8] sm:$0xff] %vm3430, %v3423
      %3457 = vst.msk [vmem:[%s325 + $0xd0] sm:$0xff] %vm3430, %v3424
      %3458 = vst.msk [vmem:[%s325 + $0xd8] sm:$0xff] %vm3430, %v3425
      %3459 = vst.msk [vmem:[%s325 + $0xe0] sm:$0xff] %vm3430, %v3426
      %3460 = vst.msk [vmem:[%s325 + $0xe8] sm:$0xff] %vm3430, %v3427
      %3461 = vst.msk [vmem:[%s325 + $0xf0] sm:$0xff] %vm3430, %v3428
      %3462 = vst.msk [vmem:[%s325 + $0xf8] sm:$0xff] %vm3430, %v3429
      %p3463 = scmp.lt.s32.totalorder %s21, 1
      %s3464 = scalar_select %p3463, %s21, 1
      %p3465 = scmp.lt.s32.totalorder %s22, 0
      %s3466 = scalar_select %p3465, %s22, 0
      %s3467 = smul.addr %s3464, 32
      %s3468 = sadd.s32 %s3466, %s3467
      %s3469 = smul.addr %s3468, 8
      %s3470 = scalar_lea.vmem %s6, %s3469
      // Predicated region
      $region49: #{wide_basic_block_q_forward.3} parent=43 // pred_check
        %p3471 = pneg %p195
      $region50: #{wide_basic_block_q_forward.3} parent=43 // pred_check_branch
        %3473 = sbr.rel (%p3471) target = $region52
      $region51: #{wide_basic_block_q_forward.3} parent=43 // pred_region
        _
      $region52: #{wide_basic_block_q_forward.3} parent=43 // pred_fallthru
        _
    $region44: #{wide_basic_block_q_forward.3} parent=5 // pred_fallthru
      _
    %p3474 = scmp.le.s32.totalorder 2, %s12
    // Predicated region
    $region53: #{wide_basic_block_q_forward.3} parent=5 // pred_check
      %p3475 = pneg %p3474
    $region54: #{wide_basic_block_q_forward.3} parent=5 // pred_check_branch
      %3477 = sbr.rel (%p3475) target = $region56
    $region55: #{wide_basic_block_q_forward.3} parent=5 // pred_region
      %s3478 = ssub.s32 %s12, 2
      // Predicated region
      $region57: #{wide_basic_block_q_forward.3} parent=55 // pred_check
        %p3479 = pneg %p201
      $region58: #{wide_basic_block_q_forward.3} parent=55 // pred_check_branch
        %3481 = sbr.rel (%p3479) target = $region60
      $region59: #{wide_basic_block_q_forward.3} parent=55 // pred_region
        %p3482 = scmp.lt.s32.totalorder %s23, 1
        %s3483 = scalar_select %p3482, %s23, 1
        %p3484 = scmp.lt.s32.totalorder %s24, 0
        %s3485 = scalar_select %p3484, %s24, 0
        %s3486 = smul.addr %s3483, 32
        %s3487 = sadd.s32 %s3485, %s3486
        %s3488 = smul.addr %s3487, 8
        %s3489 = scalar_lea.vmem %s6, %s3488
      $region60: #{wide_basic_block_q_forward.3} parent=55 // pred_fallthru
        _
    $region56: #{wide_basic_block_q_forward.3} parent=5 // pred_fallthru
      _
  $region6: #{wide_basic_block_q_forward.3} parent=0 // loop_footer
    %s16 = sadd.s32 1, %s12
  $region7: #{wide_basic_block_q_forward.3} parent=0 // loop_footer_branch
    %11 = sbr.rel target = $region3
  $region8: #{wide_basic_block_q_forward.3} parent=0 // loop_exit
    _

</llo_original>
